<compile_context>
chip_gen: v7x
topology: tpu7x:2x2x1
jax: 0.10.0
libtpu: 0.0.40
codegen_flags: <defaults>
</compile_context>

<pallas_src>
import functools

import jax
import jax.numpy as jnp
from jax.experimental import pallas as pl
from jax.experimental.pallas import tpu as pltpu

MEL_DIM  = 16
TEXT_DIM = 8
COND_DIM = 4
OUT_DIM  = 32            # OUT_DIM // GROUPS == 2 (compact conv path assumes this)
KSIZE    = 31            # ConvPositionEmbedding default kernel_size
GROUPS   = 16            # ConvPositionEmbedding default groups
PAD      = (KSIZE - 1) // 2
SEQ      = 32
BATCH    = 2
IN_DIM   = MEL_DIM * 2 + TEXT_DIM + COND_DIM * 2


def _mish(x):
    # Mish(x) = x * tanh(softplus(x)) = x * (1 - 2 / ((1 + e^x)^2 + 1)).
    # Single EUP exp; clamp keeps exp finite (for x > 20 the multiplier is 1.0
    # to f32 precision anyway), no intermediate infs.
    e = jnp.exp(jnp.minimum(x, 20.0))
    sq = (1.0 + e) * (1.0 + e)
    return x * (1.0 - 2.0 / (sq + 1.0))


def _input_embedding_kernel(featT_ref, wT_ref, masks_ref, convp_ref, out_ref):
    """Whole-batch body on a transposed (D, B*N) tile (sequence on lanes)."""
    d, bn = out_ref.shape

    # ---- fused projection: one MXU matmul ----------------------------------
    # wT: (D, F), featT: (F, B*N) -> h^T: (D, B*N).  The one-hot batch columns
    # of featT pick up the per-batch base row folded into wT (bias + style +
    # time projections), so no separate broadcast/add is needed.
    h = jnp.dot(wT_ref[...], featT_ref[...], preferred_element_type=jnp.float32)

    # Channels live on sublanes; even/odd row mask used by the pair swap
    # (hoisted: built once, reused by both conv layers).
    row_even = (jax.lax.broadcasted_iota(jnp.int32, (d, bn), 0) % 2) == 0

    def pair_swap(v):
        # v[c, :] -> v[c ^ 1, :]  (swap the two channels of each conv group).
        # d is even, so the wrap-around rows of each roll are never selected.
        down = pltpu.roll(v, shift=d - 1, axis=0)   # down[c] = v[c + 1]
        up = pltpu.roll(v, shift=1, axis=0)         # up[c]   = v[c - 1]
        return jnp.where(row_even, down, up)

    def grouped_conv(v, layer):
        # Compact per-channel weights for this layer (channels on sublanes,
        # taps on lanes):
        #   cp[:, k]       same-channel coefficient for tap k          (A)
        #   cp[:, K + k]   pre-swapped partner-channel coefficient     (Bsw)
        #   cp[:, 2K]      bias
        cp = convp_ref[layer]                                  # (D, 2K + 1)
        p = jnp.zeros((d, bn), jnp.float32)
        q = jnp.zeros((d, bn), jnp.float32)
        for k in range(KSIZE):                                 # unrolled taps
            s = k - PAD
            if s == 0:
                sm = v                                         # mask is all-ones
            else:
                # lanes j -> v[:, j + s]; the precomputed mask zeroes taps that
                # fall outside the sequence or would cross a batch boundary
                # (including the lane wrap-around of the roll).
                sm = pltpu.roll(v, shift=(-s) % bn, axis=1) * masks_ref[k]
            p = p + sm * cp[:, k:k + 1]
            q = q + sm * cp[:, KSIZE + k:KSIZE + k + 1]
        # ONE channel pair-swap per conv layer (coefficients were pre-swapped).
        return p + pair_swap(q) + cp[:, 2 * KSIZE:2 * KSIZE + 1]

    y = _mish(grouped_conv(h, 0))
    y = _mish(grouped_conv(y, 1))
    out_ref[...] = (y + h).astype(out_ref.dtype)               # residual add


def _compact_conv_weights(w):
    """torch Conv1d weight (D, 2, K) with groups = D // 2  ->  compact (K, D):
       A[k, c]   = w[c,     c % 2, k]   (coefficient for input channel c)
       Bsw[k, c] = w[c ^ 1, c % 2, k]   (pre-swapped partner coefficient, so the
                   partner term is pair_swap(sum_k shift_k(x) * Bsw[k]))."""
    d, cpg, k = w.shape
    if cpg != 2:
        raise ValueError(
            f"compact grouped-conv path assumes 2 channels per group, got {cpg}")
    w_k = jnp.transpose(w, (2, 0, 1))                 # (K, D, 2)
    c = jnp.arange(d)
    a = w_k[:, c, c % 2]                              # (K, D)
    bsw = w_k[:, c ^ 1, c % 2]                        # (K, D)
    return a, bsw


@functools.partial(jax.jit, static_argnames=("drop_audio_cond",))
def input_embedding(x, cond, text_embed, style_emb, time_emb, params,
                    drop_audio_cond=False):
    b, n, mel = x.shape
    txt = text_embed.shape[-1]
    cdim = style_emb.shape[-1]
    bn = b * n
    if drop_audio_cond:
        cond = jnp.zeros_like(cond)

    wp, bp = params["wp"], params["bp"]
    d = wp.shape[-1]
    assert d % 2 == 0, "pair_swap lane/sublane select requires an even dim"

    # Split the projection weight to match torch.cat((x, cond, text, style, time)).
    o = 0
    wx = wp[o:o + mel];  o += mel
    wc = wp[o:o + mel];  o += mel
    wt = wp[o:o + txt];  o += txt
    ws = wp[o:o + cdim]; o += cdim
    wtm = wp[o:o + cdim]
    # Per-batch additive row: proj bias + style/time projections — tiny (B, D).
    base = style_emb @ ws + time_emb @ wtm + bp

    # Fused projection operands.  One-hot batch-indicator columns make `base`
    # ride the single MXU matmul; contraction dim padded to a multiple of 8.
    onehot = jnp.repeat(jnp.eye(b, dtype=x.dtype), n, axis=0)           # (B*N, B)
    feat = jnp.concatenate(
        [x.reshape(bn, mel), cond.reshape(bn, mel),
         text_embed.reshape(bn, txt), onehot], axis=-1)                 # (B*N, F)
    w_fused = jnp.concatenate([wx, wc, wt, base], axis=0)               # (F, D)
    f_pad = (-feat.shape[-1]) % 8
    if f_pad:
        feat = jnp.pad(feat, ((0, 0), (0, f_pad)))
        w_fused = jnp.pad(w_fused, ((0, f_pad), (0, 0)))
    featT = feat.T                                                      # (F, B*N)
    wT = w_fused.T                                                      # (D, F)

    # K 'same'-padding / batch-boundary masks, one (1, B*N) lane row per tap.
    pos = jnp.arange(bn) % n
    offs = jnp.arange(KSIZE)[:, None] - PAD
    masks = ((pos[None, :] + offs >= 0) & (pos[None, :] + offs < n))
    masks = masks.astype(jnp.float32).reshape(KSIZE, 1, bn)             # (K,1,B*N)

    # Packed grouped-conv weights: (layer, D, 2K+1) — channels on sublanes,
    # taps on lanes (contiguous rows => clean HBM->VMEM DMA).
    a1, s1 = _compact_conv_weights(params["w1"])
    a2, s2 = _compact_conv_weights(params["w2"])
    slab = lambda a, bsw, bias: jnp.concatenate([a, bsw, bias], axis=0).T
    convp = jnp.stack([slab(a1, s1, params["b1"]),
                       slab(a2, s2, params["b2"])], axis=0)             # (2,D,2K+1)

    vmem = lambda: pl.BlockSpec(memory_space=pltpu.MemorySpace.VMEM)
    outT = pl.pallas_call(
        _input_embedding_kernel,
        out_shape=jax.ShapeDtypeStruct((d, bn), x.dtype),
        in_specs=[vmem() for _ in range(4)],
        out_specs=vmem(),
    )(featT, wT, masks, convp)

    return outT.T.reshape(b, n, d)


def init_params(key):
    ks = jax.random.split(key, 6)
    lim_p = 1.0 / (IN_DIM ** 0.5)
    lim_c = 1.0 / (((OUT_DIM // GROUPS) * KSIZE) ** 0.5)
    return dict(
        wp=jax.random.uniform(ks[0], (IN_DIM, OUT_DIM), jnp.float32, -lim_p, lim_p),
        bp=jax.random.uniform(ks[1], (1, OUT_DIM), jnp.float32, -lim_p, lim_p),
        w1=jax.random.uniform(ks[2], (OUT_DIM, OUT_DIM // GROUPS, KSIZE),
                              jnp.float32, -lim_c, lim_c),
        b1=jax.random.uniform(ks[3], (1, OUT_DIM), jnp.float32, -lim_c, lim_c),
        w2=jax.random.uniform(ks[4], (OUT_DIM, OUT_DIM // GROUPS, KSIZE),
                              jnp.float32, -lim_c, lim_c),
        b2=jax.random.uniform(ks[5], (1, OUT_DIM), jnp.float32, -lim_c, lim_c),
    )


def reference(x, cond, text_embed, style_emb, time_emb, params,
              drop_audio_cond=False):
    """Pure-JAX reference mirroring the PyTorch forward (true grouped conv)."""
    b, n, _ = x.shape
    if drop_audio_cond:
        cond = jnp.zeros_like(cond)
    style = jnp.broadcast_to(style_emb[:, None, :], (b, n, style_emb.shape[-1]))
    time = jnp.broadcast_to(time_emb[:, None, :], (b, n, time_emb.shape[-1]))
    feat = jnp.concatenate([x, cond, text_embed, style, time], axis=-1)
    h = feat @ params["wp"] + params["bp"][0]

    def mish(v):
        return v * jnp.tanh(jax.nn.softplus(v))

    def conv(v, w, bias):
        v_ncw = jnp.transpose(v, (0, 2, 1))                       # NCW like torch
        out = jax.lax.conv_general_dilated(
            v_ncw, w, window_strides=(1,),
            padding=[(KSIZE // 2, KSIZE // 2)],
            dimension_numbers=("NCH", "OIH", "NCH"),
            feature_group_count=GROUPS)
        out = out + bias[0][None, :, None]
        return jnp.transpose(out, (0, 2, 1))

    y = mish(conv(h, params["w1"], params["b1"]))
    y = mish(conv(y, params["w2"], params["b2"]))
    return y + h


if __name__ == "__main__":
    key = jax.random.PRNGKey(0)
    k_param, kx, kc, kt, ksty, ktim = jax.random.split(key, 6)
    params = init_params(k_param)

    x = jax.random.normal(kx, (BATCH, SEQ, MEL_DIM), jnp.float32)
    cond = jax.random.normal(kc, (BATCH, SEQ, MEL_DIM), jnp.float32)
    text_embed = jax.random.normal(kt, (BATCH, SEQ, TEXT_DIM), jnp.float32)
    style_emb = jax.random.normal(ksty, (BATCH, COND_DIM), jnp.float32)
    time_emb = jax.random.normal(ktim, (BATCH, COND_DIM), jnp.float32)

    out = input_embedding(x, cond, text_embed, style_emb, time_emb, params)
    out = jax.block_until_ready(out)

    ref = reference(x, cond, text_embed, style_emb, time_emb, params)
    assert out.shape == (BATCH, SEQ, OUT_DIM)
    err = float(jnp.max(jnp.abs(out - ref)))
    assert jnp.allclose(out, ref, atol=1e-3, rtol=1e-3), f"max abs err {err}"
    print("KERNEL_OK")
</pallas_src>

<mosaic_0001>
module attributes {stable_mosaic.version = 11 : i64} {
  func.func @_input_embedding_kernel(%arg0: memref<48x64xf32, #tpu.memory_space<vmem>>, %arg1: memref<32x48xf32, #tpu.memory_space<vmem>>, %arg2: memref<31x1x64xf32, #tpu.memory_space<vmem>>, %arg3: memref<2x32x63xf32, #tpu.memory_space<vmem>>, %arg4: memref<32x64xf32, #tpu.memory_space<vmem>>) attributes {dimension_semantics = [], scalar_prefetch = 0 : i64, scratch_operands = 0 : i64, tpu.core_type = #tpu.core_type<tc>} {
    %c0 = arith.constant 0 : index
    %c0_0 = arith.constant 0 : index
    %0 = vector.load %arg1[%c0, %c0_0] : memref<32x48xf32, #tpu.memory_space<vmem>>, vector<32x48xf32>
    %c0_1 = arith.constant 0 : index
    %c0_2 = arith.constant 0 : index
    %1 = vector.load %arg0[%c0_1, %c0_2] : memref<48x64xf32, #tpu.memory_space<vmem>>, vector<48x64xf32>
    %cst = arith.constant dense<0.000000e+00> : vector<32x64xf32>
    %2 = tpu.matmul %0, %1, %cst {dimension_numbers = #tpu.dot_dimension_numbers<[1], [0], [0], [1], [0, 0, 1, 1], [], []>} : vector<32x48xf32>, vector<48x64xf32>, vector<32x64xf32> -> vector<32x64xf32>
    %3 = tpu.iota {dimensions = array<i32: 0>} : vector<32x64xi32>
    %c2_i32 = arith.constant 2 : i32
    %c0_i32 = arith.constant 0 : i32
    %4 = arith.cmpi eq, %c2_i32, %c0_i32 : i32
    %c1_i32 = arith.constant 1 : i32
    %5 = arith.select %4, %c1_i32, %c2_i32 : i32
    %6 = vector.broadcast %5 : i32 to vector<32x64xi32>
    %7 = arith.remsi %3, %6 : vector<32x64xi32>
    %c0_i32_3 = arith.constant 0 : i32
    %8 = vector.broadcast %c0_i32_3 : i32 to vector<32x64xi32>
    %9 = arith.cmpi ne, %7, %8 : vector<32x64xi32>
    %c0_i32_4 = arith.constant 0 : i32
    %10 = vector.broadcast %c0_i32_4 : i32 to vector<32x64xi32>
    %11 = arith.cmpi slt, %7, %10 : vector<32x64xi32>
    %c0_i32_5 = arith.constant 0 : i32
    %12 = arith.cmpi slt, %5, %c0_i32_5 : i32
    %13 = vector.broadcast %12 : i1 to vector<32x64xi1>
    %14 = vector.broadcast %13 : vector<32x64xi1> to vector<32x64xi1>
    %15 = arith.xori %11, %14 : vector<32x64xi1>
    %16 = arith.andi %15, %9 : vector<32x64xi1>
    %17 = vector.broadcast %5 : i32 to vector<32x64xi32>
    %18 = arith.addi %7, %17 : vector<32x64xi32>
    %19 = arith.select %16, %18, %7 : vector<32x64xi1>, vector<32x64xi32>
    %c0_i32_6 = arith.constant 0 : i32
    %20 = vector.broadcast %c0_i32_6 : i32 to vector<32x64xi32>
    %21 = arith.cmpi eq, %19, %20 : vector<32x64xi32>
    %c0_7 = arith.constant 0 : index
    %c0_8 = arith.constant 0 : index
    %c0_9 = arith.constant 0 : index
    %22 = vector.load %arg3[%c0_7, %c0_8, %c0_9] : memref<2x32x63xf32, #tpu.memory_space<vmem>>, vector<1x32x63xf32>
    %23 = vector.shape_cast %22 : vector<1x32x63xf32> to vector<32x63xf32>
    %cst_10 = arith.constant 0.000000e+00 : f32
    %24 = vector.broadcast %cst_10 : f32 to vector<32x64xf32>
    %cst_11 = arith.constant 0.000000e+00 : f32
    %25 = vector.broadcast %cst_11 : f32 to vector<32x64xf32>
    %c15_i32 = arith.constant 15 : i32
    %26 = tpu.dynamic_rotate %2 by %c15_i32 dim 1 : vector<32x64xf32>, i32 -> vector<32x64xf32>
    %c0_12 = arith.constant 0 : index
    %c0_13 = arith.constant 0 : index
    %c0_14 = arith.constant 0 : index
    %27 = vector.load %arg2[%c0_12, %c0_13, %c0_14] : memref<31x1x64xf32, #tpu.memory_space<vmem>>, vector<1x1x64xf32>
    %28 = vector.shape_cast %27 : vector<1x1x64xf32> to vector<1x64xf32>
    %29 = vector.broadcast %28 : vector<1x64xf32> to vector<32x64xf32>
    %30 = arith.mulf %26, %29 : vector<32x64xf32>
    %31 = vector.extract_strided_slice %23 {offsets = [0, 0], sizes = [32, 1], strides = [1, 1]} : vector<32x63xf32> to vector<32x1xf32>
    %32 = vector.broadcast %31 : vector<32x1xf32> to vector<32x64xf32>
    %33 = arith.mulf %30, %32 : vector<32x64xf32>
    %34 = arith.addf %24, %33 : vector<32x64xf32>
    %35 = vector.extract_strided_slice %23 {offsets = [0, 31], sizes = [32, 1], strides = [1, 1]} : vector<32x63xf32> to vector<32x1xf32>
    %36 = vector.broadcast %35 : vector<32x1xf32> to vector<32x64xf32>
    %37 = arith.mulf %30, %36 : vector<32x64xf32>
    %38 = arith.addf %25, %37 : vector<32x64xf32>
    %c14_i32 = arith.constant 14 : i32
    %39 = tpu.dynamic_rotate %2 by %c14_i32 dim 1 : vector<32x64xf32>, i32 -> vector<32x64xf32>
    %c1 = arith.constant 1 : index
    %c0_15 = arith.constant 0 : index
    %c0_16 = arith.constant 0 : index
    %40 = vector.load %arg2[%c1, %c0_15, %c0_16] : memref<31x1x64xf32, #tpu.memory_space<vmem>>, vector<1x1x64xf32>
    %41 = vector.shape_cast %40 : vector<1x1x64xf32> to vector<1x64xf32>
    %42 = vector.broadcast %41 : vector<1x64xf32> to vector<32x64xf32>
    %43 = arith.mulf %39, %42 : vector<32x64xf32>
    %44 = vector.extract_strided_slice %23 {offsets = [0, 1], sizes = [32, 1], strides = [1, 1]} : vector<32x63xf32> to vector<32x1xf32>
    %45 = vector.broadcast %44 : vector<32x1xf32> to vector<32x64xf32>
    %46 = arith.mulf %43, %45 : vector<32x64xf32>
    %47 = arith.addf %34, %46 : vector<32x64xf32>
    %48 = vector.extract_strided_slice %23 {offsets = [0, 32], sizes = [32, 1], strides = [1, 1]} : vector<32x63xf32> to vector<32x1xf32>
    %49 = vector.broadcast %48 : vector<32x1xf32> to vector<32x64xf32>
    %50 = arith.mulf %43, %49 : vector<32x64xf32>
    %51 = arith.addf %38, %50 : vector<32x64xf32>
    %c13_i32 = arith.constant 13 : i32
    %52 = tpu.dynamic_rotate %2 by %c13_i32 dim 1 : vector<32x64xf32>, i32 -> vector<32x64xf32>
    %c2 = arith.constant 2 : index
    %c0_17 = arith.constant 0 : index
    %c0_18 = arith.constant 0 : index
    %53 = vector.load %arg2[%c2, %c0_17, %c0_18] : memref<31x1x64xf32, #tpu.memory_space<vmem>>, vector<1x1x64xf32>
    %54 = vector.shape_cast %53 : vector<1x1x64xf32> to vector<1x64xf32>
    %55 = vector.broadcast %54 : vector<1x64xf32> to vector<32x64xf32>
    %56 = arith.mulf %52, %55 : vector<32x64xf32>
    %57 = vector.extract_strided_slice %23 {offsets = [0, 2], sizes = [32, 1], strides = [1, 1]} : vector<32x63xf32> to vector<32x1xf32>
    %58 = vector.broadcast %57 : vector<32x1xf32> to vector<32x64xf32>
    %59 = arith.mulf %56, %58 : vector<32x64xf32>
    %60 = arith.addf %47, %59 : vector<32x64xf32>
    %61 = vector.extract_strided_slice %23 {offsets = [0, 33], sizes = [32, 1], strides = [1, 1]} : vector<32x63xf32> to vector<32x1xf32>
    %62 = vector.broadcast %61 : vector<32x1xf32> to vector<32x64xf32>
    %63 = arith.mulf %56, %62 : vector<32x64xf32>
    %64 = arith.addf %51, %63 : vector<32x64xf32>
    %c12_i32 = arith.constant 12 : i32
    %65 = tpu.dynamic_rotate %2 by %c12_i32 dim 1 : vector<32x64xf32>, i32 -> vector<32x64xf32>
    %c3 = arith.constant 3 : index
    %c0_19 = arith.constant 0 : index
    %c0_20 = arith.constant 0 : index
    %66 = vector.load %arg2[%c3, %c0_19, %c0_20] : memref<31x1x64xf32, #tpu.memory_space<vmem>>, vector<1x1x64xf32>
    %67 = vector.shape_cast %66 : vector<1x1x64xf32> to vector<1x64xf32>
    %68 = vector.broadcast %67 : vector<1x64xf32> to vector<32x64xf32>
    %69 = arith.mulf %65, %68 : vector<32x64xf32>
    %70 = vector.extract_strided_slice %23 {offsets = [0, 3], sizes = [32, 1], strides = [1, 1]} : vector<32x63xf32> to vector<32x1xf32>
    %71 = vector.broadcast %70 : vector<32x1xf32> to vector<32x64xf32>
    %72 = arith.mulf %69, %71 : vector<32x64xf32>
    %73 = arith.addf %60, %72 : vector<32x64xf32>
    %74 = vector.extract_strided_slice %23 {offsets = [0, 34], sizes = [32, 1], strides = [1, 1]} : vector<32x63xf32> to vector<32x1xf32>
    %75 = vector.broadcast %74 : vector<32x1xf32> to vector<32x64xf32>
    %76 = arith.mulf %69, %75 : vector<32x64xf32>
    %77 = arith.addf %64, %76 : vector<32x64xf32>
    %c11_i32 = arith.constant 11 : i32
    %78 = tpu.dynamic_rotate %2 by %c11_i32 dim 1 : vector<32x64xf32>, i32 -> vector<32x64xf32>
    %c4 = arith.constant 4 : index
    %c0_21 = arith.constant 0 : index
    %c0_22 = arith.constant 0 : index
    %79 = vector.load %arg2[%c4, %c0_21, %c0_22] : memref<31x1x64xf32, #tpu.memory_space<vmem>>, vector<1x1x64xf32>
    %80 = vector.shape_cast %79 : vector<1x1x64xf32> to vector<1x64xf32>
    %81 = vector.broadcast %80 : vector<1x64xf32> to vector<32x64xf32>
    %82 = arith.mulf %78, %81 : vector<32x64xf32>
    %83 = vector.extract_strided_slice %23 {offsets = [0, 4], sizes = [32, 1], strides = [1, 1]} : vector<32x63xf32> to vector<32x1xf32>
    %84 = vector.broadcast %83 : vector<32x1xf32> to vector<32x64xf32>
    %85 = arith.mulf %82, %84 : vector<32x64xf32>
    %86 = arith.addf %73, %85 : vector<32x64xf32>
    %87 = vector.extract_strided_slice %23 {offsets = [0, 35], sizes = [32, 1], strides = [1, 1]} : vector<32x63xf32> to vector<32x1xf32>
    %88 = vector.broadcast %87 : vector<32x1xf32> to vector<32x64xf32>
    %89 = arith.mulf %82, %88 : vector<32x64xf32>
    %90 = arith.addf %77, %89 : vector<32x64xf32>
    %c10_i32 = arith.constant 10 : i32
    %91 = tpu.dynamic_rotate %2 by %c10_i32 dim 1 : vector<32x64xf32>, i32 -> vector<32x64xf32>
    %c5 = arith.constant 5 : index
    %c0_23 = arith.constant 0 : index
    %c0_24 = arith.constant 0 : index
    %92 = vector.load %arg2[%c5, %c0_23, %c0_24] : memref<31x1x64xf32, #tpu.memory_space<vmem>>, vector<1x1x64xf32>
    %93 = vector.shape_cast %92 : vector<1x1x64xf32> to vector<1x64xf32>
    %94 = vector.broadcast %93 : vector<1x64xf32> to vector<32x64xf32>
    %95 = arith.mulf %91, %94 : vector<32x64xf32>
    %96 = vector.extract_strided_slice %23 {offsets = [0, 5], sizes = [32, 1], strides = [1, 1]} : vector<32x63xf32> to vector<32x1xf32>
    %97 = vector.broadcast %96 : vector<32x1xf32> to vector<32x64xf32>
    %98 = arith.mulf %95, %97 : vector<32x64xf32>
    %99 = arith.addf %86, %98 : vector<32x64xf32>
    %100 = vector.extract_strided_slice %23 {offsets = [0, 36], sizes = [32, 1], strides = [1, 1]} : vector<32x63xf32> to vector<32x1xf32>
    %101 = vector.broadcast %100 : vector<32x1xf32> to vector<32x64xf32>
    %102 = arith.mulf %95, %101 : vector<32x64xf32>
    %103 = arith.addf %90, %102 : vector<32x64xf32>
    %c9_i32 = arith.constant 9 : i32
    %104 = tpu.dynamic_rotate %2 by %c9_i32 dim 1 : vector<32x64xf32>, i32 -> vector<32x64xf32>
    %c6 = arith.constant 6 : index
    %c0_25 = arith.constant 0 : index
    %c0_26 = arith.constant 0 : index
    %105 = vector.load %arg2[%c6, %c0_25, %c0_26] : memref<31x1x64xf32, #tpu.memory_space<vmem>>, vector<1x1x64xf32>
    %106 = vector.shape_cast %105 : vector<1x1x64xf32> to vector<1x64xf32>
    %107 = vector.broadcast %106 : vector<1x64xf32> to vector<32x64xf32>
    %108 = arith.mulf %104, %107 : vector<32x64xf32>
    %109 = vector.extract_strided_slice %23 {offsets = [0, 6], sizes = [32, 1], strides = [1, 1]} : vector<32x63xf32> to vector<32x1xf32>
    %110 = vector.broadcast %109 : vector<32x1xf32> to vector<32x64xf32>
    %111 = arith.mulf %108, %110 : vector<32x64xf32>
    %112 = arith.addf %99, %111 : vector<32x64xf32>
    %113 = vector.extract_strided_slice %23 {offsets = [0, 37], sizes = [32, 1], strides = [1, 1]} : vector<32x63xf32> to vector<32x1xf32>
    %114 = vector.broadcast %113 : vector<32x1xf32> to vector<32x64xf32>
    %115 = arith.mulf %108, %114 : vector<32x64xf32>
    %116 = arith.addf %103, %115 : vector<32x64xf32>
    %c8_i32 = arith.constant 8 : i32
    %117 = tpu.dynamic_rotate %2 by %c8_i32 dim 1 : vector<32x64xf32>, i32 -> vector<32x64xf32>
    %c7 = arith.constant 7 : index
    %c0_27 = arith.constant 0 : index
    %c0_28 = arith.constant 0 : index
    %118 = vector.load %arg2[%c7, %c0_27, %c0_28] : memref<31x1x64xf32, #tpu.memory_space<vmem>>, vector<1x1x64xf32>
    %119 = vector.shape_cast %118 : vector<1x1x64xf32> to vector<1x64xf32>
    %120 = vector.broadcast %119 : vector<1x64xf32> to vector<32x64xf32>
    %121 = arith.mulf %117, %120 : vector<32x64xf32>
    %122 = vector.extract_strided_slice %23 {offsets = [0, 7], sizes = [32, 1], strides = [1, 1]} : vector<32x63xf32> to vector<32x1xf32>
    %123 = vector.broadcast %122 : vector<32x1xf32> to vector<32x64xf32>
    %124 = arith.mulf %121, %123 : vector<32x64xf32>
    %125 = arith.addf %112, %124 : vector<32x64xf32>
    %126 = vector.extract_strided_slice %23 {offsets = [0, 38], sizes = [32, 1], strides = [1, 1]} : vector<32x63xf32> to vector<32x1xf32>
    %127 = vector.broadcast %126 : vector<32x1xf32> to vector<32x64xf32>
    %128 = arith.mulf %121, %127 : vector<32x64xf32>
    %129 = arith.addf %116, %128 : vector<32x64xf32>
    %c7_i32 = arith.constant 7 : i32
    %130 = tpu.dynamic_rotate %2 by %c7_i32 dim 1 : vector<32x64xf32>, i32 -> vector<32x64xf32>
    %c8 = arith.constant 8 : index
    %c0_29 = arith.constant 0 : index
    %c0_30 = arith.constant 0 : index
    %131 = vector.load %arg2[%c8, %c0_29, %c0_30] : memref<31x1x64xf32, #tpu.memory_space<vmem>>, vector<1x1x64xf32>
    %132 = vector.shape_cast %131 : vector<1x1x64xf32> to vector<1x64xf32>
    %133 = vector.broadcast %132 : vector<1x64xf32> to vector<32x64xf32>
    %134 = arith.mulf %130, %133 : vector<32x64xf32>
    %135 = vector.extract_strided_slice %23 {offsets = [0, 8], sizes = [32, 1], strides = [1, 1]} : vector<32x63xf32> to vector<32x1xf32>
    %136 = vector.broadcast %135 : vector<32x1xf32> to vector<32x64xf32>
    %137 = arith.mulf %134, %136 : vector<32x64xf32>
    %138 = arith.addf %125, %137 : vector<32x64xf32>
    %139 = vector.extract_strided_slice %23 {offsets = [0, 39], sizes = [32, 1], strides = [1, 1]} : vector<32x63xf32> to vector<32x1xf32>
    %140 = vector.broadcast %139 : vector<32x1xf32> to vector<32x64xf32>
    %141 = arith.mulf %134, %140 : vector<32x64xf32>
    %142 = arith.addf %129, %141 : vector<32x64xf32>
    %c6_i32 = arith.constant 6 : i32
    %143 = tpu.dynamic_rotate %2 by %c6_i32 dim 1 : vector<32x64xf32>, i32 -> vector<32x64xf32>
    %c9 = arith.constant 9 : index
    %c0_31 = arith.constant 0 : index
    %c0_32 = arith.constant 0 : index
    %144 = vector.load %arg2[%c9, %c0_31, %c0_32] : memref<31x1x64xf32, #tpu.memory_space<vmem>>, vector<1x1x64xf32>
    %145 = vector.shape_cast %144 : vector<1x1x64xf32> to vector<1x64xf32>
    %146 = vector.broadcast %145 : vector<1x64xf32> to vector<32x64xf32>
    %147 = arith.mulf %143, %146 : vector<32x64xf32>
    %148 = vector.extract_strided_slice %23 {offsets = [0, 9], sizes = [32, 1], strides = [1, 1]} : vector<32x63xf32> to vector<32x1xf32>
    %149 = vector.broadcast %148 : vector<32x1xf32> to vector<32x64xf32>
    %150 = arith.mulf %147, %149 : vector<32x64xf32>
    %151 = arith.addf %138, %150 : vector<32x64xf32>
    %152 = vector.extract_strided_slice %23 {offsets = [0, 40], sizes = [32, 1], strides = [1, 1]} : vector<32x63xf32> to vector<32x1xf32>
    %153 = vector.broadcast %152 : vector<32x1xf32> to vector<32x64xf32>
    %154 = arith.mulf %147, %153 : vector<32x64xf32>
    %155 = arith.addf %142, %154 : vector<32x64xf32>
    %c5_i32 = arith.constant 5 : i32
    %156 = tpu.dynamic_rotate %2 by %c5_i32 dim 1 : vector<32x64xf32>, i32 -> vector<32x64xf32>
    %c10 = arith.constant 10 : index
    %c0_33 = arith.constant 0 : index
    %c0_34 = arith.constant 0 : index
    %157 = vector.load %arg2[%c10, %c0_33, %c0_34] : memref<31x1x64xf32, #tpu.memory_space<vmem>>, vector<1x1x64xf32>
    %158 = vector.shape_cast %157 : vector<1x1x64xf32> to vector<1x64xf32>
    %159 = vector.broadcast %158 : vector<1x64xf32> to vector<32x64xf32>
    %160 = arith.mulf %156, %159 : vector<32x64xf32>
    %161 = vector.extract_strided_slice %23 {offsets = [0, 10], sizes = [32, 1], strides = [1, 1]} : vector<32x63xf32> to vector<32x1xf32>
    %162 = vector.broadcast %161 : vector<32x1xf32> to vector<32x64xf32>
    %163 = arith.mulf %160, %162 : vector<32x64xf32>
    %164 = arith.addf %151, %163 : vector<32x64xf32>
    %165 = vector.extract_strided_slice %23 {offsets = [0, 41], sizes = [32, 1], strides = [1, 1]} : vector<32x63xf32> to vector<32x1xf32>
    %166 = vector.broadcast %165 : vector<32x1xf32> to vector<32x64xf32>
    %167 = arith.mulf %160, %166 : vector<32x64xf32>
    %168 = arith.addf %155, %167 : vector<32x64xf32>
    %c4_i32 = arith.constant 4 : i32
    %169 = tpu.dynamic_rotate %2 by %c4_i32 dim 1 : vector<32x64xf32>, i32 -> vector<32x64xf32>
    %c11 = arith.constant 11 : index
    %c0_35 = arith.constant 0 : index
    %c0_36 = arith.constant 0 : index
    %170 = vector.load %arg2[%c11, %c0_35, %c0_36] : memref<31x1x64xf32, #tpu.memory_space<vmem>>, vector<1x1x64xf32>
    %171 = vector.shape_cast %170 : vector<1x1x64xf32> to vector<1x64xf32>
    %172 = vector.broadcast %171 : vector<1x64xf32> to vector<32x64xf32>
    %173 = arith.mulf %169, %172 : vector<32x64xf32>
    %174 = vector.extract_strided_slice %23 {offsets = [0, 11], sizes = [32, 1], strides = [1, 1]} : vector<32x63xf32> to vector<32x1xf32>
    %175 = vector.broadcast %174 : vector<32x1xf32> to vector<32x64xf32>
    %176 = arith.mulf %173, %175 : vector<32x64xf32>
    %177 = arith.addf %164, %176 : vector<32x64xf32>
    %178 = vector.extract_strided_slice %23 {offsets = [0, 42], sizes = [32, 1], strides = [1, 1]} : vector<32x63xf32> to vector<32x1xf32>
    %179 = vector.broadcast %178 : vector<32x1xf32> to vector<32x64xf32>
    %180 = arith.mulf %173, %179 : vector<32x64xf32>
    %181 = arith.addf %168, %180 : vector<32x64xf32>
    %c3_i32 = arith.constant 3 : i32
    %182 = tpu.dynamic_rotate %2 by %c3_i32 dim 1 : vector<32x64xf32>, i32 -> vector<32x64xf32>
    %c12 = arith.constant 12 : index
    %c0_37 = arith.constant 0 : index
    %c0_38 = arith.constant 0 : index
    %183 = vector.load %arg2[%c12, %c0_37, %c0_38] : memref<31x1x64xf32, #tpu.memory_space<vmem>>, vector<1x1x64xf32>
    %184 = vector.shape_cast %183 : vector<1x1x64xf32> to vector<1x64xf32>
    %185 = vector.broadcast %184 : vector<1x64xf32> to vector<32x64xf32>
    %186 = arith.mulf %182, %185 : vector<32x64xf32>
    %187 = vector.extract_strided_slice %23 {offsets = [0, 12], sizes = [32, 1], strides = [1, 1]} : vector<32x63xf32> to vector<32x1xf32>
    %188 = vector.broadcast %187 : vector<32x1xf32> to vector<32x64xf32>
    %189 = arith.mulf %186, %188 : vector<32x64xf32>
    %190 = arith.addf %177, %189 : vector<32x64xf32>
    %191 = vector.extract_strided_slice %23 {offsets = [0, 43], sizes = [32, 1], strides = [1, 1]} : vector<32x63xf32> to vector<32x1xf32>
    %192 = vector.broadcast %191 : vector<32x1xf32> to vector<32x64xf32>
    %193 = arith.mulf %186, %192 : vector<32x64xf32>
    %194 = arith.addf %181, %193 : vector<32x64xf32>
    %c2_i32_39 = arith.constant 2 : i32
    %195 = tpu.dynamic_rotate %2 by %c2_i32_39 dim 1 : vector<32x64xf32>, i32 -> vector<32x64xf32>
    %c13 = arith.constant 13 : index
    %c0_40 = arith.constant 0 : index
    %c0_41 = arith.constant 0 : index
    %196 = vector.load %arg2[%c13, %c0_40, %c0_41] : memref<31x1x64xf32, #tpu.memory_space<vmem>>, vector<1x1x64xf32>
    %197 = vector.shape_cast %196 : vector<1x1x64xf32> to vector<1x64xf32>
    %198 = vector.broadcast %197 : vector<1x64xf32> to vector<32x64xf32>
    %199 = arith.mulf %195, %198 : vector<32x64xf32>
    %200 = vector.extract_strided_slice %23 {offsets = [0, 13], sizes = [32, 1], strides = [1, 1]} : vector<32x63xf32> to vector<32x1xf32>
    %201 = vector.broadcast %200 : vector<32x1xf32> to vector<32x64xf32>
    %202 = arith.mulf %199, %201 : vector<32x64xf32>
    %203 = arith.addf %190, %202 : vector<32x64xf32>
    %204 = vector.extract_strided_slice %23 {offsets = [0, 44], sizes = [32, 1], strides = [1, 1]} : vector<32x63xf32> to vector<32x1xf32>
    %205 = vector.broadcast %204 : vector<32x1xf32> to vector<32x64xf32>
    %206 = arith.mulf %199, %205 : vector<32x64xf32>
    %207 = arith.addf %194, %206 : vector<32x64xf32>
    %c1_i32_42 = arith.constant 1 : i32
    %208 = tpu.dynamic_rotate %2 by %c1_i32_42 dim 1 : vector<32x64xf32>, i32 -> vector<32x64xf32>
    %c14 = arith.constant 14 : index
    %c0_43 = arith.constant 0 : index
    %c0_44 = arith.constant 0 : index
    %209 = vector.load %arg2[%c14, %c0_43, %c0_44] : memref<31x1x64xf32, #tpu.memory_space<vmem>>, vector<1x1x64xf32>
    %210 = vector.shape_cast %209 : vector<1x1x64xf32> to vector<1x64xf32>
    %211 = vector.broadcast %210 : vector<1x64xf32> to vector<32x64xf32>
    %212 = arith.mulf %208, %211 : vector<32x64xf32>
    %213 = vector.extract_strided_slice %23 {offsets = [0, 14], sizes = [32, 1], strides = [1, 1]} : vector<32x63xf32> to vector<32x1xf32>
    %214 = vector.broadcast %213 : vector<32x1xf32> to vector<32x64xf32>
    %215 = arith.mulf %212, %214 : vector<32x64xf32>
    %216 = arith.addf %203, %215 : vector<32x64xf32>
    %217 = vector.extract_strided_slice %23 {offsets = [0, 45], sizes = [32, 1], strides = [1, 1]} : vector<32x63xf32> to vector<32x1xf32>
    %218 = vector.broadcast %217 : vector<32x1xf32> to vector<32x64xf32>
    %219 = arith.mulf %212, %218 : vector<32x64xf32>
    %220 = arith.addf %207, %219 : vector<32x64xf32>
    %221 = vector.extract_strided_slice %23 {offsets = [0, 15], sizes = [32, 1], strides = [1, 1]} : vector<32x63xf32> to vector<32x1xf32>
    %222 = vector.broadcast %221 : vector<32x1xf32> to vector<32x64xf32>
    %223 = arith.mulf %2, %222 : vector<32x64xf32>
    %224 = arith.addf %216, %223 : vector<32x64xf32>
    %225 = vector.extract_strided_slice %23 {offsets = [0, 46], sizes = [32, 1], strides = [1, 1]} : vector<32x63xf32> to vector<32x1xf32>
    %226 = vector.broadcast %225 : vector<32x1xf32> to vector<32x64xf32>
    %227 = arith.mulf %2, %226 : vector<32x64xf32>
    %228 = arith.addf %220, %227 : vector<32x64xf32>
    %c63_i32 = arith.constant 63 : i32
    %229 = tpu.dynamic_rotate %2 by %c63_i32 dim 1 : vector<32x64xf32>, i32 -> vector<32x64xf32>
    %c16 = arith.constant 16 : index
    %c0_45 = arith.constant 0 : index
    %c0_46 = arith.constant 0 : index
    %230 = vector.load %arg2[%c16, %c0_45, %c0_46] : memref<31x1x64xf32, #tpu.memory_space<vmem>>, vector<1x1x64xf32>
    %231 = vector.shape_cast %230 : vector<1x1x64xf32> to vector<1x64xf32>
    %232 = vector.broadcast %231 : vector<1x64xf32> to vector<32x64xf32>
    %233 = arith.mulf %229, %232 : vector<32x64xf32>
    %234 = vector.extract_strided_slice %23 {offsets = [0, 16], sizes = [32, 1], strides = [1, 1]} : vector<32x63xf32> to vector<32x1xf32>
    %235 = vector.broadcast %234 : vector<32x1xf32> to vector<32x64xf32>
    %236 = arith.mulf %233, %235 : vector<32x64xf32>
    %237 = arith.addf %224, %236 : vector<32x64xf32>
    %238 = vector.extract_strided_slice %23 {offsets = [0, 47], sizes = [32, 1], strides = [1, 1]} : vector<32x63xf32> to vector<32x1xf32>
    %239 = vector.broadcast %238 : vector<32x1xf32> to vector<32x64xf32>
    %240 = arith.mulf %233, %239 : vector<32x64xf32>
    %241 = arith.addf %228, %240 : vector<32x64xf32>
    %c62_i32 = arith.constant 62 : i32
    %242 = tpu.dynamic_rotate %2 by %c62_i32 dim 1 : vector<32x64xf32>, i32 -> vector<32x64xf32>
    %c17 = arith.constant 17 : index
    %c0_47 = arith.constant 0 : index
    %c0_48 = arith.constant 0 : index
    %243 = vector.load %arg2[%c17, %c0_47, %c0_48] : memref<31x1x64xf32, #tpu.memory_space<vmem>>, vector<1x1x64xf32>
    %244 = vector.shape_cast %243 : vector<1x1x64xf32> to vector<1x64xf32>
    %245 = vector.broadcast %244 : vector<1x64xf32> to vector<32x64xf32>
    %246 = arith.mulf %242, %245 : vector<32x64xf32>
    %247 = vector.extract_strided_slice %23 {offsets = [0, 17], sizes = [32, 1], strides = [1, 1]} : vector<32x63xf32> to vector<32x1xf32>
    %248 = vector.broadcast %247 : vector<32x1xf32> to vector<32x64xf32>
    %249 = arith.mulf %246, %248 : vector<32x64xf32>
    %250 = arith.addf %237, %249 : vector<32x64xf32>
    %251 = vector.extract_strided_slice %23 {offsets = [0, 48], sizes = [32, 1], strides = [1, 1]} : vector<32x63xf32> to vector<32x1xf32>
    %252 = vector.broadcast %251 : vector<32x1xf32> to vector<32x64xf32>
    %253 = arith.mulf %246, %252 : vector<32x64xf32>
    %254 = arith.addf %241, %253 : vector<32x64xf32>
    %c61_i32 = arith.constant 61 : i32
    %255 = tpu.dynamic_rotate %2 by %c61_i32 dim 1 : vector<32x64xf32>, i32 -> vector<32x64xf32>
    %c18 = arith.constant 18 : index
    %c0_49 = arith.constant 0 : index
    %c0_50 = arith.constant 0 : index
    %256 = vector.load %arg2[%c18, %c0_49, %c0_50] : memref<31x1x64xf32, #tpu.memory_space<vmem>>, vector<1x1x64xf32>
    %257 = vector.shape_cast %256 : vector<1x1x64xf32> to vector<1x64xf32>
    %258 = vector.broadcast %257 : vector<1x64xf32> to vector<32x64xf32>
    %259 = arith.mulf %255, %258 : vector<32x64xf32>
    %260 = vector.extract_strided_slice %23 {offsets = [0, 18], sizes = [32, 1], strides = [1, 1]} : vector<32x63xf32> to vector<32x1xf32>
    %261 = vector.broadcast %260 : vector<32x1xf32> to vector<32x64xf32>
    %262 = arith.mulf %259, %261 : vector<32x64xf32>
    %263 = arith.addf %250, %262 : vector<32x64xf32>
    %264 = vector.extract_strided_slice %23 {offsets = [0, 49], sizes = [32, 1], strides = [1, 1]} : vector<32x63xf32> to vector<32x1xf32>
    %265 = vector.broadcast %264 : vector<32x1xf32> to vector<32x64xf32>
    %266 = arith.mulf %259, %265 : vector<32x64xf32>
    %267 = arith.addf %254, %266 : vector<32x64xf32>
    %c60_i32 = arith.constant 60 : i32
    %268 = tpu.dynamic_rotate %2 by %c60_i32 dim 1 : vector<32x64xf32>, i32 -> vector<32x64xf32>
    %c19 = arith.constant 19 : index
    %c0_51 = arith.constant 0 : index
    %c0_52 = arith.constant 0 : index
    %269 = vector.load %arg2[%c19, %c0_51, %c0_52] : memref<31x1x64xf32, #tpu.memory_space<vmem>>, vector<1x1x64xf32>
    %270 = vector.shape_cast %269 : vector<1x1x64xf32> to vector<1x64xf32>
    %271 = vector.broadcast %270 : vector<1x64xf32> to vector<32x64xf32>
    %272 = arith.mulf %268, %271 : vector<32x64xf32>
    %273 = vector.extract_strided_slice %23 {offsets = [0, 19], sizes = [32, 1], strides = [1, 1]} : vector<32x63xf32> to vector<32x1xf32>
    %274 = vector.broadcast %273 : vector<32x1xf32> to vector<32x64xf32>
    %275 = arith.mulf %272, %274 : vector<32x64xf32>
    %276 = arith.addf %263, %275 : vector<32x64xf32>
    %277 = vector.extract_strided_slice %23 {offsets = [0, 50], sizes = [32, 1], strides = [1, 1]} : vector<32x63xf32> to vector<32x1xf32>
    %278 = vector.broadcast %277 : vector<32x1xf32> to vector<32x64xf32>
    %279 = arith.mulf %272, %278 : vector<32x64xf32>
    %280 = arith.addf %267, %279 : vector<32x64xf32>
    %c59_i32 = arith.constant 59 : i32
    %281 = tpu.dynamic_rotate %2 by %c59_i32 dim 1 : vector<32x64xf32>, i32 -> vector<32x64xf32>
    %c20 = arith.constant 20 : index
    %c0_53 = arith.constant 0 : index
    %c0_54 = arith.constant 0 : index
    %282 = vector.load %arg2[%c20, %c0_53, %c0_54] : memref<31x1x64xf32, #tpu.memory_space<vmem>>, vector<1x1x64xf32>
    %283 = vector.shape_cast %282 : vector<1x1x64xf32> to vector<1x64xf32>
    %284 = vector.broadcast %283 : vector<1x64xf32> to vector<32x64xf32>
    %285 = arith.mulf %281, %284 : vector<32x64xf32>
    %286 = vector.extract_strided_slice %23 {offsets = [0, 20], sizes = [32, 1], strides = [1, 1]} : vector<32x63xf32> to vector<32x1xf32>
    %287 = vector.broadcast %286 : vector<32x1xf32> to vector<32x64xf32>
    %288 = arith.mulf %285, %287 : vector<32x64xf32>
    %289 = arith.addf %276, %288 : vector<32x64xf32>
    %290 = vector.extract_strided_slice %23 {offsets = [0, 51], sizes = [32, 1], strides = [1, 1]} : vector<32x63xf32> to vector<32x1xf32>
    %291 = vector.broadcast %290 : vector<32x1xf32> to vector<32x64xf32>
    %292 = arith.mulf %285, %291 : vector<32x64xf32>
    %293 = arith.addf %280, %292 : vector<32x64xf32>
    %c58_i32 = arith.constant 58 : i32
    %294 = tpu.dynamic_rotate %2 by %c58_i32 dim 1 : vector<32x64xf32>, i32 -> vector<32x64xf32>
    %c21 = arith.constant 21 : index
    %c0_55 = arith.constant 0 : index
    %c0_56 = arith.constant 0 : index
    %295 = vector.load %arg2[%c21, %c0_55, %c0_56] : memref<31x1x64xf32, #tpu.memory_space<vmem>>, vector<1x1x64xf32>
    %296 = vector.shape_cast %295 : vector<1x1x64xf32> to vector<1x64xf32>
    %297 = vector.broadcast %296 : vector<1x64xf32> to vector<32x64xf32>
    %298 = arith.mulf %294, %297 : vector<32x64xf32>
    %299 = vector.extract_strided_slice %23 {offsets = [0, 21], sizes = [32, 1], strides = [1, 1]} : vector<32x63xf32> to vector<32x1xf32>
    %300 = vector.broadcast %299 : vector<32x1xf32> to vector<32x64xf32>
    %301 = arith.mulf %298, %300 : vector<32x64xf32>
    %302 = arith.addf %289, %301 : vector<32x64xf32>
    %303 = vector.extract_strided_slice %23 {offsets = [0, 52], sizes = [32, 1], strides = [1, 1]} : vector<32x63xf32> to vector<32x1xf32>
    %304 = vector.broadcast %303 : vector<32x1xf32> to vector<32x64xf32>
    %305 = arith.mulf %298, %304 : vector<32x64xf32>
    %306 = arith.addf %293, %305 : vector<32x64xf32>
    %c57_i32 = arith.constant 57 : i32
    %307 = tpu.dynamic_rotate %2 by %c57_i32 dim 1 : vector<32x64xf32>, i32 -> vector<32x64xf32>
    %c22 = arith.constant 22 : index
    %c0_57 = arith.constant 0 : index
    %c0_58 = arith.constant 0 : index
    %308 = vector.load %arg2[%c22, %c0_57, %c0_58] : memref<31x1x64xf32, #tpu.memory_space<vmem>>, vector<1x1x64xf32>
    %309 = vector.shape_cast %308 : vector<1x1x64xf32> to vector<1x64xf32>
    %310 = vector.broadcast %309 : vector<1x64xf32> to vector<32x64xf32>
    %311 = arith.mulf %307, %310 : vector<32x64xf32>
    %312 = vector.extract_strided_slice %23 {offsets = [0, 22], sizes = [32, 1], strides = [1, 1]} : vector<32x63xf32> to vector<32x1xf32>
    %313 = vector.broadcast %312 : vector<32x1xf32> to vector<32x64xf32>
    %314 = arith.mulf %311, %313 : vector<32x64xf32>
    %315 = arith.addf %302, %314 : vector<32x64xf32>
    %316 = vector.extract_strided_slice %23 {offsets = [0, 53], sizes = [32, 1], strides = [1, 1]} : vector<32x63xf32> to vector<32x1xf32>
    %317 = vector.broadcast %316 : vector<32x1xf32> to vector<32x64xf32>
    %318 = arith.mulf %311, %317 : vector<32x64xf32>
    %319 = arith.addf %306, %318 : vector<32x64xf32>
    %c56_i32 = arith.constant 56 : i32
    %320 = tpu.dynamic_rotate %2 by %c56_i32 dim 1 : vector<32x64xf32>, i32 -> vector<32x64xf32>
    %c23 = arith.constant 23 : index
    %c0_59 = arith.constant 0 : index
    %c0_60 = arith.constant 0 : index
    %321 = vector.load %arg2[%c23, %c0_59, %c0_60] : memref<31x1x64xf32, #tpu.memory_space<vmem>>, vector<1x1x64xf32>
    %322 = vector.shape_cast %321 : vector<1x1x64xf32> to vector<1x64xf32>
    %323 = vector.broadcast %322 : vector<1x64xf32> to vector<32x64xf32>
    %324 = arith.mulf %320, %323 : vector<32x64xf32>
    %325 = vector.extract_strided_slice %23 {offsets = [0, 23], sizes = [32, 1], strides = [1, 1]} : vector<32x63xf32> to vector<32x1xf32>
    %326 = vector.broadcast %325 : vector<32x1xf32> to vector<32x64xf32>
    %327 = arith.mulf %324, %326 : vector<32x64xf32>
    %328 = arith.addf %315, %327 : vector<32x64xf32>
    %329 = vector.extract_strided_slice %23 {offsets = [0, 54], sizes = [32, 1], strides = [1, 1]} : vector<32x63xf32> to vector<32x1xf32>
    %330 = vector.broadcast %329 : vector<32x1xf32> to vector<32x64xf32>
    %331 = arith.mulf %324, %330 : vector<32x64xf32>
    %332 = arith.addf %319, %331 : vector<32x64xf32>
    %c55_i32 = arith.constant 55 : i32
    %333 = tpu.dynamic_rotate %2 by %c55_i32 dim 1 : vector<32x64xf32>, i32 -> vector<32x64xf32>
    %c24 = arith.constant 24 : index
    %c0_61 = arith.constant 0 : index
    %c0_62 = arith.constant 0 : index
    %334 = vector.load %arg2[%c24, %c0_61, %c0_62] : memref<31x1x64xf32, #tpu.memory_space<vmem>>, vector<1x1x64xf32>
    %335 = vector.shape_cast %334 : vector<1x1x64xf32> to vector<1x64xf32>
    %336 = vector.broadcast %335 : vector<1x64xf32> to vector<32x64xf32>
    %337 = arith.mulf %333, %336 : vector<32x64xf32>
    %338 = vector.extract_strided_slice %23 {offsets = [0, 24], sizes = [32, 1], strides = [1, 1]} : vector<32x63xf32> to vector<32x1xf32>
    %339 = vector.broadcast %338 : vector<32x1xf32> to vector<32x64xf32>
    %340 = arith.mulf %337, %339 : vector<32x64xf32>
    %341 = arith.addf %328, %340 : vector<32x64xf32>
    %342 = vector.extract_strided_slice %23 {offsets = [0, 55], sizes = [32, 1], strides = [1, 1]} : vector<32x63xf32> to vector<32x1xf32>
    %343 = vector.broadcast %342 : vector<32x1xf32> to vector<32x64xf32>
    %344 = arith.mulf %337, %343 : vector<32x64xf32>
    %345 = arith.addf %332, %344 : vector<32x64xf32>
    %c54_i32 = arith.constant 54 : i32
    %346 = tpu.dynamic_rotate %2 by %c54_i32 dim 1 : vector<32x64xf32>, i32 -> vector<32x64xf32>
    %c25 = arith.constant 25 : index
    %c0_63 = arith.constant 0 : index
    %c0_64 = arith.constant 0 : index
    %347 = vector.load %arg2[%c25, %c0_63, %c0_64] : memref<31x1x64xf32, #tpu.memory_space<vmem>>, vector<1x1x64xf32>
    %348 = vector.shape_cast %347 : vector<1x1x64xf32> to vector<1x64xf32>
    %349 = vector.broadcast %348 : vector<1x64xf32> to vector<32x64xf32>
    %350 = arith.mulf %346, %349 : vector<32x64xf32>
    %351 = vector.extract_strided_slice %23 {offsets = [0, 25], sizes = [32, 1], strides = [1, 1]} : vector<32x63xf32> to vector<32x1xf32>
    %352 = vector.broadcast %351 : vector<32x1xf32> to vector<32x64xf32>
    %353 = arith.mulf %350, %352 : vector<32x64xf32>
    %354 = arith.addf %341, %353 : vector<32x64xf32>
    %355 = vector.extract_strided_slice %23 {offsets = [0, 56], sizes = [32, 1], strides = [1, 1]} : vector<32x63xf32> to vector<32x1xf32>
    %356 = vector.broadcast %355 : vector<32x1xf32> to vector<32x64xf32>
    %357 = arith.mulf %350, %356 : vector<32x64xf32>
    %358 = arith.addf %345, %357 : vector<32x64xf32>
    %c53_i32 = arith.constant 53 : i32
    %359 = tpu.dynamic_rotate %2 by %c53_i32 dim 1 : vector<32x64xf32>, i32 -> vector<32x64xf32>
    %c26 = arith.constant 26 : index
    %c0_65 = arith.constant 0 : index
    %c0_66 = arith.constant 0 : index
    %360 = vector.load %arg2[%c26, %c0_65, %c0_66] : memref<31x1x64xf32, #tpu.memory_space<vmem>>, vector<1x1x64xf32>
    %361 = vector.shape_cast %360 : vector<1x1x64xf32> to vector<1x64xf32>
    %362 = vector.broadcast %361 : vector<1x64xf32> to vector<32x64xf32>
    %363 = arith.mulf %359, %362 : vector<32x64xf32>
    %364 = vector.extract_strided_slice %23 {offsets = [0, 26], sizes = [32, 1], strides = [1, 1]} : vector<32x63xf32> to vector<32x1xf32>
    %365 = vector.broadcast %364 : vector<32x1xf32> to vector<32x64xf32>
    %366 = arith.mulf %363, %365 : vector<32x64xf32>
    %367 = arith.addf %354, %366 : vector<32x64xf32>
    %368 = vector.extract_strided_slice %23 {offsets = [0, 57], sizes = [32, 1], strides = [1, 1]} : vector<32x63xf32> to vector<32x1xf32>
    %369 = vector.broadcast %368 : vector<32x1xf32> to vector<32x64xf32>
    %370 = arith.mulf %363, %369 : vector<32x64xf32>
    %371 = arith.addf %358, %370 : vector<32x64xf32>
    %c52_i32 = arith.constant 52 : i32
    %372 = tpu.dynamic_rotate %2 by %c52_i32 dim 1 : vector<32x64xf32>, i32 -> vector<32x64xf32>
    %c27 = arith.constant 27 : index
    %c0_67 = arith.constant 0 : index
    %c0_68 = arith.constant 0 : index
    %373 = vector.load %arg2[%c27, %c0_67, %c0_68] : memref<31x1x64xf32, #tpu.memory_space<vmem>>, vector<1x1x64xf32>
    %374 = vector.shape_cast %373 : vector<1x1x64xf32> to vector<1x64xf32>
    %375 = vector.broadcast %374 : vector<1x64xf32> to vector<32x64xf32>
    %376 = arith.mulf %372, %375 : vector<32x64xf32>
    %377 = vector.extract_strided_slice %23 {offsets = [0, 27], sizes = [32, 1], strides = [1, 1]} : vector<32x63xf32> to vector<32x1xf32>
    %378 = vector.broadcast %377 : vector<32x1xf32> to vector<32x64xf32>
    %379 = arith.mulf %376, %378 : vector<32x64xf32>
    %380 = arith.addf %367, %379 : vector<32x64xf32>
    %381 = vector.extract_strided_slice %23 {offsets = [0, 58], sizes = [32, 1], strides = [1, 1]} : vector<32x63xf32> to vector<32x1xf32>
    %382 = vector.broadcast %381 : vector<32x1xf32> to vector<32x64xf32>
    %383 = arith.mulf %376, %382 : vector<32x64xf32>
    %384 = arith.addf %371, %383 : vector<32x64xf32>
    %c51_i32 = arith.constant 51 : i32
    %385 = tpu.dynamic_rotate %2 by %c51_i32 dim 1 : vector<32x64xf32>, i32 -> vector<32x64xf32>
    %c28 = arith.constant 28 : index
    %c0_69 = arith.constant 0 : index
    %c0_70 = arith.constant 0 : index
    %386 = vector.load %arg2[%c28, %c0_69, %c0_70] : memref<31x1x64xf32, #tpu.memory_space<vmem>>, vector<1x1x64xf32>
    %387 = vector.shape_cast %386 : vector<1x1x64xf32> to vector<1x64xf32>
    %388 = vector.broadcast %387 : vector<1x64xf32> to vector<32x64xf32>
    %389 = arith.mulf %385, %388 : vector<32x64xf32>
    %390 = vector.extract_strided_slice %23 {offsets = [0, 28], sizes = [32, 1], strides = [1, 1]} : vector<32x63xf32> to vector<32x1xf32>
    %391 = vector.broadcast %390 : vector<32x1xf32> to vector<32x64xf32>
    %392 = arith.mulf %389, %391 : vector<32x64xf32>
    %393 = arith.addf %380, %392 : vector<32x64xf32>
    %394 = vector.extract_strided_slice %23 {offsets = [0, 59], sizes = [32, 1], strides = [1, 1]} : vector<32x63xf32> to vector<32x1xf32>
    %395 = vector.broadcast %394 : vector<32x1xf32> to vector<32x64xf32>
    %396 = arith.mulf %389, %395 : vector<32x64xf32>
    %397 = arith.addf %384, %396 : vector<32x64xf32>
    %c50_i32 = arith.constant 50 : i32
    %398 = tpu.dynamic_rotate %2 by %c50_i32 dim 1 : vector<32x64xf32>, i32 -> vector<32x64xf32>
    %c29 = arith.constant 29 : index
    %c0_71 = arith.constant 0 : index
    %c0_72 = arith.constant 0 : index
    %399 = vector.load %arg2[%c29, %c0_71, %c0_72] : memref<31x1x64xf32, #tpu.memory_space<vmem>>, vector<1x1x64xf32>
    %400 = vector.shape_cast %399 : vector<1x1x64xf32> to vector<1x64xf32>
    %401 = vector.broadcast %400 : vector<1x64xf32> to vector<32x64xf32>
    %402 = arith.mulf %398, %401 : vector<32x64xf32>
    %403 = vector.extract_strided_slice %23 {offsets = [0, 29], sizes = [32, 1], strides = [1, 1]} : vector<32x63xf32> to vector<32x1xf32>
    %404 = vector.broadcast %403 : vector<32x1xf32> to vector<32x64xf32>
    %405 = arith.mulf %402, %404 : vector<32x64xf32>
    %406 = arith.addf %393, %405 : vector<32x64xf32>
    %407 = vector.extract_strided_slice %23 {offsets = [0, 60], sizes = [32, 1], strides = [1, 1]} : vector<32x63xf32> to vector<32x1xf32>
    %408 = vector.broadcast %407 : vector<32x1xf32> to vector<32x64xf32>
    %409 = arith.mulf %402, %408 : vector<32x64xf32>
    %410 = arith.addf %397, %409 : vector<32x64xf32>
    %c49_i32 = arith.constant 49 : i32
    %411 = tpu.dynamic_rotate %2 by %c49_i32 dim 1 : vector<32x64xf32>, i32 -> vector<32x64xf32>
    %c30 = arith.constant 30 : index
    %c0_73 = arith.constant 0 : index
    %c0_74 = arith.constant 0 : index
    %412 = vector.load %arg2[%c30, %c0_73, %c0_74] : memref<31x1x64xf32, #tpu.memory_space<vmem>>, vector<1x1x64xf32>
    %413 = vector.shape_cast %412 : vector<1x1x64xf32> to vector<1x64xf32>
    %414 = vector.broadcast %413 : vector<1x64xf32> to vector<32x64xf32>
    %415 = arith.mulf %411, %414 : vector<32x64xf32>
    %416 = vector.extract_strided_slice %23 {offsets = [0, 30], sizes = [32, 1], strides = [1, 1]} : vector<32x63xf32> to vector<32x1xf32>
    %417 = vector.broadcast %416 : vector<32x1xf32> to vector<32x64xf32>
    %418 = arith.mulf %415, %417 : vector<32x64xf32>
    %419 = arith.addf %406, %418 : vector<32x64xf32>
    %420 = vector.extract_strided_slice %23 {offsets = [0, 61], sizes = [32, 1], strides = [1, 1]} : vector<32x63xf32> to vector<32x1xf32>
    %421 = vector.broadcast %420 : vector<32x1xf32> to vector<32x64xf32>
    %422 = arith.mulf %415, %421 : vector<32x64xf32>
    %423 = arith.addf %410, %422 : vector<32x64xf32>
    %c31_i32 = arith.constant 31 : i32
    %424 = tpu.dynamic_rotate %423 by %c31_i32 dim 0 : vector<32x64xf32>, i32 -> vector<32x64xf32>
    %c1_i32_75 = arith.constant 1 : i32
    %425 = tpu.dynamic_rotate %423 by %c1_i32_75 dim 0 : vector<32x64xf32>, i32 -> vector<32x64xf32>
    %426 = arith.select %21, %424, %425 : vector<32x64xi1>, vector<32x64xf32>
    %427 = arith.addf %419, %426 : vector<32x64xf32>
    %428 = vector.extract_strided_slice %23 {offsets = [0, 62], sizes = [32, 1], strides = [1, 1]} : vector<32x63xf32> to vector<32x1xf32>
    %429 = vector.broadcast %428 : vector<32x1xf32> to vector<32x64xf32>
    %430 = arith.addf %427, %429 : vector<32x64xf32>
    %cst_76 = arith.constant 2.000000e+01 : f32
    %431 = vector.broadcast %cst_76 : f32 to vector<32x64xf32>
    %432 = arith.minimumf %430, %431 : vector<32x64xf32>
    %433 = math.exp %432 : vector<32x64xf32>
    %cst_77 = arith.constant 1.000000e+00 : f32
    %434 = vector.broadcast %cst_77 : f32 to vector<32x64xf32>
    %435 = arith.addf %434, %433 : vector<32x64xf32>
    %cst_78 = arith.constant 1.000000e+00 : f32
    %436 = vector.broadcast %cst_78 : f32 to vector<32x64xf32>
    %437 = arith.addf %436, %433 : vector<32x64xf32>
    %438 = arith.mulf %435, %437 : vector<32x64xf32>
    %cst_79 = arith.constant 1.000000e+00 : f32
    %439 = vector.broadcast %cst_79 : f32 to vector<32x64xf32>
    %440 = arith.addf %438, %439 : vector<32x64xf32>
    %cst_80 = arith.constant 2.000000e+00 : f32
    %441 = vector.broadcast %cst_80 : f32 to vector<32x64xf32>
    %442 = arith.divf %441, %440 : vector<32x64xf32>
    %cst_81 = arith.constant 1.000000e+00 : f32
    %443 = vector.broadcast %cst_81 : f32 to vector<32x64xf32>
    %444 = arith.subf %443, %442 : vector<32x64xf32>
    %445 = arith.mulf %430, %444 : vector<32x64xf32>
    %c1_82 = arith.constant 1 : index
    %c0_83 = arith.constant 0 : index
    %c0_84 = arith.constant 0 : index
    %446 = vector.load %arg3[%c1_82, %c0_83, %c0_84] : memref<2x32x63xf32, #tpu.memory_space<vmem>>, vector<1x32x63xf32>
    %447 = vector.shape_cast %446 : vector<1x32x63xf32> to vector<32x63xf32>
    %cst_85 = arith.constant 0.000000e+00 : f32
    %448 = vector.broadcast %cst_85 : f32 to vector<32x64xf32>
    %cst_86 = arith.constant 0.000000e+00 : f32
    %449 = vector.broadcast %cst_86 : f32 to vector<32x64xf32>
    %c15_i32_87 = arith.constant 15 : i32
    %450 = tpu.dynamic_rotate %445 by %c15_i32_87 dim 1 : vector<32x64xf32>, i32 -> vector<32x64xf32>
    %c0_88 = arith.constant 0 : index
    %c0_89 = arith.constant 0 : index
    %c0_90 = arith.constant 0 : index
    %451 = vector.load %arg2[%c0_88, %c0_89, %c0_90] : memref<31x1x64xf32, #tpu.memory_space<vmem>>, vector<1x1x64xf32>
    %452 = vector.shape_cast %451 : vector<1x1x64xf32> to vector<1x64xf32>
    %453 = vector.broadcast %452 : vector<1x64xf32> to vector<32x64xf32>
    %454 = arith.mulf %450, %453 : vector<32x64xf32>
    %455 = vector.extract_strided_slice %447 {offsets = [0, 0], sizes = [32, 1], strides = [1, 1]} : vector<32x63xf32> to vector<32x1xf32>
    %456 = vector.broadcast %455 : vector<32x1xf32> to vector<32x64xf32>
    %457 = arith.mulf %454, %456 : vector<32x64xf32>
    %458 = arith.addf %448, %457 : vector<32x64xf32>
    %459 = vector.extract_strided_slice %447 {offsets = [0, 31], sizes = [32, 1], strides = [1, 1]} : vector<32x63xf32> to vector<32x1xf32>
    %460 = vector.broadcast %459 : vector<32x1xf32> to vector<32x64xf32>
    %461 = arith.mulf %454, %460 : vector<32x64xf32>
    %462 = arith.addf %449, %461 : vector<32x64xf32>
    %c14_i32_91 = arith.constant 14 : i32
    %463 = tpu.dynamic_rotate %445 by %c14_i32_91 dim 1 : vector<32x64xf32>, i32 -> vector<32x64xf32>
    %c1_92 = arith.constant 1 : index
    %c0_93 = arith.constant 0 : index
    %c0_94 = arith.constant 0 : index
    %464 = vector.load %arg2[%c1_92, %c0_93, %c0_94] : memref<31x1x64xf32, #tpu.memory_space<vmem>>, vector<1x1x64xf32>
    %465 = vector.shape_cast %464 : vector<1x1x64xf32> to vector<1x64xf32>
    %466 = vector.broadcast %465 : vector<1x64xf32> to vector<32x64xf32>
    %467 = arith.mulf %463, %466 : vector<32x64xf32>
    %468 = vector.extract_strided_slice %447 {offsets = [0, 1], sizes = [32, 1], strides = [1, 1]} : vector<32x63xf32> to vector<32x1xf32>
    %469 = vector.broadcast %468 : vector<32x1xf32> to vector<32x64xf32>
    %470 = arith.mulf %467, %469 : vector<32x64xf32>
    %471 = arith.addf %458, %470 : vector<32x64xf32>
    %472 = vector.extract_strided_slice %447 {offsets = [0, 32], sizes = [32, 1], strides = [1, 1]} : vector<32x63xf32> to vector<32x1xf32>
    %473 = vector.broadcast %472 : vector<32x1xf32> to vector<32x64xf32>
    %474 = arith.mulf %467, %473 : vector<32x64xf32>
    %475 = arith.addf %462, %474 : vector<32x64xf32>
    %c13_i32_95 = arith.constant 13 : i32
    %476 = tpu.dynamic_rotate %445 by %c13_i32_95 dim 1 : vector<32x64xf32>, i32 -> vector<32x64xf32>
    %c2_96 = arith.constant 2 : index
    %c0_97 = arith.constant 0 : index
    %c0_98 = arith.constant 0 : index
    %477 = vector.load %arg2[%c2_96, %c0_97, %c0_98] : memref<31x1x64xf32, #tpu.memory_space<vmem>>, vector<1x1x64xf32>
    %478 = vector.shape_cast %477 : vector<1x1x64xf32> to vector<1x64xf32>
    %479 = vector.broadcast %478 : vector<1x64xf32> to vector<32x64xf32>
    %480 = arith.mulf %476, %479 : vector<32x64xf32>
    %481 = vector.extract_strided_slice %447 {offsets = [0, 2], sizes = [32, 1], strides = [1, 1]} : vector<32x63xf32> to vector<32x1xf32>
    %482 = vector.broadcast %481 : vector<32x1xf32> to vector<32x64xf32>
    %483 = arith.mulf %480, %482 : vector<32x64xf32>
    %484 = arith.addf %471, %483 : vector<32x64xf32>
    %485 = vector.extract_strided_slice %447 {offsets = [0, 33], sizes = [32, 1], strides = [1, 1]} : vector<32x63xf32> to vector<32x1xf32>
    %486 = vector.broadcast %485 : vector<32x1xf32> to vector<32x64xf32>
    %487 = arith.mulf %480, %486 : vector<32x64xf32>
    %488 = arith.addf %475, %487 : vector<32x64xf32>
    %c12_i32_99 = arith.constant 12 : i32
    %489 = tpu.dynamic_rotate %445 by %c12_i32_99 dim 1 : vector<32x64xf32>, i32 -> vector<32x64xf32>
    %c3_100 = arith.constant 3 : index
    %c0_101 = arith.constant 0 : index
    %c0_102 = arith.constant 0 : index
    %490 = vector.load %arg2[%c3_100, %c0_101, %c0_102] : memref<31x1x64xf32, #tpu.memory_space<vmem>>, vector<1x1x64xf32>
    %491 = vector.shape_cast %490 : vector<1x1x64xf32> to vector<1x64xf32>
    %492 = vector.broadcast %491 : vector<1x64xf32> to vector<32x64xf32>
    %493 = arith.mulf %489, %492 : vector<32x64xf32>
    %494 = vector.extract_strided_slice %447 {offsets = [0, 3], sizes = [32, 1], strides = [1, 1]} : vector<32x63xf32> to vector<32x1xf32>
    %495 = vector.broadcast %494 : vector<32x1xf32> to vector<32x64xf32>
    %496 = arith.mulf %493, %495 : vector<32x64xf32>
    %497 = arith.addf %484, %496 : vector<32x64xf32>
    %498 = vector.extract_strided_slice %447 {offsets = [0, 34], sizes = [32, 1], strides = [1, 1]} : vector<32x63xf32> to vector<32x1xf32>
    %499 = vector.broadcast %498 : vector<32x1xf32> to vector<32x64xf32>
    %500 = arith.mulf %493, %499 : vector<32x64xf32>
    %501 = arith.addf %488, %500 : vector<32x64xf32>
    %c11_i32_103 = arith.constant 11 : i32
    %502 = tpu.dynamic_rotate %445 by %c11_i32_103 dim 1 : vector<32x64xf32>, i32 -> vector<32x64xf32>
    %c4_104 = arith.constant 4 : index
    %c0_105 = arith.constant 0 : index
    %c0_106 = arith.constant 0 : index
    %503 = vector.load %arg2[%c4_104, %c0_105, %c0_106] : memref<31x1x64xf32, #tpu.memory_space<vmem>>, vector<1x1x64xf32>
    %504 = vector.shape_cast %503 : vector<1x1x64xf32> to vector<1x64xf32>
    %505 = vector.broadcast %504 : vector<1x64xf32> to vector<32x64xf32>
    %506 = arith.mulf %502, %505 : vector<32x64xf32>
    %507 = vector.extract_strided_slice %447 {offsets = [0, 4], sizes = [32, 1], strides = [1, 1]} : vector<32x63xf32> to vector<32x1xf32>
    %508 = vector.broadcast %507 : vector<32x1xf32> to vector<32x64xf32>
    %509 = arith.mulf %506, %508 : vector<32x64xf32>
    %510 = arith.addf %497, %509 : vector<32x64xf32>
    %511 = vector.extract_strided_slice %447 {offsets = [0, 35], sizes = [32, 1], strides = [1, 1]} : vector<32x63xf32> to vector<32x1xf32>
    %512 = vector.broadcast %511 : vector<32x1xf32> to vector<32x64xf32>
    %513 = arith.mulf %506, %512 : vector<32x64xf32>
    %514 = arith.addf %501, %513 : vector<32x64xf32>
    %c10_i32_107 = arith.constant 10 : i32
    %515 = tpu.dynamic_rotate %445 by %c10_i32_107 dim 1 : vector<32x64xf32>, i32 -> vector<32x64xf32>
    %c5_108 = arith.constant 5 : index
    %c0_109 = arith.constant 0 : index
    %c0_110 = arith.constant 0 : index
    %516 = vector.load %arg2[%c5_108, %c0_109, %c0_110] : memref<31x1x64xf32, #tpu.memory_space<vmem>>, vector<1x1x64xf32>
    %517 = vector.shape_cast %516 : vector<1x1x64xf32> to vector<1x64xf32>
    %518 = vector.broadcast %517 : vector<1x64xf32> to vector<32x64xf32>
    %519 = arith.mulf %515, %518 : vector<32x64xf32>
    %520 = vector.extract_strided_slice %447 {offsets = [0, 5], sizes = [32, 1], strides = [1, 1]} : vector<32x63xf32> to vector<32x1xf32>
    %521 = vector.broadcast %520 : vector<32x1xf32> to vector<32x64xf32>
    %522 = arith.mulf %519, %521 : vector<32x64xf32>
    %523 = arith.addf %510, %522 : vector<32x64xf32>
    %524 = vector.extract_strided_slice %447 {offsets = [0, 36], sizes = [32, 1], strides = [1, 1]} : vector<32x63xf32> to vector<32x1xf32>
    %525 = vector.broadcast %524 : vector<32x1xf32> to vector<32x64xf32>
    %526 = arith.mulf %519, %525 : vector<32x64xf32>
    %527 = arith.addf %514, %526 : vector<32x64xf32>
    %c9_i32_111 = arith.constant 9 : i32
    %528 = tpu.dynamic_rotate %445 by %c9_i32_111 dim 1 : vector<32x64xf32>, i32 -> vector<32x64xf32>
    %c6_112 = arith.constant 6 : index
    %c0_113 = arith.constant 0 : index
    %c0_114 = arith.constant 0 : index
    %529 = vector.load %arg2[%c6_112, %c0_113, %c0_114] : memref<31x1x64xf32, #tpu.memory_space<vmem>>, vector<1x1x64xf32>
    %530 = vector.shape_cast %529 : vector<1x1x64xf32> to vector<1x64xf32>
    %531 = vector.broadcast %530 : vector<1x64xf32> to vector<32x64xf32>
    %532 = arith.mulf %528, %531 : vector<32x64xf32>
    %533 = vector.extract_strided_slice %447 {offsets = [0, 6], sizes = [32, 1], strides = [1, 1]} : vector<32x63xf32> to vector<32x1xf32>
    %534 = vector.broadcast %533 : vector<32x1xf32> to vector<32x64xf32>
    %535 = arith.mulf %532, %534 : vector<32x64xf32>
    %536 = arith.addf %523, %535 : vector<32x64xf32>
    %537 = vector.extract_strided_slice %447 {offsets = [0, 37], sizes = [32, 1], strides = [1, 1]} : vector<32x63xf32> to vector<32x1xf32>
    %538 = vector.broadcast %537 : vector<32x1xf32> to vector<32x64xf32>
    %539 = arith.mulf %532, %538 : vector<32x64xf32>
    %540 = arith.addf %527, %539 : vector<32x64xf32>
    %c8_i32_115 = arith.constant 8 : i32
    %541 = tpu.dynamic_rotate %445 by %c8_i32_115 dim 1 : vector<32x64xf32>, i32 -> vector<32x64xf32>
    %c7_116 = arith.constant 7 : index
    %c0_117 = arith.constant 0 : index
    %c0_118 = arith.constant 0 : index
    %542 = vector.load %arg2[%c7_116, %c0_117, %c0_118] : memref<31x1x64xf32, #tpu.memory_space<vmem>>, vector<1x1x64xf32>
    %543 = vector.shape_cast %542 : vector<1x1x64xf32> to vector<1x64xf32>
    %544 = vector.broadcast %543 : vector<1x64xf32> to vector<32x64xf32>
    %545 = arith.mulf %541, %544 : vector<32x64xf32>
    %546 = vector.extract_strided_slice %447 {offsets = [0, 7], sizes = [32, 1], strides = [1, 1]} : vector<32x63xf32> to vector<32x1xf32>
    %547 = vector.broadcast %546 : vector<32x1xf32> to vector<32x64xf32>
    %548 = arith.mulf %545, %547 : vector<32x64xf32>
    %549 = arith.addf %536, %548 : vector<32x64xf32>
    %550 = vector.extract_strided_slice %447 {offsets = [0, 38], sizes = [32, 1], strides = [1, 1]} : vector<32x63xf32> to vector<32x1xf32>
    %551 = vector.broadcast %550 : vector<32x1xf32> to vector<32x64xf32>
    %552 = arith.mulf %545, %551 : vector<32x64xf32>
    %553 = arith.addf %540, %552 : vector<32x64xf32>
    %c7_i32_119 = arith.constant 7 : i32
    %554 = tpu.dynamic_rotate %445 by %c7_i32_119 dim 1 : vector<32x64xf32>, i32 -> vector<32x64xf32>
    %c8_120 = arith.constant 8 : index
    %c0_121 = arith.constant 0 : index
    %c0_122 = arith.constant 0 : index
    %555 = vector.load %arg2[%c8_120, %c0_121, %c0_122] : memref<31x1x64xf32, #tpu.memory_space<vmem>>, vector<1x1x64xf32>
    %556 = vector.shape_cast %555 : vector<1x1x64xf32> to vector<1x64xf32>
    %557 = vector.broadcast %556 : vector<1x64xf32> to vector<32x64xf32>
    %558 = arith.mulf %554, %557 : vector<32x64xf32>
    %559 = vector.extract_strided_slice %447 {offsets = [0, 8], sizes = [32, 1], strides = [1, 1]} : vector<32x63xf32> to vector<32x1xf32>
    %560 = vector.broadcast %559 : vector<32x1xf32> to vector<32x64xf32>
    %561 = arith.mulf %558, %560 : vector<32x64xf32>
    %562 = arith.addf %549, %561 : vector<32x64xf32>
    %563 = vector.extract_strided_slice %447 {offsets = [0, 39], sizes = [32, 1], strides = [1, 1]} : vector<32x63xf32> to vector<32x1xf32>
    %564 = vector.broadcast %563 : vector<32x1xf32> to vector<32x64xf32>
    %565 = arith.mulf %558, %564 : vector<32x64xf32>
    %566 = arith.addf %553, %565 : vector<32x64xf32>
    %c6_i32_123 = arith.constant 6 : i32
    %567 = tpu.dynamic_rotate %445 by %c6_i32_123 dim 1 : vector<32x64xf32>, i32 -> vector<32x64xf32>
    %c9_124 = arith.constant 9 : index
    %c0_125 = arith.constant 0 : index
    %c0_126 = arith.constant 0 : index
    %568 = vector.load %arg2[%c9_124, %c0_125, %c0_126] : memref<31x1x64xf32, #tpu.memory_space<vmem>>, vector<1x1x64xf32>
    %569 = vector.shape_cast %568 : vector<1x1x64xf32> to vector<1x64xf32>
    %570 = vector.broadcast %569 : vector<1x64xf32> to vector<32x64xf32>
    %571 = arith.mulf %567, %570 : vector<32x64xf32>
    %572 = vector.extract_strided_slice %447 {offsets = [0, 9], sizes = [32, 1], strides = [1, 1]} : vector<32x63xf32> to vector<32x1xf32>
    %573 = vector.broadcast %572 : vector<32x1xf32> to vector<32x64xf32>
    %574 = arith.mulf %571, %573 : vector<32x64xf32>
    %575 = arith.addf %562, %574 : vector<32x64xf32>
    %576 = vector.extract_strided_slice %447 {offsets = [0, 40], sizes = [32, 1], strides = [1, 1]} : vector<32x63xf32> to vector<32x1xf32>
    %577 = vector.broadcast %576 : vector<32x1xf32> to vector<32x64xf32>
    %578 = arith.mulf %571, %577 : vector<32x64xf32>
    %579 = arith.addf %566, %578 : vector<32x64xf32>
    %c5_i32_127 = arith.constant 5 : i32
    %580 = tpu.dynamic_rotate %445 by %c5_i32_127 dim 1 : vector<32x64xf32>, i32 -> vector<32x64xf32>
    %c10_128 = arith.constant 10 : index
    %c0_129 = arith.constant 0 : index
    %c0_130 = arith.constant 0 : index
    %581 = vector.load %arg2[%c10_128, %c0_129, %c0_130] : memref<31x1x64xf32, #tpu.memory_space<vmem>>, vector<1x1x64xf32>
    %582 = vector.shape_cast %581 : vector<1x1x64xf32> to vector<1x64xf32>
    %583 = vector.broadcast %582 : vector<1x64xf32> to vector<32x64xf32>
    %584 = arith.mulf %580, %583 : vector<32x64xf32>
    %585 = vector.extract_strided_slice %447 {offsets = [0, 10], sizes = [32, 1], strides = [1, 1]} : vector<32x63xf32> to vector<32x1xf32>
    %586 = vector.broadcast %585 : vector<32x1xf32> to vector<32x64xf32>
    %587 = arith.mulf %584, %586 : vector<32x64xf32>
    %588 = arith.addf %575, %587 : vector<32x64xf32>
    %589 = vector.extract_strided_slice %447 {offsets = [0, 41], sizes = [32, 1], strides = [1, 1]} : vector<32x63xf32> to vector<32x1xf32>
    %590 = vector.broadcast %589 : vector<32x1xf32> to vector<32x64xf32>
    %591 = arith.mulf %584, %590 : vector<32x64xf32>
    %592 = arith.addf %579, %591 : vector<32x64xf32>
    %c4_i32_131 = arith.constant 4 : i32
    %593 = tpu.dynamic_rotate %445 by %c4_i32_131 dim 1 : vector<32x64xf32>, i32 -> vector<32x64xf32>
    %c11_132 = arith.constant 11 : index
    %c0_133 = arith.constant 0 : index
    %c0_134 = arith.constant 0 : index
    %594 = vector.load %arg2[%c11_132, %c0_133, %c0_134] : memref<31x1x64xf32, #tpu.memory_space<vmem>>, vector<1x1x64xf32>
    %595 = vector.shape_cast %594 : vector<1x1x64xf32> to vector<1x64xf32>
    %596 = vector.broadcast %595 : vector<1x64xf32> to vector<32x64xf32>
    %597 = arith.mulf %593, %596 : vector<32x64xf32>
    %598 = vector.extract_strided_slice %447 {offsets = [0, 11], sizes = [32, 1], strides = [1, 1]} : vector<32x63xf32> to vector<32x1xf32>
    %599 = vector.broadcast %598 : vector<32x1xf32> to vector<32x64xf32>
    %600 = arith.mulf %597, %599 : vector<32x64xf32>
    %601 = arith.addf %588, %600 : vector<32x64xf32>
    %602 = vector.extract_strided_slice %447 {offsets = [0, 42], sizes = [32, 1], strides = [1, 1]} : vector<32x63xf32> to vector<32x1xf32>
    %603 = vector.broadcast %602 : vector<32x1xf32> to vector<32x64xf32>
    %604 = arith.mulf %597, %603 : vector<32x64xf32>
    %605 = arith.addf %592, %604 : vector<32x64xf32>
    %c3_i32_135 = arith.constant 3 : i32
    %606 = tpu.dynamic_rotate %445 by %c3_i32_135 dim 1 : vector<32x64xf32>, i32 -> vector<32x64xf32>
    %c12_136 = arith.constant 12 : index
    %c0_137 = arith.constant 0 : index
    %c0_138 = arith.constant 0 : index
    %607 = vector.load %arg2[%c12_136, %c0_137, %c0_138] : memref<31x1x64xf32, #tpu.memory_space<vmem>>, vector<1x1x64xf32>
    %608 = vector.shape_cast %607 : vector<1x1x64xf32> to vector<1x64xf32>
    %609 = vector.broadcast %608 : vector<1x64xf32> to vector<32x64xf32>
    %610 = arith.mulf %606, %609 : vector<32x64xf32>
    %611 = vector.extract_strided_slice %447 {offsets = [0, 12], sizes = [32, 1], strides = [1, 1]} : vector<32x63xf32> to vector<32x1xf32>
    %612 = vector.broadcast %611 : vector<32x1xf32> to vector<32x64xf32>
    %613 = arith.mulf %610, %612 : vector<32x64xf32>
    %614 = arith.addf %601, %613 : vector<32x64xf32>
    %615 = vector.extract_strided_slice %447 {offsets = [0, 43], sizes = [32, 1], strides = [1, 1]} : vector<32x63xf32> to vector<32x1xf32>
    %616 = vector.broadcast %615 : vector<32x1xf32> to vector<32x64xf32>
    %617 = arith.mulf %610, %616 : vector<32x64xf32>
    %618 = arith.addf %605, %617 : vector<32x64xf32>
    %c2_i32_139 = arith.constant 2 : i32
    %619 = tpu.dynamic_rotate %445 by %c2_i32_139 dim 1 : vector<32x64xf32>, i32 -> vector<32x64xf32>
    %c13_140 = arith.constant 13 : index
    %c0_141 = arith.constant 0 : index
    %c0_142 = arith.constant 0 : index
    %620 = vector.load %arg2[%c13_140, %c0_141, %c0_142] : memref<31x1x64xf32, #tpu.memory_space<vmem>>, vector<1x1x64xf32>
    %621 = vector.shape_cast %620 : vector<1x1x64xf32> to vector<1x64xf32>
    %622 = vector.broadcast %621 : vector<1x64xf32> to vector<32x64xf32>
    %623 = arith.mulf %619, %622 : vector<32x64xf32>
    %624 = vector.extract_strided_slice %447 {offsets = [0, 13], sizes = [32, 1], strides = [1, 1]} : vector<32x63xf32> to vector<32x1xf32>
    %625 = vector.broadcast %624 : vector<32x1xf32> to vector<32x64xf32>
    %626 = arith.mulf %623, %625 : vector<32x64xf32>
    %627 = arith.addf %614, %626 : vector<32x64xf32>
    %628 = vector.extract_strided_slice %447 {offsets = [0, 44], sizes = [32, 1], strides = [1, 1]} : vector<32x63xf32> to vector<32x1xf32>
    %629 = vector.broadcast %628 : vector<32x1xf32> to vector<32x64xf32>
    %630 = arith.mulf %623, %629 : vector<32x64xf32>
    %631 = arith.addf %618, %630 : vector<32x64xf32>
    %c1_i32_143 = arith.constant 1 : i32
    %632 = tpu.dynamic_rotate %445 by %c1_i32_143 dim 1 : vector<32x64xf32>, i32 -> vector<32x64xf32>
    %c14_144 = arith.constant 14 : index
    %c0_145 = arith.constant 0 : index
    %c0_146 = arith.constant 0 : index
    %633 = vector.load %arg2[%c14_144, %c0_145, %c0_146] : memref<31x1x64xf32, #tpu.memory_space<vmem>>, vector<1x1x64xf32>
    %634 = vector.shape_cast %633 : vector<1x1x64xf32> to vector<1x64xf32>
    %635 = vector.broadcast %634 : vector<1x64xf32> to vector<32x64xf32>
    %636 = arith.mulf %632, %635 : vector<32x64xf32>
    %637 = vector.extract_strided_slice %447 {offsets = [0, 14], sizes = [32, 1], strides = [1, 1]} : vector<32x63xf32> to vector<32x1xf32>
    %638 = vector.broadcast %637 : vector<32x1xf32> to vector<32x64xf32>
    %639 = arith.mulf %636, %638 : vector<32x64xf32>
    %640 = arith.addf %627, %639 : vector<32x64xf32>
    %641 = vector.extract_strided_slice %447 {offsets = [0, 45], sizes = [32, 1], strides = [1, 1]} : vector<32x63xf32> to vector<32x1xf32>
    %642 = vector.broadcast %641 : vector<32x1xf32> to vector<32x64xf32>
    %643 = arith.mulf %636, %642 : vector<32x64xf32>
    %644 = arith.addf %631, %643 : vector<32x64xf32>
    %645 = vector.extract_strided_slice %447 {offsets = [0, 15], sizes = [32, 1], strides = [1, 1]} : vector<32x63xf32> to vector<32x1xf32>
    %646 = vector.broadcast %645 : vector<32x1xf32> to vector<32x64xf32>
    %647 = arith.mulf %445, %646 : vector<32x64xf32>
    %648 = arith.addf %640, %647 : vector<32x64xf32>
    %649 = vector.extract_strided_slice %447 {offsets = [0, 46], sizes = [32, 1], strides = [1, 1]} : vector<32x63xf32> to vector<32x1xf32>
    %650 = vector.broadcast %649 : vector<32x1xf32> to vector<32x64xf32>
    %651 = arith.mulf %445, %650 : vector<32x64xf32>
    %652 = arith.addf %644, %651 : vector<32x64xf32>
    %c63_i32_147 = arith.constant 63 : i32
    %653 = tpu.dynamic_rotate %445 by %c63_i32_147 dim 1 : vector<32x64xf32>, i32 -> vector<32x64xf32>
    %c16_148 = arith.constant 16 : index
    %c0_149 = arith.constant 0 : index
    %c0_150 = arith.constant 0 : index
    %654 = vector.load %arg2[%c16_148, %c0_149, %c0_150] : memref<31x1x64xf32, #tpu.memory_space<vmem>>, vector<1x1x64xf32>
    %655 = vector.shape_cast %654 : vector<1x1x64xf32> to vector<1x64xf32>
    %656 = vector.broadcast %655 : vector<1x64xf32> to vector<32x64xf32>
    %657 = arith.mulf %653, %656 : vector<32x64xf32>
    %658 = vector.extract_strided_slice %447 {offsets = [0, 16], sizes = [32, 1], strides = [1, 1]} : vector<32x63xf32> to vector<32x1xf32>
    %659 = vector.broadcast %658 : vector<32x1xf32> to vector<32x64xf32>
    %660 = arith.mulf %657, %659 : vector<32x64xf32>
    %661 = arith.addf %648, %660 : vector<32x64xf32>
    %662 = vector.extract_strided_slice %447 {offsets = [0, 47], sizes = [32, 1], strides = [1, 1]} : vector<32x63xf32> to vector<32x1xf32>
    %663 = vector.broadcast %662 : vector<32x1xf32> to vector<32x64xf32>
    %664 = arith.mulf %657, %663 : vector<32x64xf32>
    %665 = arith.addf %652, %664 : vector<32x64xf32>
    %c62_i32_151 = arith.constant 62 : i32
    %666 = tpu.dynamic_rotate %445 by %c62_i32_151 dim 1 : vector<32x64xf32>, i32 -> vector<32x64xf32>
    %c17_152 = arith.constant 17 : index
    %c0_153 = arith.constant 0 : index
    %c0_154 = arith.constant 0 : index
    %667 = vector.load %arg2[%c17_152, %c0_153, %c0_154] : memref<31x1x64xf32, #tpu.memory_space<vmem>>, vector<1x1x64xf32>
    %668 = vector.shape_cast %667 : vector<1x1x64xf32> to vector<1x64xf32>
    %669 = vector.broadcast %668 : vector<1x64xf32> to vector<32x64xf32>
    %670 = arith.mulf %666, %669 : vector<32x64xf32>
    %671 = vector.extract_strided_slice %447 {offsets = [0, 17], sizes = [32, 1], strides = [1, 1]} : vector<32x63xf32> to vector<32x1xf32>
    %672 = vector.broadcast %671 : vector<32x1xf32> to vector<32x64xf32>
    %673 = arith.mulf %670, %672 : vector<32x64xf32>
    %674 = arith.addf %661, %673 : vector<32x64xf32>
    %675 = vector.extract_strided_slice %447 {offsets = [0, 48], sizes = [32, 1], strides = [1, 1]} : vector<32x63xf32> to vector<32x1xf32>
    %676 = vector.broadcast %675 : vector<32x1xf32> to vector<32x64xf32>
    %677 = arith.mulf %670, %676 : vector<32x64xf32>
    %678 = arith.addf %665, %677 : vector<32x64xf32>
    %c61_i32_155 = arith.constant 61 : i32
    %679 = tpu.dynamic_rotate %445 by %c61_i32_155 dim 1 : vector<32x64xf32>, i32 -> vector<32x64xf32>
    %c18_156 = arith.constant 18 : index
    %c0_157 = arith.constant 0 : index
    %c0_158 = arith.constant 0 : index
    %680 = vector.load %arg2[%c18_156, %c0_157, %c0_158] : memref<31x1x64xf32, #tpu.memory_space<vmem>>, vector<1x1x64xf32>
    %681 = vector.shape_cast %680 : vector<1x1x64xf32> to vector<1x64xf32>
    %682 = vector.broadcast %681 : vector<1x64xf32> to vector<32x64xf32>
    %683 = arith.mulf %679, %682 : vector<32x64xf32>
    %684 = vector.extract_strided_slice %447 {offsets = [0, 18], sizes = [32, 1], strides = [1, 1]} : vector<32x63xf32> to vector<32x1xf32>
    %685 = vector.broadcast %684 : vector<32x1xf32> to vector<32x64xf32>
    %686 = arith.mulf %683, %685 : vector<32x64xf32>
    %687 = arith.addf %674, %686 : vector<32x64xf32>
    %688 = vector.extract_strided_slice %447 {offsets = [0, 49], sizes = [32, 1], strides = [1, 1]} : vector<32x63xf32> to vector<32x1xf32>
    %689 = vector.broadcast %688 : vector<32x1xf32> to vector<32x64xf32>
    %690 = arith.mulf %683, %689 : vector<32x64xf32>
    %691 = arith.addf %678, %690 : vector<32x64xf32>
    %c60_i32_159 = arith.constant 60 : i32
    %692 = tpu.dynamic_rotate %445 by %c60_i32_159 dim 1 : vector<32x64xf32>, i32 -> vector<32x64xf32>
    %c19_160 = arith.constant 19 : index
    %c0_161 = arith.constant 0 : index
    %c0_162 = arith.constant 0 : index
    %693 = vector.load %arg2[%c19_160, %c0_161, %c0_162] : memref<31x1x64xf32, #tpu.memory_space<vmem>>, vector<1x1x64xf32>
    %694 = vector.shape_cast %693 : vector<1x1x64xf32> to vector<1x64xf32>
    %695 = vector.broadcast %694 : vector<1x64xf32> to vector<32x64xf32>
    %696 = arith.mulf %692, %695 : vector<32x64xf32>
    %697 = vector.extract_strided_slice %447 {offsets = [0, 19], sizes = [32, 1], strides = [1, 1]} : vector<32x63xf32> to vector<32x1xf32>
    %698 = vector.broadcast %697 : vector<32x1xf32> to vector<32x64xf32>
    %699 = arith.mulf %696, %698 : vector<32x64xf32>
    %700 = arith.addf %687, %699 : vector<32x64xf32>
    %701 = vector.extract_strided_slice %447 {offsets = [0, 50], sizes = [32, 1], strides = [1, 1]} : vector<32x63xf32> to vector<32x1xf32>
    %702 = vector.broadcast %701 : vector<32x1xf32> to vector<32x64xf32>
    %703 = arith.mulf %696, %702 : vector<32x64xf32>
    %704 = arith.addf %691, %703 : vector<32x64xf32>
    %c59_i32_163 = arith.constant 59 : i32
    %705 = tpu.dynamic_rotate %445 by %c59_i32_163 dim 1 : vector<32x64xf32>, i32 -> vector<32x64xf32>
    %c20_164 = arith.constant 20 : index
    %c0_165 = arith.constant 0 : index
    %c0_166 = arith.constant 0 : index
    %706 = vector.load %arg2[%c20_164, %c0_165, %c0_166] : memref<31x1x64xf32, #tpu.memory_space<vmem>>, vector<1x1x64xf32>
    %707 = vector.shape_cast %706 : vector<1x1x64xf32> to vector<1x64xf32>
    %708 = vector.broadcast %707 : vector<1x64xf32> to vector<32x64xf32>
    %709 = arith.mulf %705, %708 : vector<32x64xf32>
    %710 = vector.extract_strided_slice %447 {offsets = [0, 20], sizes = [32, 1], strides = [1, 1]} : vector<32x63xf32> to vector<32x1xf32>
    %711 = vector.broadcast %710 : vector<32x1xf32> to vector<32x64xf32>
    %712 = arith.mulf %709, %711 : vector<32x64xf32>
    %713 = arith.addf %700, %712 : vector<32x64xf32>
    %714 = vector.extract_strided_slice %447 {offsets = [0, 51], sizes = [32, 1], strides = [1, 1]} : vector<32x63xf32> to vector<32x1xf32>
    %715 = vector.broadcast %714 : vector<32x1xf32> to vector<32x64xf32>
    %716 = arith.mulf %709, %715 : vector<32x64xf32>
    %717 = arith.addf %704, %716 : vector<32x64xf32>
    %c58_i32_167 = arith.constant 58 : i32
    %718 = tpu.dynamic_rotate %445 by %c58_i32_167 dim 1 : vector<32x64xf32>, i32 -> vector<32x64xf32>
    %c21_168 = arith.constant 21 : index
    %c0_169 = arith.constant 0 : index
    %c0_170 = arith.constant 0 : index
    %719 = vector.load %arg2[%c21_168, %c0_169, %c0_170] : memref<31x1x64xf32, #tpu.memory_space<vmem>>, vector<1x1x64xf32>
    %720 = vector.shape_cast %719 : vector<1x1x64xf32> to vector<1x64xf32>
    %721 = vector.broadcast %720 : vector<1x64xf32> to vector<32x64xf32>
    %722 = arith.mulf %718, %721 : vector<32x64xf32>
    %723 = vector.extract_strided_slice %447 {offsets = [0, 21], sizes = [32, 1], strides = [1, 1]} : vector<32x63xf32> to vector<32x1xf32>
    %724 = vector.broadcast %723 : vector<32x1xf32> to vector<32x64xf32>
    %725 = arith.mulf %722, %724 : vector<32x64xf32>
    %726 = arith.addf %713, %725 : vector<32x64xf32>
    %727 = vector.extract_strided_slice %447 {offsets = [0, 52], sizes = [32, 1], strides = [1, 1]} : vector<32x63xf32> to vector<32x1xf32>
    %728 = vector.broadcast %727 : vector<32x1xf32> to vector<32x64xf32>
    %729 = arith.mulf %722, %728 : vector<32x64xf32>
    %730 = arith.addf %717, %729 : vector<32x64xf32>
    %c57_i32_171 = arith.constant 57 : i32
    %731 = tpu.dynamic_rotate %445 by %c57_i32_171 dim 1 : vector<32x64xf32>, i32 -> vector<32x64xf32>
    %c22_172 = arith.constant 22 : index
    %c0_173 = arith.constant 0 : index
    %c0_174 = arith.constant 0 : index
    %732 = vector.load %arg2[%c22_172, %c0_173, %c0_174] : memref<31x1x64xf32, #tpu.memory_space<vmem>>, vector<1x1x64xf32>
    %733 = vector.shape_cast %732 : vector<1x1x64xf32> to vector<1x64xf32>
    %734 = vector.broadcast %733 : vector<1x64xf32> to vector<32x64xf32>
    %735 = arith.mulf %731, %734 : vector<32x64xf32>
    %736 = vector.extract_strided_slice %447 {offsets = [0, 22], sizes = [32, 1], strides = [1, 1]} : vector<32x63xf32> to vector<32x1xf32>
    %737 = vector.broadcast %736 : vector<32x1xf32> to vector<32x64xf32>
    %738 = arith.mulf %735, %737 : vector<32x64xf32>
    %739 = arith.addf %726, %738 : vector<32x64xf32>
    %740 = vector.extract_strided_slice %447 {offsets = [0, 53], sizes = [32, 1], strides = [1, 1]} : vector<32x63xf32> to vector<32x1xf32>
    %741 = vector.broadcast %740 : vector<32x1xf32> to vector<32x64xf32>
    %742 = arith.mulf %735, %741 : vector<32x64xf32>
    %743 = arith.addf %730, %742 : vector<32x64xf32>
    %c56_i32_175 = arith.constant 56 : i32
    %744 = tpu.dynamic_rotate %445 by %c56_i32_175 dim 1 : vector<32x64xf32>, i32 -> vector<32x64xf32>
    %c23_176 = arith.constant 23 : index
    %c0_177 = arith.constant 0 : index
    %c0_178 = arith.constant 0 : index
    %745 = vector.load %arg2[%c23_176, %c0_177, %c0_178] : memref<31x1x64xf32, #tpu.memory_space<vmem>>, vector<1x1x64xf32>
    %746 = vector.shape_cast %745 : vector<1x1x64xf32> to vector<1x64xf32>
    %747 = vector.broadcast %746 : vector<1x64xf32> to vector<32x64xf32>
    %748 = arith.mulf %744, %747 : vector<32x64xf32>
    %749 = vector.extract_strided_slice %447 {offsets = [0, 23], sizes = [32, 1], strides = [1, 1]} : vector<32x63xf32> to vector<32x1xf32>
    %750 = vector.broadcast %749 : vector<32x1xf32> to vector<32x64xf32>
    %751 = arith.mulf %748, %750 : vector<32x64xf32>
    %752 = arith.addf %739, %751 : vector<32x64xf32>
    %753 = vector.extract_strided_slice %447 {offsets = [0, 54], sizes = [32, 1], strides = [1, 1]} : vector<32x63xf32> to vector<32x1xf32>
    %754 = vector.broadcast %753 : vector<32x1xf32> to vector<32x64xf32>
    %755 = arith.mulf %748, %754 : vector<32x64xf32>
    %756 = arith.addf %743, %755 : vector<32x64xf32>
    %c55_i32_179 = arith.constant 55 : i32
    %757 = tpu.dynamic_rotate %445 by %c55_i32_179 dim 1 : vector<32x64xf32>, i32 -> vector<32x64xf32>
    %c24_180 = arith.constant 24 : index
    %c0_181 = arith.constant 0 : index
    %c0_182 = arith.constant 0 : index
    %758 = vector.load %arg2[%c24_180, %c0_181, %c0_182] : memref<31x1x64xf32, #tpu.memory_space<vmem>>, vector<1x1x64xf32>
    %759 = vector.shape_cast %758 : vector<1x1x64xf32> to vector<1x64xf32>
    %760 = vector.broadcast %759 : vector<1x64xf32> to vector<32x64xf32>
    %761 = arith.mulf %757, %760 : vector<32x64xf32>
    %762 = vector.extract_strided_slice %447 {offsets = [0, 24], sizes = [32, 1], strides = [1, 1]} : vector<32x63xf32> to vector<32x1xf32>
    %763 = vector.broadcast %762 : vector<32x1xf32> to vector<32x64xf32>
    %764 = arith.mulf %761, %763 : vector<32x64xf32>
    %765 = arith.addf %752, %764 : vector<32x64xf32>
    %766 = vector.extract_strided_slice %447 {offsets = [0, 55], sizes = [32, 1], strides = [1, 1]} : vector<32x63xf32> to vector<32x1xf32>
    %767 = vector.broadcast %766 : vector<32x1xf32> to vector<32x64xf32>
    %768 = arith.mulf %761, %767 : vector<32x64xf32>
    %769 = arith.addf %756, %768 : vector<32x64xf32>
    %c54_i32_183 = arith.constant 54 : i32
    %770 = tpu.dynamic_rotate %445 by %c54_i32_183 dim 1 : vector<32x64xf32>, i32 -> vector<32x64xf32>
    %c25_184 = arith.constant 25 : index
    %c0_185 = arith.constant 0 : index
    %c0_186 = arith.constant 0 : index
    %771 = vector.load %arg2[%c25_184, %c0_185, %c0_186] : memref<31x1x64xf32, #tpu.memory_space<vmem>>, vector<1x1x64xf32>
    %772 = vector.shape_cast %771 : vector<1x1x64xf32> to vector<1x64xf32>
    %773 = vector.broadcast %772 : vector<1x64xf32> to vector<32x64xf32>
    %774 = arith.mulf %770, %773 : vector<32x64xf32>
    %775 = vector.extract_strided_slice %447 {offsets = [0, 25], sizes = [32, 1], strides = [1, 1]} : vector<32x63xf32> to vector<32x1xf32>
    %776 = vector.broadcast %775 : vector<32x1xf32> to vector<32x64xf32>
    %777 = arith.mulf %774, %776 : vector<32x64xf32>
    %778 = arith.addf %765, %777 : vector<32x64xf32>
    %779 = vector.extract_strided_slice %447 {offsets = [0, 56], sizes = [32, 1], strides = [1, 1]} : vector<32x63xf32> to vector<32x1xf32>
    %780 = vector.broadcast %779 : vector<32x1xf32> to vector<32x64xf32>
    %781 = arith.mulf %774, %780 : vector<32x64xf32>
    %782 = arith.addf %769, %781 : vector<32x64xf32>
    %c53_i32_187 = arith.constant 53 : i32
    %783 = tpu.dynamic_rotate %445 by %c53_i32_187 dim 1 : vector<32x64xf32>, i32 -> vector<32x64xf32>
    %c26_188 = arith.constant 26 : index
    %c0_189 = arith.constant 0 : index
    %c0_190 = arith.constant 0 : index
    %784 = vector.load %arg2[%c26_188, %c0_189, %c0_190] : memref<31x1x64xf32, #tpu.memory_space<vmem>>, vector<1x1x64xf32>
    %785 = vector.shape_cast %784 : vector<1x1x64xf32> to vector<1x64xf32>
    %786 = vector.broadcast %785 : vector<1x64xf32> to vector<32x64xf32>
    %787 = arith.mulf %783, %786 : vector<32x64xf32>
    %788 = vector.extract_strided_slice %447 {offsets = [0, 26], sizes = [32, 1], strides = [1, 1]} : vector<32x63xf32> to vector<32x1xf32>
    %789 = vector.broadcast %788 : vector<32x1xf32> to vector<32x64xf32>
    %790 = arith.mulf %787, %789 : vector<32x64xf32>
    %791 = arith.addf %778, %790 : vector<32x64xf32>
    %792 = vector.extract_strided_slice %447 {offsets = [0, 57], sizes = [32, 1], strides = [1, 1]} : vector<32x63xf32> to vector<32x1xf32>
    %793 = vector.broadcast %792 : vector<32x1xf32> to vector<32x64xf32>
    %794 = arith.mulf %787, %793 : vector<32x64xf32>
    %795 = arith.addf %782, %794 : vector<32x64xf32>
    %c52_i32_191 = arith.constant 52 : i32
    %796 = tpu.dynamic_rotate %445 by %c52_i32_191 dim 1 : vector<32x64xf32>, i32 -> vector<32x64xf32>
    %c27_192 = arith.constant 27 : index
    %c0_193 = arith.constant 0 : index
    %c0_194 = arith.constant 0 : index
    %797 = vector.load %arg2[%c27_192, %c0_193, %c0_194] : memref<31x1x64xf32, #tpu.memory_space<vmem>>, vector<1x1x64xf32>
    %798 = vector.shape_cast %797 : vector<1x1x64xf32> to vector<1x64xf32>
    %799 = vector.broadcast %798 : vector<1x64xf32> to vector<32x64xf32>
    %800 = arith.mulf %796, %799 : vector<32x64xf32>
    %801 = vector.extract_strided_slice %447 {offsets = [0, 27], sizes = [32, 1], strides = [1, 1]} : vector<32x63xf32> to vector<32x1xf32>
    %802 = vector.broadcast %801 : vector<32x1xf32> to vector<32x64xf32>
    %803 = arith.mulf %800, %802 : vector<32x64xf32>
    %804 = arith.addf %791, %803 : vector<32x64xf32>
    %805 = vector.extract_strided_slice %447 {offsets = [0, 58], sizes = [32, 1], strides = [1, 1]} : vector<32x63xf32> to vector<32x1xf32>
    %806 = vector.broadcast %805 : vector<32x1xf32> to vector<32x64xf32>
    %807 = arith.mulf %800, %806 : vector<32x64xf32>
    %808 = arith.addf %795, %807 : vector<32x64xf32>
    %c51_i32_195 = arith.constant 51 : i32
    %809 = tpu.dynamic_rotate %445 by %c51_i32_195 dim 1 : vector<32x64xf32>, i32 -> vector<32x64xf32>
    %c28_196 = arith.constant 28 : index
    %c0_197 = arith.constant 0 : index
    %c0_198 = arith.constant 0 : index
    %810 = vector.load %arg2[%c28_196, %c0_197, %c0_198] : memref<31x1x64xf32, #tpu.memory_space<vmem>>, vector<1x1x64xf32>
    %811 = vector.shape_cast %810 : vector<1x1x64xf32> to vector<1x64xf32>
    %812 = vector.broadcast %811 : vector<1x64xf32> to vector<32x64xf32>
    %813 = arith.mulf %809, %812 : vector<32x64xf32>
    %814 = vector.extract_strided_slice %447 {offsets = [0, 28], sizes = [32, 1], strides = [1, 1]} : vector<32x63xf32> to vector<32x1xf32>
    %815 = vector.broadcast %814 : vector<32x1xf32> to vector<32x64xf32>
    %816 = arith.mulf %813, %815 : vector<32x64xf32>
    %817 = arith.addf %804, %816 : vector<32x64xf32>
    %818 = vector.extract_strided_slice %447 {offsets = [0, 59], sizes = [32, 1], strides = [1, 1]} : vector<32x63xf32> to vector<32x1xf32>
    %819 = vector.broadcast %818 : vector<32x1xf32> to vector<32x64xf32>
    %820 = arith.mulf %813, %819 : vector<32x64xf32>
    %821 = arith.addf %808, %820 : vector<32x64xf32>
    %c50_i32_199 = arith.constant 50 : i32
    %822 = tpu.dynamic_rotate %445 by %c50_i32_199 dim 1 : vector<32x64xf32>, i32 -> vector<32x64xf32>
    %c29_200 = arith.constant 29 : index
    %c0_201 = arith.constant 0 : index
    %c0_202 = arith.constant 0 : index
    %823 = vector.load %arg2[%c29_200, %c0_201, %c0_202] : memref<31x1x64xf32, #tpu.memory_space<vmem>>, vector<1x1x64xf32>
    %824 = vector.shape_cast %823 : vector<1x1x64xf32> to vector<1x64xf32>
    %825 = vector.broadcast %824 : vector<1x64xf32> to vector<32x64xf32>
    %826 = arith.mulf %822, %825 : vector<32x64xf32>
    %827 = vector.extract_strided_slice %447 {offsets = [0, 29], sizes = [32, 1], strides = [1, 1]} : vector<32x63xf32> to vector<32x1xf32>
    %828 = vector.broadcast %827 : vector<32x1xf32> to vector<32x64xf32>
    %829 = arith.mulf %826, %828 : vector<32x64xf32>
    %830 = arith.addf %817, %829 : vector<32x64xf32>
    %831 = vector.extract_strided_slice %447 {offsets = [0, 60], sizes = [32, 1], strides = [1, 1]} : vector<32x63xf32> to vector<32x1xf32>
    %832 = vector.broadcast %831 : vector<32x1xf32> to vector<32x64xf32>
    %833 = arith.mulf %826, %832 : vector<32x64xf32>
    %834 = arith.addf %821, %833 : vector<32x64xf32>
    %c49_i32_203 = arith.constant 49 : i32
    %835 = tpu.dynamic_rotate %445 by %c49_i32_203 dim 1 : vector<32x64xf32>, i32 -> vector<32x64xf32>
    %c30_204 = arith.constant 30 : index
    %c0_205 = arith.constant 0 : index
    %c0_206 = arith.constant 0 : index
    %836 = vector.load %arg2[%c30_204, %c0_205, %c0_206] : memref<31x1x64xf32, #tpu.memory_space<vmem>>, vector<1x1x64xf32>
    %837 = vector.shape_cast %836 : vector<1x1x64xf32> to vector<1x64xf32>
    %838 = vector.broadcast %837 : vector<1x64xf32> to vector<32x64xf32>
    %839 = arith.mulf %835, %838 : vector<32x64xf32>
    %840 = vector.extract_strided_slice %447 {offsets = [0, 30], sizes = [32, 1], strides = [1, 1]} : vector<32x63xf32> to vector<32x1xf32>
    %841 = vector.broadcast %840 : vector<32x1xf32> to vector<32x64xf32>
    %842 = arith.mulf %839, %841 : vector<32x64xf32>
    %843 = arith.addf %830, %842 : vector<32x64xf32>
    %844 = vector.extract_strided_slice %447 {offsets = [0, 61], sizes = [32, 1], strides = [1, 1]} : vector<32x63xf32> to vector<32x1xf32>
    %845 = vector.broadcast %844 : vector<32x1xf32> to vector<32x64xf32>
    %846 = arith.mulf %839, %845 : vector<32x64xf32>
    %847 = arith.addf %834, %846 : vector<32x64xf32>
    %c31_i32_207 = arith.constant 31 : i32
    %848 = tpu.dynamic_rotate %847 by %c31_i32_207 dim 0 : vector<32x64xf32>, i32 -> vector<32x64xf32>
    %c1_i32_208 = arith.constant 1 : i32
    %849 = tpu.dynamic_rotate %847 by %c1_i32_208 dim 0 : vector<32x64xf32>, i32 -> vector<32x64xf32>
    %850 = arith.select %21, %848, %849 : vector<32x64xi1>, vector<32x64xf32>
    %851 = arith.addf %843, %850 : vector<32x64xf32>
    %852 = vector.extract_strided_slice %447 {offsets = [0, 62], sizes = [32, 1], strides = [1, 1]} : vector<32x63xf32> to vector<32x1xf32>
    %853 = vector.broadcast %852 : vector<32x1xf32> to vector<32x64xf32>
    %854 = arith.addf %851, %853 : vector<32x64xf32>
    %cst_209 = arith.constant 2.000000e+01 : f32
    %855 = vector.broadcast %cst_209 : f32 to vector<32x64xf32>
    %856 = arith.minimumf %854, %855 : vector<32x64xf32>
    %857 = math.exp %856 : vector<32x64xf32>
    %cst_210 = arith.constant 1.000000e+00 : f32
    %858 = vector.broadcast %cst_210 : f32 to vector<32x64xf32>
    %859 = arith.addf %858, %857 : vector<32x64xf32>
    %cst_211 = arith.constant 1.000000e+00 : f32
    %860 = vector.broadcast %cst_211 : f32 to vector<32x64xf32>
    %861 = arith.addf %860, %857 : vector<32x64xf32>
    %862 = arith.mulf %859, %861 : vector<32x64xf32>
    %cst_212 = arith.constant 1.000000e+00 : f32
    %863 = vector.broadcast %cst_212 : f32 to vector<32x64xf32>
    %864 = arith.addf %862, %863 : vector<32x64xf32>
    %cst_213 = arith.constant 2.000000e+00 : f32
    %865 = vector.broadcast %cst_213 : f32 to vector<32x64xf32>
    %866 = arith.divf %865, %864 : vector<32x64xf32>
    %cst_214 = arith.constant 1.000000e+00 : f32
    %867 = vector.broadcast %cst_214 : f32 to vector<32x64xf32>
    %868 = arith.subf %867, %866 : vector<32x64xf32>
    %869 = arith.mulf %854, %868 : vector<32x64xf32>
    %870 = arith.addf %869, %2 : vector<32x64xf32>
    %c0_215 = arith.constant 0 : index
    %c0_216 = arith.constant 0 : index
    %871 = vector.load %arg4[%c0_215, %c0_216] : memref<32x64xf32, #tpu.memory_space<vmem>>, vector<32x64xf32>
    tpu.vector_store %arg4[%c0_215, %c0_216], %870 {strides = array<i32>} : memref<32x64xf32, #tpu.memory_space<vmem>>, vector<32x64xf32>,
    return
  }
}

</mosaic_0001>

<llo_original>
// kernel: input_embedding.1
$region0: #{input_embedding.1}
  #allocation0 [shape = 'u32[]', space=smem, size = 0x4, offset = 0x4, fixed_abs, tag = 'smem constant byte address 0x4 - core index']
  #allocation1 [shape = 'u32[144,128]{1,0:T(1,128)}', space=vmem, size = 0x12000, scoped, tag = 'internal scratch']
  %s0 = inlined_call_operand.vmem [shape: f32[48,64], index: 0, kind: input, shape index: {}]
  %s1 = inlined_call_operand.vmem [shape: f32[32,48], index: 1, kind: input, shape index: {}]
  %s2 = inlined_call_operand.vmem [shape: f32[31,1,64], index: 2, kind: input, shape index: {}]
  %s3 = inlined_call_operand.vmem [shape: f32[2,32,63], index: 3, kind: input, shape index: {}]
  %s4 = inlined_call_operand.vmem [shape: f32[32,64], index: 4, kind: output, shape index: {}]
  %s5 = sld [smem:[#allocation0]]
  $region26: #{input_embedding.1} parent=0
    _
  %s7 = ssub.s32 1, %s5
  %s8 = scalar_select 0, %s7, %s5
  // Predicated region
  $region2: #{input_embedding.1} parent=0 // pred_check
    _
  $region3: #{input_embedding.1} parent=0 // pred_check_branch
    %10 = sbr.rel (0) target = $region5
  $region4: #{input_embedding.1} parent=0 // pred_region
    _
  $region5: #{input_embedding.1} parent=0 // pred_fallthru
    _
  // Predicated region
  $region6: #{input_embedding.1} parent=0 // pred_check
    _
  $region7: #{input_embedding.1} parent=0 // pred_check_branch
    %12 = sbr.rel (0) target = $region9
  $region8: #{input_embedding.1} parent=0 // pred_region
    _
  $region9: #{input_embedding.1} parent=0 // pred_fallthru
    _
  // Predicated region
  $region10: #{input_embedding.1} parent=0 // pred_check
    _
  $region11: #{input_embedding.1} parent=0 // pred_check_branch
    %14 = sbr.rel (0) target = $region13
  $region12: #{input_embedding.1} parent=0 // pred_region
    _
  $region13: #{input_embedding.1} parent=0 // pred_fallthru
    _
  // Predicated region
  $region14: #{input_embedding.1} parent=0 // pred_check
    _
  $region15: #{input_embedding.1} parent=0 // pred_check_branch
    %16 = sbr.rel (0) target = $region17
  $region16: #{input_embedding.1} parent=0 // pred_region
    _
  $region17: #{input_embedding.1} parent=0 // pred_fallthru
    _
  %v17 = vld [vmem:[%s1] sm:$0xff]
  %v18 = vld [vmem:[%s1 + $0x8] sm:$0xff]
  %v19 = vld [vmem:[%s1 + $0x10] sm:$0xff]
  %v20 = vld [vmem:[%s1 + $0x18] sm:$0xff]
  %v21 = vld [vmem:[%s0] sm:$0xff]
  %v22 = vld [vmem:[%s0 + $0x8] sm:$0xff]
  %v23 = vld [vmem:[%s0 + $0x10] sm:$0xff]
  %v24 = vld [vmem:[%s0 + $0x18] sm:$0xff]
  %v25 = vld [vmem:[%s0 + $0x20] sm:$0xff]
  %v26 = vld [vmem:[%s0 + $0x28] sm:$0xff]
  %vm27 = vcmask 392192
  %v29 = vsel %vm27, %v17, 0
  %v32 = vsel %vm27, %v18, 0
  %v35 = vsel %vm27, %v19, 0
  %v38 = vsel %vm27, %v20, 0
  %40 = vmatprep.subr.mxu0 0.0
  %41 = vmatpush1.msra.mxu0 %v21
  %42 = vmatprep.subr.mxu0 0.0
  %43 = vmatpush1.msra.mxu0 %v22
  %44 = vmatprep.subr.mxu0 0.0
  %45 = vmatpush1.msra.mxu0 %v23
  %46 = vmatprep.subr.mxu0 0.0
  %47 = vmatpush1.msra.mxu0 %v24
  %48 = vmatprep.subr.mxu0 0.0
  %49 = vmatpush1.msra.mxu0 %v25
  %50 = vmatprep.subr.mxu0 0.0
  %51 = vmatpush1.msra.mxu0 %v26
  %52 = vmatprep.subr.mxu0 0.0
  %53 = vmatpush1.msra.mxu0 0.0
  %54 = vmatprep.subr.mxu0 0.0
  %55 = vmatpush1.msra.mxu0 0.0
  %56 = vmatprep.subr.mxu0 0.0
  %57 = vmatpush1.msra.mxu0 0.0
  %58 = vmatprep.subr.mxu0 0.0
  %59 = vmatpush1.msra.mxu0 0.0
  %60 = vmatprep.subr.mxu0 0.0
  %61 = vmatpush1.msra.mxu0 0.0
  %62 = vmatprep.subr.mxu0 0.0
  %63 = vmatpush1.msra.mxu0 0.0
  %64 = vmatprep.subr.mxu0 0.0
  %65 = vmatpush1.msra.mxu0 0.0
  %66 = vmatprep.subr.mxu0 0.0
  %67 = vmatpush1.msra.mxu0 0.0
  %68 = vmatprep.subr.mxu0 0.0
  %69 = vmatpush1.msra.mxu0 0.0
  %70 = vmatprep.subr.mxu0 0.0
  %71 = vmatpush1.msra.mxu0 0.0
  %72 = vmatprep.subr.mxu0 0.0
  %73 = vmatpush1.msra.mxu0 0.0
  %74 = vmatprep.subr.mxu0 0.0
  %75 = vmatpush1.msra.mxu0 0.0
  %76 = vmatprep.subr.mxu0 0.0
  %77 = vmatpush1.msra.mxu0 0.0
  %78 = vmatprep.subr.mxu0 0.0
  %79 = vmatpush1.msra.mxu0 0.0
  %80 = vmatprep.subr.mxu0 0.0
  %81 = vmatpush1.msra.mxu0 0.0
  %82 = vmatprep.subr.mxu0 0.0
  %83 = vmatpush1.msra.mxu0 0.0
  %84 = vmatprep.subr.mxu0 0.0
  %85 = vmatpush1.msra.mxu0 0.0
  %86 = vmatprep.subr.mxu0 0.0
  %87 = vmatpush1.msra.mxu0 0.0
  %88 = vmatprep.subr.mxu0 0.0
  %89 = vmatpush1.msra.mxu0 0.0
  %90 = vmatprep.subr.mxu0 0.0
  %91 = vmatpush1.msra.mxu0 0.0
  %92 = vmatprep.subr.mxu0 0.0
  %93 = vmatpush1.msra.mxu0 0.0
  %94 = vmatprep.subr.mxu0 0.0
  %95 = vmatpush1.msra.mxu0 0.0
  %96 = vmatprep.subr.mxu0 0.0
  %97 = vmatpush1.msra.mxu0 0.0
  %98 = vmatprep.subr.mxu0 0.0
  %99 = vmatpush1.msra.mxu0 0.0
  %100 = vmatprep.subr.mxu0 0.0
  %101 = vmatpush1.msra.mxu0 0.0
  %102 = vmatprep.subr.mxu0 0.0
  %103 = vmatpush1.msra.mxu0 0.0
  %104 = vmatprep.mubr.f32.mxu0 0.0
  %105 = vmatmul.mubr.f32.gmra.mrb[0].mxu0 %v29
  %v106 = vpop.f32.mrb[0].mxu0
  %v107 = vadd.f32 0.0, %v106
  %v108 = vpop.f32.mrb[0].mxu0
  %109 = vmatprep.mubr.f32.mxu0 0.0
  %110 = vmatmul.mubr.f32.gmra.mrb[0].mxu0 %v32
  %v111 = vpop.f32.mrb[0].mxu0
  %v112 = vadd.f32 0.0, %v111
  %v113 = vpop.f32.mrb[0].mxu0
  %114 = vmatprep.mubr.f32.mxu0 0.0
  %115 = vmatmul.mubr.f32.gmra.mrb[0].mxu0 %v35
  %v116 = vpop.f32.mrb[0].mxu0
  %v117 = vadd.f32 0.0, %v116
  %v118 = vpop.f32.mrb[0].mxu0
  %119 = vmatprep.mubr.f32.mxu0 0.0
  %120 = vmatmul.mubr.f32.gmra.mrb[0].mxu0 %v38
  %v121 = vpop.f32.mrb[0].mxu0
  %v122 = vadd.f32 0.0, %v121
  %v123 = vpop.f32.mrb[0].mxu0
  %124 = vdwg.mxu0
  %v125 = vlaneseq
  %v126 = vshrl.u32 %v125, 7
  %v127 = vadd.s32 %v126, 8
  %v128 = vadd.s32 %v126, 16
  %v129 = vadd.s32 %v126, 24
  %vm130 = vcmp.lt.s32.totalorder %v126, 0
  %v131 = vsub.s32 0, %v126
  %v132 = vsel %vm130, %v131, %v126
  %v133 = vshrl.u32 %v132, 1
  %v134 = vand.u32 %v132, 1
  %v135 = vsub.s32 0, %v134
  %v136 = vsel %vm130, %v135, %v134
  %vm137 = vcmp.lt.s32.totalorder %v127, 0
  %v138 = vsub.s32 0, %v127
  %v139 = vsel %vm137, %v138, %v127
  %v140 = vshrl.u32 %v139, 1
  %v141 = vand.u32 %v139, 1
  %v142 = vsub.s32 0, %v141
  %v143 = vsel %vm137, %v142, %v141
  %vm144 = vcmp.lt.s32.totalorder %v128, 0
  %v145 = vsub.s32 0, %v128
  %v146 = vsel %vm144, %v145, %v128
  %v147 = vshrl.u32 %v146, 1
  %v148 = vand.u32 %v146, 1
  %v149 = vsub.s32 0, %v148
  %v150 = vsel %vm144, %v149, %v148
  %vm151 = vcmp.lt.s32.totalorder %v129, 0
  %v152 = vsub.s32 0, %v129
  %v153 = vsel %vm151, %v152, %v129
  %v154 = vshrl.u32 %v153, 1
  %v155 = vand.u32 %v153, 1
  %v156 = vsub.s32 0, %v155
  %v157 = vsel %vm151, %v156, %v155
  %vm158 = vcmp.ne.s32.totalorder %v136, 0
  %vm159 = vcmp.ne.s32.totalorder %v143, 0
  %vm160 = vcmp.ne.s32.totalorder %v150, 0
  %vm161 = vcmp.ne.s32.totalorder %v157, 0
  %vm162 = vcmp.lt.s32.totalorder %v136, 0
  %vm163 = vcmp.lt.s32.totalorder %v143, 0
  %vm164 = vcmp.lt.s32.totalorder %v150, 0
  %vm165 = vcmp.lt.s32.totalorder %v157, 0
  %vm166 = vmand %vm162, %vm158
  %vm167 = vmand %vm163, %vm159
  %vm168 = vmand %vm164, %vm160
  %vm169 = vmand %vm165, %vm161
  %v170 = vadd.s32 %v136, 2
  %v171 = vadd.s32 %v143, 2
  %v172 = vadd.s32 %v150, 2
  %v173 = vadd.s32 %v157, 2
  %v174 = vsel %vm166, %v170, %v136
  %v175 = vsel %vm167, %v171, %v143
  %v176 = vsel %vm168, %v172, %v150
  %v177 = vsel %vm169, %v173, %v157
  %vm178 = vcmp.eq.s32.totalorder %v174, 0
  %vm179 = vcmp.eq.s32.totalorder %v175, 0
  %vm180 = vcmp.eq.s32.totalorder %v176, 0
  %vm181 = vcmp.eq.s32.totalorder %v177, 0
  %v182 = vld [vmem:[%s3] sm:$0xff]
  %v183 = vld [vmem:[%s3 + $0x8] sm:$0xff]
  %v184 = vld [vmem:[%s3 + $0x10] sm:$0xff]
  %v185 = vld [vmem:[%s3 + $0x18] sm:$0xff]
  %vm186 = vcmask 1048064
  %187 = vrot.lane.b32.xlu0 %v107, 64
  %v188 = vpop.permute.xlu0 %187
  %v189 = vsel %vm186, %v188, %v107
  %190 = vrot.lane.b32.xlu0 %v112, 64
  %v191 = vpop.permute.xlu0 %190
  %v192 = vsel %vm186, %v191, %v112
  %193 = vrot.lane.b32.xlu0 %v117, 64
  %v194 = vpop.permute.xlu0 %193
  %v195 = vsel %vm186, %v194, %v117
  %196 = vrot.lane.b32.xlu0 %v122, 64
  %v197 = vpop.permute.xlu0 %196
  %v198 = vsel %vm186, %v197, %v122
  %199 = vrot.lane.b32.xlu0 %v189, 64
  %v200 = vpop.permute.xlu0 %199
  %201 = vrot.lane.b32.xlu0 %v192, 64
  %v202 = vpop.permute.xlu0 %201
  %203 = vrot.lane.b32.xlu0 %v195, 64
  %v204 = vpop.permute.xlu0 %203
  %205 = vrot.lane.b32.xlu0 %v198, 64
  %v206 = vpop.permute.xlu0 %205
  %v207 = vsel %vm186, %v200, %v107
  %v208 = vsel %vm186, %v202, %v112
  %v209 = vsel %vm186, %v204, %v117
  %v210 = vsel %vm186, %v206, %v122
  %v211 = vld [vmem:[%s2] sm:$0x1]
  %v213 = vlaneseq
  %v214 = vshrl.u32 %v213, 7
  %v215 = vsub.s32 0, %v214
  %v216 = vrot.slane %v211, %v215
  %217 = vrot.lane.b32.xlu0 %v216, 49
  %v218 = vpop.permute.xlu0 %217
  %v220 = vmul.f32 %v207, %v218
  %v221 = vmul.f32 %v208, %v218
  %v222 = vmul.f32 %v209, %v218
  %v223 = vmul.f32 %v210, %v218
  %225 = vset.pattern.permute.xlu0 0
  %226 = vperm.xlu0 %225, %v182
  %v227 = vpop.permute.xlu0 %226
  %230 = vset.pattern.permute.xlu0 0
  %231 = vperm.xlu0 %230, %v183
  %v232 = vpop.permute.xlu0 %231
  %235 = vset.pattern.permute.xlu0 0
  %236 = vperm.xlu0 %235, %v184
  %v237 = vpop.permute.xlu0 %236
  %240 = vset.pattern.permute.xlu0 0
  %241 = vperm.xlu0 %240, %v185
  %v242 = vpop.permute.xlu0 %241
  %v244 = vmul.f32 %v220, %v227
  %v245 = vmul.f32 %v221, %v232
  %v246 = vmul.f32 %v222, %v237
  %v247 = vmul.f32 %v223, %v242
  %v248 = vadd.f32 %v244, 0.0
  %v249 = vadd.f32 %v245, 0.0
  %v250 = vadd.f32 %v246, 0.0
  %v251 = vadd.f32 %v247, 0.0
  %252 = vset.pattern.permute.xlu0 31
  %253 = vperm.xlu0 %252, %v182
  %v254 = vpop.permute.xlu0 %253
  %256 = vset.pattern.permute.xlu0 31
  %257 = vperm.xlu0 %256, %v183
  %v258 = vpop.permute.xlu0 %257
  %260 = vset.pattern.permute.xlu0 31
  %261 = vperm.xlu0 %260, %v184
  %v262 = vpop.permute.xlu0 %261
  %264 = vset.pattern.permute.xlu0 31
  %265 = vperm.xlu0 %264, %v185
  %v266 = vpop.permute.xlu0 %265
  %v268 = vmul.f32 %v220, %v254
  %v269 = vmul.f32 %v221, %v258
  %v270 = vmul.f32 %v222, %v262
  %v271 = vmul.f32 %v223, %v266
  %v272 = vadd.f32 %v268, 0.0
  %v273 = vadd.f32 %v269, 0.0
  %v274 = vadd.f32 %v270, 0.0
  %v275 = vadd.f32 %v271, 0.0
  %s276 = scalar_lea.vmem %s2, 1
  %v277 = vld [vmem:[%s276] sm:$0x1]
  %v279 = vlaneseq
  %v280 = vshrl.u32 %v279, 7
  %v281 = vsub.s32 0, %v280
  %v282 = vrot.slane %v277, %v281
  %283 = vrot.lane.b32.xlu0 %v282, 50
  %v284 = vpop.permute.xlu0 %283
  %v286 = vmul.f32 %v207, %v284
  %v287 = vmul.f32 %v208, %v284
  %v288 = vmul.f32 %v209, %v284
  %v289 = vmul.f32 %v210, %v284
  %290 = vset.pattern.permute.xlu0 1
  %291 = vperm.xlu0 %290, %v182
  %v292 = vpop.permute.xlu0 %291
  %294 = vset.pattern.permute.xlu0 1
  %295 = vperm.xlu0 %294, %v183
  %v296 = vpop.permute.xlu0 %295
  %298 = vset.pattern.permute.xlu0 1
  %299 = vperm.xlu0 %298, %v184
  %v300 = vpop.permute.xlu0 %299
  %302 = vset.pattern.permute.xlu0 1
  %303 = vperm.xlu0 %302, %v185
  %v304 = vpop.permute.xlu0 %303
  %v306 = vmul.f32 %v286, %v292
  %v307 = vmul.f32 %v287, %v296
  %v308 = vmul.f32 %v288, %v300
  %v309 = vmul.f32 %v289, %v304
  %314 = vrot.lane.b32.xlu0 %v306, 127
  %v315 = vpop.permute.xlu0 %314
  %316 = vrot.lane.b32.xlu0 %v307, 127
  %v317 = vpop.permute.xlu0 %316
  %318 = vrot.lane.b32.xlu0 %v308, 127
  %v319 = vpop.permute.xlu0 %318
  %320 = vrot.lane.b32.xlu0 %v309, 127
  %v321 = vpop.permute.xlu0 %320
  %v326 = vadd.f32 %v248, %v315
  %v327 = vadd.f32 %v249, %v317
  %v328 = vadd.f32 %v250, %v319
  %v329 = vadd.f32 %v251, %v321
  %330 = vset.pattern.permute.xlu0 32
  %331 = vperm.xlu0 %330, %v182
  %v332 = vpop.permute.xlu0 %331
  %334 = vset.pattern.permute.xlu0 32
  %335 = vperm.xlu0 %334, %v183
  %v336 = vpop.permute.xlu0 %335
  %338 = vset.pattern.permute.xlu0 32
  %339 = vperm.xlu0 %338, %v184
  %v340 = vpop.permute.xlu0 %339
  %342 = vset.pattern.permute.xlu0 32
  %343 = vperm.xlu0 %342, %v185
  %v344 = vpop.permute.xlu0 %343
  %v346 = vmul.f32 %v286, %v332
  %v347 = vmul.f32 %v287, %v336
  %v348 = vmul.f32 %v288, %v340
  %v349 = vmul.f32 %v289, %v344
  %354 = vrot.lane.b32.xlu0 %v346, 127
  %v355 = vpop.permute.xlu0 %354
  %356 = vrot.lane.b32.xlu0 %v347, 127
  %v357 = vpop.permute.xlu0 %356
  %358 = vrot.lane.b32.xlu0 %v348, 127
  %v359 = vpop.permute.xlu0 %358
  %360 = vrot.lane.b32.xlu0 %v349, 127
  %v361 = vpop.permute.xlu0 %360
  %v366 = vadd.f32 %v272, %v355
  %v367 = vadd.f32 %v273, %v357
  %v368 = vadd.f32 %v274, %v359
  %v369 = vadd.f32 %v275, %v361
  %s370 = scalar_lea.vmem %s2, 2
  %v371 = vld [vmem:[%s370] sm:$0x1]
  %v373 = vlaneseq
  %v374 = vshrl.u32 %v373, 7
  %v375 = vsub.s32 0, %v374
  %v376 = vrot.slane %v371, %v375
  %377 = vrot.lane.b32.xlu0 %v376, 51
  %v378 = vpop.permute.xlu0 %377
  %v380 = vmul.f32 %v207, %v378
  %v381 = vmul.f32 %v208, %v378
  %v382 = vmul.f32 %v209, %v378
  %v383 = vmul.f32 %v210, %v378
  %384 = vset.pattern.permute.xlu0 2
  %385 = vperm.xlu0 %384, %v182
  %v386 = vpop.permute.xlu0 %385
  %388 = vset.pattern.permute.xlu0 2
  %389 = vperm.xlu0 %388, %v183
  %v390 = vpop.permute.xlu0 %389
  %392 = vset.pattern.permute.xlu0 2
  %393 = vperm.xlu0 %392, %v184
  %v394 = vpop.permute.xlu0 %393
  %396 = vset.pattern.permute.xlu0 2
  %397 = vperm.xlu0 %396, %v185
  %v398 = vpop.permute.xlu0 %397
  %v400 = vmul.f32 %v380, %v386
  %v401 = vmul.f32 %v381, %v390
  %v402 = vmul.f32 %v382, %v394
  %v403 = vmul.f32 %v383, %v398
  %408 = vrot.lane.b32.xlu0 %v400, 126
  %v409 = vpop.permute.xlu0 %408
  %410 = vrot.lane.b32.xlu0 %v401, 126
  %v411 = vpop.permute.xlu0 %410
  %412 = vrot.lane.b32.xlu0 %v402, 126
  %v413 = vpop.permute.xlu0 %412
  %414 = vrot.lane.b32.xlu0 %v403, 126
  %v415 = vpop.permute.xlu0 %414
  %v420 = vadd.f32 %v326, %v409
  %v421 = vadd.f32 %v327, %v411
  %v422 = vadd.f32 %v328, %v413
  %v423 = vadd.f32 %v329, %v415
  %424 = vset.pattern.permute.xlu0 33
  %425 = vperm.xlu0 %424, %v182
  %v426 = vpop.permute.xlu0 %425
  %428 = vset.pattern.permute.xlu0 33
  %429 = vperm.xlu0 %428, %v183
  %v430 = vpop.permute.xlu0 %429
  %432 = vset.pattern.permute.xlu0 33
  %433 = vperm.xlu0 %432, %v184
  %v434 = vpop.permute.xlu0 %433
  %436 = vset.pattern.permute.xlu0 33
  %437 = vperm.xlu0 %436, %v185
  %v438 = vpop.permute.xlu0 %437
  %v440 = vmul.f32 %v380, %v426
  %v441 = vmul.f32 %v381, %v430
  %v442 = vmul.f32 %v382, %v434
  %v443 = vmul.f32 %v383, %v438
  %448 = vrot.lane.b32.xlu0 %v440, 126
  %v449 = vpop.permute.xlu0 %448
  %450 = vrot.lane.b32.xlu0 %v441, 126
  %v451 = vpop.permute.xlu0 %450
  %452 = vrot.lane.b32.xlu0 %v442, 126
  %v453 = vpop.permute.xlu0 %452
  %454 = vrot.lane.b32.xlu0 %v443, 126
  %v455 = vpop.permute.xlu0 %454
  %v460 = vadd.f32 %v366, %v449
  %v461 = vadd.f32 %v367, %v451
  %v462 = vadd.f32 %v368, %v453
  %v463 = vadd.f32 %v369, %v455
  %s464 = scalar_lea.vmem %s2, 3
  %v465 = vld [vmem:[%s464] sm:$0x1]
  %v467 = vlaneseq
  %v468 = vshrl.u32 %v467, 7
  %v469 = vsub.s32 0, %v468
  %v470 = vrot.slane %v465, %v469
  %471 = vrot.lane.b32.xlu0 %v470, 52
  %v472 = vpop.permute.xlu0 %471
  %v474 = vmul.f32 %v207, %v472
  %v475 = vmul.f32 %v208, %v472
  %v476 = vmul.f32 %v209, %v472
  %v477 = vmul.f32 %v210, %v472
  %478 = vset.pattern.permute.xlu0 3
  %479 = vperm.xlu0 %478, %v182
  %v480 = vpop.permute.xlu0 %479
  %482 = vset.pattern.permute.xlu0 3
  %483 = vperm.xlu0 %482, %v183
  %v484 = vpop.permute.xlu0 %483
  %486 = vset.pattern.permute.xlu0 3
  %487 = vperm.xlu0 %486, %v184
  %v488 = vpop.permute.xlu0 %487
  %490 = vset.pattern.permute.xlu0 3
  %491 = vperm.xlu0 %490, %v185
  %v492 = vpop.permute.xlu0 %491
  %v494 = vmul.f32 %v474, %v480
  %v495 = vmul.f32 %v475, %v484
  %v496 = vmul.f32 %v476, %v488
  %v497 = vmul.f32 %v477, %v492
  %502 = vrot.lane.b32.xlu0 %v494, 125
  %v503 = vpop.permute.xlu0 %502
  %504 = vrot.lane.b32.xlu0 %v495, 125
  %v505 = vpop.permute.xlu0 %504
  %506 = vrot.lane.b32.xlu0 %v496, 125
  %v507 = vpop.permute.xlu0 %506
  %508 = vrot.lane.b32.xlu0 %v497, 125
  %v509 = vpop.permute.xlu0 %508
  %v514 = vadd.f32 %v420, %v503
  %v515 = vadd.f32 %v421, %v505
  %v516 = vadd.f32 %v422, %v507
  %v517 = vadd.f32 %v423, %v509
  %518 = vset.pattern.permute.xlu0 34
  %519 = vperm.xlu0 %518, %v182
  %v520 = vpop.permute.xlu0 %519
  %522 = vset.pattern.permute.xlu0 34
  %523 = vperm.xlu0 %522, %v183
  %v524 = vpop.permute.xlu0 %523
  %526 = vset.pattern.permute.xlu0 34
  %527 = vperm.xlu0 %526, %v184
  %v528 = vpop.permute.xlu0 %527
  %530 = vset.pattern.permute.xlu0 34
  %531 = vperm.xlu0 %530, %v185
  %v532 = vpop.permute.xlu0 %531
  %v534 = vmul.f32 %v474, %v520
  %v535 = vmul.f32 %v475, %v524
  %v536 = vmul.f32 %v476, %v528
  %v537 = vmul.f32 %v477, %v532
  %542 = vrot.lane.b32.xlu0 %v534, 125
  %v543 = vpop.permute.xlu0 %542
  %544 = vrot.lane.b32.xlu0 %v535, 125
  %v545 = vpop.permute.xlu0 %544
  %546 = vrot.lane.b32.xlu0 %v536, 125
  %v547 = vpop.permute.xlu0 %546
  %548 = vrot.lane.b32.xlu0 %v537, 125
  %v549 = vpop.permute.xlu0 %548
  %v554 = vadd.f32 %v460, %v543
  %v555 = vadd.f32 %v461, %v545
  %v556 = vadd.f32 %v462, %v547
  %v557 = vadd.f32 %v463, %v549
  %s558 = scalar_lea.vmem %s2, 4
  %v559 = vld [vmem:[%s558] sm:$0x1]
  %v561 = vlaneseq
  %v562 = vshrl.u32 %v561, 7
  %v563 = vsub.s32 0, %v562
  %v564 = vrot.slane %v559, %v563
  %565 = vrot.lane.b32.xlu0 %v564, 53
  %v566 = vpop.permute.xlu0 %565
  %v568 = vmul.f32 %v207, %v566
  %v569 = vmul.f32 %v208, %v566
  %v570 = vmul.f32 %v209, %v566
  %v571 = vmul.f32 %v210, %v566
  %572 = vset.pattern.permute.xlu0 4
  %573 = vperm.xlu0 %572, %v182
  %v574 = vpop.permute.xlu0 %573
  %576 = vset.pattern.permute.xlu0 4
  %577 = vperm.xlu0 %576, %v183
  %v578 = vpop.permute.xlu0 %577
  %580 = vset.pattern.permute.xlu0 4
  %581 = vperm.xlu0 %580, %v184
  %v582 = vpop.permute.xlu0 %581
  %584 = vset.pattern.permute.xlu0 4
  %585 = vperm.xlu0 %584, %v185
  %v586 = vpop.permute.xlu0 %585
  %v588 = vmul.f32 %v568, %v574
  %v589 = vmul.f32 %v569, %v578
  %v590 = vmul.f32 %v570, %v582
  %v591 = vmul.f32 %v571, %v586
  %596 = vrot.lane.b32.xlu0 %v588, 124
  %v597 = vpop.permute.xlu0 %596
  %598 = vrot.lane.b32.xlu0 %v589, 124
  %v599 = vpop.permute.xlu0 %598
  %600 = vrot.lane.b32.xlu0 %v590, 124
  %v601 = vpop.permute.xlu0 %600
  %602 = vrot.lane.b32.xlu0 %v591, 124
  %v603 = vpop.permute.xlu0 %602
  %v608 = vadd.f32 %v514, %v597
  %v609 = vadd.f32 %v515, %v599
  %v610 = vadd.f32 %v516, %v601
  %v611 = vadd.f32 %v517, %v603
  %612 = vset.pattern.permute.xlu0 35
  %613 = vperm.xlu0 %612, %v182
  %v614 = vpop.permute.xlu0 %613
  %616 = vset.pattern.permute.xlu0 35
  %617 = vperm.xlu0 %616, %v183
  %v618 = vpop.permute.xlu0 %617
  %620 = vset.pattern.permute.xlu0 35
  %621 = vperm.xlu0 %620, %v184
  %v622 = vpop.permute.xlu0 %621
  %624 = vset.pattern.permute.xlu0 35
  %625 = vperm.xlu0 %624, %v185
  %v626 = vpop.permute.xlu0 %625
  %v628 = vmul.f32 %v568, %v614
  %v629 = vmul.f32 %v569, %v618
  %v630 = vmul.f32 %v570, %v622
  %v631 = vmul.f32 %v571, %v626
  %636 = vrot.lane.b32.xlu0 %v628, 124
  %v637 = vpop.permute.xlu0 %636
  %638 = vrot.lane.b32.xlu0 %v629, 124
  %v639 = vpop.permute.xlu0 %638
  %640 = vrot.lane.b32.xlu0 %v630, 124
  %v641 = vpop.permute.xlu0 %640
  %642 = vrot.lane.b32.xlu0 %v631, 124
  %v643 = vpop.permute.xlu0 %642
  %v648 = vadd.f32 %v554, %v637
  %v649 = vadd.f32 %v555, %v639
  %v650 = vadd.f32 %v556, %v641
  %v651 = vadd.f32 %v557, %v643
  %s652 = scalar_lea.vmem %s2, 5
  %v653 = vld [vmem:[%s652] sm:$0x1]
  %v655 = vlaneseq
  %v656 = vshrl.u32 %v655, 7
  %v657 = vsub.s32 0, %v656
  %v658 = vrot.slane %v653, %v657
  %659 = vrot.lane.b32.xlu0 %v658, 54
  %v660 = vpop.permute.xlu0 %659
  %v662 = vmul.f32 %v207, %v660
  %v663 = vmul.f32 %v208, %v660
  %v664 = vmul.f32 %v209, %v660
  %v665 = vmul.f32 %v210, %v660
  %666 = vset.pattern.permute.xlu0 5
  %667 = vperm.xlu0 %666, %v182
  %v668 = vpop.permute.xlu0 %667
  %670 = vset.pattern.permute.xlu0 5
  %671 = vperm.xlu0 %670, %v183
  %v672 = vpop.permute.xlu0 %671
  %674 = vset.pattern.permute.xlu0 5
  %675 = vperm.xlu0 %674, %v184
  %v676 = vpop.permute.xlu0 %675
  %678 = vset.pattern.permute.xlu0 5
  %679 = vperm.xlu0 %678, %v185
  %v680 = vpop.permute.xlu0 %679
  %v682 = vmul.f32 %v662, %v668
  %v683 = vmul.f32 %v663, %v672
  %v684 = vmul.f32 %v664, %v676
  %v685 = vmul.f32 %v665, %v680
  %690 = vrot.lane.b32.xlu0 %v682, 123
  %v691 = vpop.permute.xlu0 %690
  %692 = vrot.lane.b32.xlu0 %v683, 123
  %v693 = vpop.permute.xlu0 %692
  %694 = vrot.lane.b32.xlu0 %v684, 123
  %v695 = vpop.permute.xlu0 %694
  %696 = vrot.lane.b32.xlu0 %v685, 123
  %v697 = vpop.permute.xlu0 %696
  %v702 = vadd.f32 %v608, %v691
  %v703 = vadd.f32 %v609, %v693
  %v704 = vadd.f32 %v610, %v695
  %v705 = vadd.f32 %v611, %v697
  %706 = vset.pattern.permute.xlu0 36
  %707 = vperm.xlu0 %706, %v182
  %v708 = vpop.permute.xlu0 %707
  %710 = vset.pattern.permute.xlu0 36
  %711 = vperm.xlu0 %710, %v183
  %v712 = vpop.permute.xlu0 %711
  %714 = vset.pattern.permute.xlu0 36
  %715 = vperm.xlu0 %714, %v184
  %v716 = vpop.permute.xlu0 %715
  %718 = vset.pattern.permute.xlu0 36
  %719 = vperm.xlu0 %718, %v185
  %v720 = vpop.permute.xlu0 %719
  %v722 = vmul.f32 %v662, %v708
  %v723 = vmul.f32 %v663, %v712
  %v724 = vmul.f32 %v664, %v716
  %v725 = vmul.f32 %v665, %v720
  %730 = vrot.lane.b32.xlu0 %v722, 123
  %v731 = vpop.permute.xlu0 %730
  %732 = vrot.lane.b32.xlu0 %v723, 123
  %v733 = vpop.permute.xlu0 %732
  %734 = vrot.lane.b32.xlu0 %v724, 123
  %v735 = vpop.permute.xlu0 %734
  %736 = vrot.lane.b32.xlu0 %v725, 123
  %v737 = vpop.permute.xlu0 %736
  %v742 = vadd.f32 %v648, %v731
  %v743 = vadd.f32 %v649, %v733
  %v744 = vadd.f32 %v650, %v735
  %v745 = vadd.f32 %v651, %v737
  %s746 = scalar_lea.vmem %s2, 6
  %v747 = vld [vmem:[%s746] sm:$0x1]
  %v749 = vlaneseq
  %v750 = vshrl.u32 %v749, 7
  %v751 = vsub.s32 0, %v750
  %v752 = vrot.slane %v747, %v751
  %753 = vrot.lane.b32.xlu0 %v752, 55
  %v754 = vpop.permute.xlu0 %753
  %v756 = vmul.f32 %v207, %v754
  %v757 = vmul.f32 %v208, %v754
  %v758 = vmul.f32 %v209, %v754
  %v759 = vmul.f32 %v210, %v754
  %760 = vset.pattern.permute.xlu0 6
  %761 = vperm.xlu0 %760, %v182
  %v762 = vpop.permute.xlu0 %761
  %764 = vset.pattern.permute.xlu0 6
  %765 = vperm.xlu0 %764, %v183
  %v766 = vpop.permute.xlu0 %765
  %768 = vset.pattern.permute.xlu0 6
  %769 = vperm.xlu0 %768, %v184
  %v770 = vpop.permute.xlu0 %769
  %772 = vset.pattern.permute.xlu0 6
  %773 = vperm.xlu0 %772, %v185
  %v774 = vpop.permute.xlu0 %773
  %v776 = vmul.f32 %v756, %v762
  %v777 = vmul.f32 %v757, %v766
  %v778 = vmul.f32 %v758, %v770
  %v779 = vmul.f32 %v759, %v774
  %784 = vrot.lane.b32.xlu0 %v776, 122
  %v785 = vpop.permute.xlu0 %784
  %786 = vrot.lane.b32.xlu0 %v777, 122
  %v787 = vpop.permute.xlu0 %786
  %788 = vrot.lane.b32.xlu0 %v778, 122
  %v789 = vpop.permute.xlu0 %788
  %790 = vrot.lane.b32.xlu0 %v779, 122
  %v791 = vpop.permute.xlu0 %790
  %v796 = vadd.f32 %v702, %v785
  %v797 = vadd.f32 %v703, %v787
  %v798 = vadd.f32 %v704, %v789
  %v799 = vadd.f32 %v705, %v791
  %800 = vset.pattern.permute.xlu0 37
  %801 = vperm.xlu0 %800, %v182
  %v802 = vpop.permute.xlu0 %801
  %804 = vset.pattern.permute.xlu0 37
  %805 = vperm.xlu0 %804, %v183
  %v806 = vpop.permute.xlu0 %805
  %808 = vset.pattern.permute.xlu0 37
  %809 = vperm.xlu0 %808, %v184
  %v810 = vpop.permute.xlu0 %809
  %812 = vset.pattern.permute.xlu0 37
  %813 = vperm.xlu0 %812, %v185
  %v814 = vpop.permute.xlu0 %813
  %v816 = vmul.f32 %v756, %v802
  %v817 = vmul.f32 %v757, %v806
  %v818 = vmul.f32 %v758, %v810
  %v819 = vmul.f32 %v759, %v814
  %824 = vrot.lane.b32.xlu0 %v816, 122
  %v825 = vpop.permute.xlu0 %824
  %826 = vrot.lane.b32.xlu0 %v817, 122
  %v827 = vpop.permute.xlu0 %826
  %828 = vrot.lane.b32.xlu0 %v818, 122
  %v829 = vpop.permute.xlu0 %828
  %830 = vrot.lane.b32.xlu0 %v819, 122
  %v831 = vpop.permute.xlu0 %830
  %v836 = vadd.f32 %v742, %v825
  %v837 = vadd.f32 %v743, %v827
  %v838 = vadd.f32 %v744, %v829
  %v839 = vadd.f32 %v745, %v831
  %s840 = scalar_lea.vmem %s2, 7
  %v841 = vld [vmem:[%s840] sm:$0x1]
  %v843 = vlaneseq
  %v844 = vshrl.u32 %v843, 7
  %v845 = vsub.s32 0, %v844
  %v846 = vrot.slane %v841, %v845
  %847 = vrot.lane.b32.xlu0 %v846, 56
  %v848 = vpop.permute.xlu0 %847
  %v850 = vmul.f32 %v207, %v848
  %v851 = vmul.f32 %v208, %v848
  %v852 = vmul.f32 %v209, %v848
  %v853 = vmul.f32 %v210, %v848
  %854 = vset.pattern.permute.xlu0 7
  %855 = vperm.xlu0 %854, %v182
  %v856 = vpop.permute.xlu0 %855
  %858 = vset.pattern.permute.xlu0 7
  %859 = vperm.xlu0 %858, %v183
  %v860 = vpop.permute.xlu0 %859
  %862 = vset.pattern.permute.xlu0 7
  %863 = vperm.xlu0 %862, %v184
  %v864 = vpop.permute.xlu0 %863
  %866 = vset.pattern.permute.xlu0 7
  %867 = vperm.xlu0 %866, %v185
  %v868 = vpop.permute.xlu0 %867
  %v870 = vmul.f32 %v850, %v856
  %v871 = vmul.f32 %v851, %v860
  %v872 = vmul.f32 %v852, %v864
  %v873 = vmul.f32 %v853, %v868
  %878 = vrot.lane.b32.xlu0 %v870, 121
  %v879 = vpop.permute.xlu0 %878
  %880 = vrot.lane.b32.xlu0 %v871, 121
  %v881 = vpop.permute.xlu0 %880
  %882 = vrot.lane.b32.xlu0 %v872, 121
  %v883 = vpop.permute.xlu0 %882
  %884 = vrot.lane.b32.xlu0 %v873, 121
  %v885 = vpop.permute.xlu0 %884
  %v890 = vadd.f32 %v796, %v879
  %v891 = vadd.f32 %v797, %v881
  %v892 = vadd.f32 %v798, %v883
  %v893 = vadd.f32 %v799, %v885
  %894 = vset.pattern.permute.xlu0 38
  %895 = vperm.xlu0 %894, %v182
  %v896 = vpop.permute.xlu0 %895
  %898 = vset.pattern.permute.xlu0 38
  %899 = vperm.xlu0 %898, %v183
  %v900 = vpop.permute.xlu0 %899
  %902 = vset.pattern.permute.xlu0 38
  %903 = vperm.xlu0 %902, %v184
  %v904 = vpop.permute.xlu0 %903
  %906 = vset.pattern.permute.xlu0 38
  %907 = vperm.xlu0 %906, %v185
  %v908 = vpop.permute.xlu0 %907
  %v910 = vmul.f32 %v850, %v896
  %v911 = vmul.f32 %v851, %v900
  %v912 = vmul.f32 %v852, %v904
  %v913 = vmul.f32 %v853, %v908
  %918 = vrot.lane.b32.xlu0 %v910, 121
  %v919 = vpop.permute.xlu0 %918
  %920 = vrot.lane.b32.xlu0 %v911, 121
  %v921 = vpop.permute.xlu0 %920
  %922 = vrot.lane.b32.xlu0 %v912, 121
  %v923 = vpop.permute.xlu0 %922
  %924 = vrot.lane.b32.xlu0 %v913, 121
  %v925 = vpop.permute.xlu0 %924
  %v930 = vadd.f32 %v836, %v919
  %v931 = vadd.f32 %v837, %v921
  %v932 = vadd.f32 %v838, %v923
  %v933 = vadd.f32 %v839, %v925
  %s934 = scalar_lea.vmem %s2, 8
  %v935 = vld [vmem:[%s934] sm:$0x1]
  %v937 = vlaneseq
  %v938 = vshrl.u32 %v937, 7
  %v939 = vsub.s32 0, %v938
  %v940 = vrot.slane %v935, %v939
  %941 = vrot.lane.b32.xlu0 %v940, 57
  %v942 = vpop.permute.xlu0 %941
  %v944 = vmul.f32 %v207, %v942
  %v945 = vmul.f32 %v208, %v942
  %v946 = vmul.f32 %v209, %v942
  %v947 = vmul.f32 %v210, %v942
  %948 = vset.pattern.permute.xlu0 8
  %949 = vperm.xlu0 %948, %v182
  %v950 = vpop.permute.xlu0 %949
  %952 = vset.pattern.permute.xlu0 8
  %953 = vperm.xlu0 %952, %v183
  %v954 = vpop.permute.xlu0 %953
  %956 = vset.pattern.permute.xlu0 8
  %957 = vperm.xlu0 %956, %v184
  %v958 = vpop.permute.xlu0 %957
  %960 = vset.pattern.permute.xlu0 8
  %961 = vperm.xlu0 %960, %v185
  %v962 = vpop.permute.xlu0 %961
  %v964 = vmul.f32 %v944, %v950
  %v965 = vmul.f32 %v945, %v954
  %v966 = vmul.f32 %v946, %v958
  %v967 = vmul.f32 %v947, %v962
  %972 = vrot.lane.b32.xlu0 %v964, 120
  %v973 = vpop.permute.xlu0 %972
  %974 = vrot.lane.b32.xlu0 %v965, 120
  %v975 = vpop.permute.xlu0 %974
  %976 = vrot.lane.b32.xlu0 %v966, 120
  %v977 = vpop.permute.xlu0 %976
  %978 = vrot.lane.b32.xlu0 %v967, 120
  %v979 = vpop.permute.xlu0 %978
  %v984 = vadd.f32 %v890, %v973
  %v985 = vadd.f32 %v891, %v975
  %v986 = vadd.f32 %v892, %v977
  %v987 = vadd.f32 %v893, %v979
  %988 = vset.pattern.permute.xlu0 39
  %989 = vperm.xlu0 %988, %v182
  %v990 = vpop.permute.xlu0 %989
  %992 = vset.pattern.permute.xlu0 39
  %993 = vperm.xlu0 %992, %v183
  %v994 = vpop.permute.xlu0 %993
  %996 = vset.pattern.permute.xlu0 39
  %997 = vperm.xlu0 %996, %v184
  %v998 = vpop.permute.xlu0 %997
  %1000 = vset.pattern.permute.xlu0 39
  %1001 = vperm.xlu0 %1000, %v185
  %v1002 = vpop.permute.xlu0 %1001
  %v1004 = vmul.f32 %v944, %v990
  %v1005 = vmul.f32 %v945, %v994
  %v1006 = vmul.f32 %v946, %v998
  %v1007 = vmul.f32 %v947, %v1002
  %1012 = vrot.lane.b32.xlu0 %v1004, 120
  %v1013 = vpop.permute.xlu0 %1012
  %1014 = vrot.lane.b32.xlu0 %v1005, 120
  %v1015 = vpop.permute.xlu0 %1014
  %1016 = vrot.lane.b32.xlu0 %v1006, 120
  %v1017 = vpop.permute.xlu0 %1016
  %1018 = vrot.lane.b32.xlu0 %v1007, 120
  %v1019 = vpop.permute.xlu0 %1018
  %v1024 = vadd.f32 %v930, %v1013
  %v1025 = vadd.f32 %v931, %v1015
  %v1026 = vadd.f32 %v932, %v1017
  %v1027 = vadd.f32 %v933, %v1019
  %s1028 = scalar_lea.vmem %s2, 9
  %v1029 = vld [vmem:[%s1028] sm:$0x1]
  %v1031 = vlaneseq
  %v1032 = vshrl.u32 %v1031, 7
  %v1033 = vsub.s32 0, %v1032
  %v1034 = vrot.slane %v1029, %v1033
  %1035 = vrot.lane.b32.xlu0 %v1034, 58
  %v1036 = vpop.permute.xlu0 %1035
  %v1038 = vmul.f32 %v207, %v1036
  %v1039 = vmul.f32 %v208, %v1036
  %v1040 = vmul.f32 %v209, %v1036
  %v1041 = vmul.f32 %v210, %v1036
  %1042 = vset.pattern.permute.xlu0 9
  %1043 = vperm.xlu0 %1042, %v182
  %v1044 = vpop.permute.xlu0 %1043
  %1046 = vset.pattern.permute.xlu0 9
  %1047 = vperm.xlu0 %1046, %v183
  %v1048 = vpop.permute.xlu0 %1047
  %1050 = vset.pattern.permute.xlu0 9
  %1051 = vperm.xlu0 %1050, %v184
  %v1052 = vpop.permute.xlu0 %1051
  %1054 = vset.pattern.permute.xlu0 9
  %1055 = vperm.xlu0 %1054, %v185
  %v1056 = vpop.permute.xlu0 %1055
  %v1058 = vmul.f32 %v1038, %v1044
  %v1059 = vmul.f32 %v1039, %v1048
  %v1060 = vmul.f32 %v1040, %v1052
  %v1061 = vmul.f32 %v1041, %v1056
  %1066 = vrot.lane.b32.xlu0 %v1058, 119
  %v1067 = vpop.permute.xlu0 %1066
  %1068 = vrot.lane.b32.xlu0 %v1059, 119
  %v1069 = vpop.permute.xlu0 %1068
  %1070 = vrot.lane.b32.xlu0 %v1060, 119
  %v1071 = vpop.permute.xlu0 %1070
  %1072 = vrot.lane.b32.xlu0 %v1061, 119
  %v1073 = vpop.permute.xlu0 %1072
  %v1078 = vadd.f32 %v984, %v1067
  %v1079 = vadd.f32 %v985, %v1069
  %v1080 = vadd.f32 %v986, %v1071
  %v1081 = vadd.f32 %v987, %v1073
  %1082 = vset.pattern.permute.xlu0 40
  %1083 = vperm.xlu0 %1082, %v182
  %v1084 = vpop.permute.xlu0 %1083
  %1086 = vset.pattern.permute.xlu0 40
  %1087 = vperm.xlu0 %1086, %v183
  %v1088 = vpop.permute.xlu0 %1087
  %1090 = vset.pattern.permute.xlu0 40
  %1091 = vperm.xlu0 %1090, %v184
  %v1092 = vpop.permute.xlu0 %1091
  %1094 = vset.pattern.permute.xlu0 40
  %1095 = vperm.xlu0 %1094, %v185
  %v1096 = vpop.permute.xlu0 %1095
  %v1098 = vmul.f32 %v1038, %v1084
  %v1099 = vmul.f32 %v1039, %v1088
  %v1100 = vmul.f32 %v1040, %v1092
  %v1101 = vmul.f32 %v1041, %v1096
  %1106 = vrot.lane.b32.xlu0 %v1098, 119
  %v1107 = vpop.permute.xlu0 %1106
  %1108 = vrot.lane.b32.xlu0 %v1099, 119
  %v1109 = vpop.permute.xlu0 %1108
  %1110 = vrot.lane.b32.xlu0 %v1100, 119
  %v1111 = vpop.permute.xlu0 %1110
  %1112 = vrot.lane.b32.xlu0 %v1101, 119
  %v1113 = vpop.permute.xlu0 %1112
  %v1118 = vadd.f32 %v1024, %v1107
  %v1119 = vadd.f32 %v1025, %v1109
  %v1120 = vadd.f32 %v1026, %v1111
  %v1121 = vadd.f32 %v1027, %v1113
  %s1122 = scalar_lea.vmem %s2, 10
  %v1123 = vld [vmem:[%s1122] sm:$0x1]
  %v1125 = vlaneseq
  %v1126 = vshrl.u32 %v1125, 7
  %v1127 = vsub.s32 0, %v1126
  %v1128 = vrot.slane %v1123, %v1127
  %1129 = vrot.lane.b32.xlu0 %v1128, 59
  %v1130 = vpop.permute.xlu0 %1129
  %v1132 = vmul.f32 %v207, %v1130
  %v1133 = vmul.f32 %v208, %v1130
  %v1134 = vmul.f32 %v209, %v1130
  %v1135 = vmul.f32 %v210, %v1130
  %1136 = vset.pattern.permute.xlu0 10
  %1137 = vperm.xlu0 %1136, %v182
  %v1138 = vpop.permute.xlu0 %1137
  %1140 = vset.pattern.permute.xlu0 10
  %1141 = vperm.xlu0 %1140, %v183
  %v1142 = vpop.permute.xlu0 %1141
  %1144 = vset.pattern.permute.xlu0 10
  %1145 = vperm.xlu0 %1144, %v184
  %v1146 = vpop.permute.xlu0 %1145
  %1148 = vset.pattern.permute.xlu0 10
  %1149 = vperm.xlu0 %1148, %v185
  %v1150 = vpop.permute.xlu0 %1149
  %v1152 = vmul.f32 %v1132, %v1138
  %v1153 = vmul.f32 %v1133, %v1142
  %v1154 = vmul.f32 %v1134, %v1146
  %v1155 = vmul.f32 %v1135, %v1150
  %1160 = vrot.lane.b32.xlu0 %v1152, 118
  %v1161 = vpop.permute.xlu0 %1160
  %1162 = vrot.lane.b32.xlu0 %v1153, 118
  %v1163 = vpop.permute.xlu0 %1162
  %1164 = vrot.lane.b32.xlu0 %v1154, 118
  %v1165 = vpop.permute.xlu0 %1164
  %1166 = vrot.lane.b32.xlu0 %v1155, 118
  %v1167 = vpop.permute.xlu0 %1166
  %v1172 = vadd.f32 %v1078, %v1161
  %v1173 = vadd.f32 %v1079, %v1163
  %v1174 = vadd.f32 %v1080, %v1165
  %v1175 = vadd.f32 %v1081, %v1167
  %1176 = vset.pattern.permute.xlu0 41
  %1177 = vperm.xlu0 %1176, %v182
  %v1178 = vpop.permute.xlu0 %1177
  %1180 = vset.pattern.permute.xlu0 41
  %1181 = vperm.xlu0 %1180, %v183
  %v1182 = vpop.permute.xlu0 %1181
  %1184 = vset.pattern.permute.xlu0 41
  %1185 = vperm.xlu0 %1184, %v184
  %v1186 = vpop.permute.xlu0 %1185
  %1188 = vset.pattern.permute.xlu0 41
  %1189 = vperm.xlu0 %1188, %v185
  %v1190 = vpop.permute.xlu0 %1189
  %v1192 = vmul.f32 %v1132, %v1178
  %v1193 = vmul.f32 %v1133, %v1182
  %v1194 = vmul.f32 %v1134, %v1186
  %v1195 = vmul.f32 %v1135, %v1190
  %1200 = vrot.lane.b32.xlu0 %v1192, 118
  %v1201 = vpop.permute.xlu0 %1200
  %1202 = vrot.lane.b32.xlu0 %v1193, 118
  %v1203 = vpop.permute.xlu0 %1202
  %1204 = vrot.lane.b32.xlu0 %v1194, 118
  %v1205 = vpop.permute.xlu0 %1204
  %1206 = vrot.lane.b32.xlu0 %v1195, 118
  %v1207 = vpop.permute.xlu0 %1206
  %v1212 = vadd.f32 %v1118, %v1201
  %v1213 = vadd.f32 %v1119, %v1203
  %v1214 = vadd.f32 %v1120, %v1205
  %v1215 = vadd.f32 %v1121, %v1207
  %s1216 = scalar_lea.vmem %s2, 11
  %v1217 = vld [vmem:[%s1216] sm:$0x1]
  %v1219 = vlaneseq
  %v1220 = vshrl.u32 %v1219, 7
  %v1221 = vsub.s32 0, %v1220
  %v1222 = vrot.slane %v1217, %v1221
  %1223 = vrot.lane.b32.xlu0 %v1222, 60
  %v1224 = vpop.permute.xlu0 %1223
  %v1226 = vmul.f32 %v207, %v1224
  %v1227 = vmul.f32 %v208, %v1224
  %v1228 = vmul.f32 %v209, %v1224
  %v1229 = vmul.f32 %v210, %v1224
  %1230 = vset.pattern.permute.xlu0 11
  %1231 = vperm.xlu0 %1230, %v182
  %v1232 = vpop.permute.xlu0 %1231
  %1234 = vset.pattern.permute.xlu0 11
  %1235 = vperm.xlu0 %1234, %v183
  %v1236 = vpop.permute.xlu0 %1235
  %1238 = vset.pattern.permute.xlu0 11
  %1239 = vperm.xlu0 %1238, %v184
  %v1240 = vpop.permute.xlu0 %1239
  %1242 = vset.pattern.permute.xlu0 11
  %1243 = vperm.xlu0 %1242, %v185
  %v1244 = vpop.permute.xlu0 %1243
  %v1246 = vmul.f32 %v1226, %v1232
  %v1247 = vmul.f32 %v1227, %v1236
  %v1248 = vmul.f32 %v1228, %v1240
  %v1249 = vmul.f32 %v1229, %v1244
  %1254 = vrot.lane.b32.xlu0 %v1246, 117
  %v1255 = vpop.permute.xlu0 %1254
  %1256 = vrot.lane.b32.xlu0 %v1247, 117
  %v1257 = vpop.permute.xlu0 %1256
  %1258 = vrot.lane.b32.xlu0 %v1248, 117
  %v1259 = vpop.permute.xlu0 %1258
  %1260 = vrot.lane.b32.xlu0 %v1249, 117
  %v1261 = vpop.permute.xlu0 %1260
  %v1266 = vadd.f32 %v1172, %v1255
  %v1267 = vadd.f32 %v1173, %v1257
  %v1268 = vadd.f32 %v1174, %v1259
  %v1269 = vadd.f32 %v1175, %v1261
  %1270 = vset.pattern.permute.xlu0 42
  %1271 = vperm.xlu0 %1270, %v182
  %v1272 = vpop.permute.xlu0 %1271
  %1274 = vset.pattern.permute.xlu0 42
  %1275 = vperm.xlu0 %1274, %v183
  %v1276 = vpop.permute.xlu0 %1275
  %1278 = vset.pattern.permute.xlu0 42
  %1279 = vperm.xlu0 %1278, %v184
  %v1280 = vpop.permute.xlu0 %1279
  %1282 = vset.pattern.permute.xlu0 42
  %1283 = vperm.xlu0 %1282, %v185
  %v1284 = vpop.permute.xlu0 %1283
  %v1286 = vmul.f32 %v1226, %v1272
  %v1287 = vmul.f32 %v1227, %v1276
  %v1288 = vmul.f32 %v1228, %v1280
  %v1289 = vmul.f32 %v1229, %v1284
  %1294 = vrot.lane.b32.xlu0 %v1286, 117
  %v1295 = vpop.permute.xlu0 %1294
  %1296 = vrot.lane.b32.xlu0 %v1287, 117
  %v1297 = vpop.permute.xlu0 %1296
  %1298 = vrot.lane.b32.xlu0 %v1288, 117
  %v1299 = vpop.permute.xlu0 %1298
  %1300 = vrot.lane.b32.xlu0 %v1289, 117
  %v1301 = vpop.permute.xlu0 %1300
  %v1306 = vadd.f32 %v1212, %v1295
  %v1307 = vadd.f32 %v1213, %v1297
  %v1308 = vadd.f32 %v1214, %v1299
  %v1309 = vadd.f32 %v1215, %v1301
  %s1310 = scalar_lea.vmem %s2, 12
  %v1311 = vld [vmem:[%s1310] sm:$0x1]
  %v1313 = vlaneseq
  %v1314 = vshrl.u32 %v1313, 7
  %v1315 = vsub.s32 0, %v1314
  %v1316 = vrot.slane %v1311, %v1315
  %1317 = vrot.lane.b32.xlu0 %v1316, 61
  %v1318 = vpop.permute.xlu0 %1317
  %v1320 = vmul.f32 %v207, %v1318
  %v1321 = vmul.f32 %v208, %v1318
  %v1322 = vmul.f32 %v209, %v1318
  %v1323 = vmul.f32 %v210, %v1318
  %1324 = vset.pattern.permute.xlu0 12
  %1325 = vperm.xlu0 %1324, %v182
  %v1326 = vpop.permute.xlu0 %1325
  %1328 = vset.pattern.permute.xlu0 12
  %1329 = vperm.xlu0 %1328, %v183
  %v1330 = vpop.permute.xlu0 %1329
  %1332 = vset.pattern.permute.xlu0 12
  %1333 = vperm.xlu0 %1332, %v184
  %v1334 = vpop.permute.xlu0 %1333
  %1336 = vset.pattern.permute.xlu0 12
  %1337 = vperm.xlu0 %1336, %v185
  %v1338 = vpop.permute.xlu0 %1337
  %v1340 = vmul.f32 %v1320, %v1326
  %v1341 = vmul.f32 %v1321, %v1330
  %v1342 = vmul.f32 %v1322, %v1334
  %v1343 = vmul.f32 %v1323, %v1338
  %1348 = vrot.lane.b32.xlu0 %v1340, 116
  %v1349 = vpop.permute.xlu0 %1348
  %1350 = vrot.lane.b32.xlu0 %v1341, 116
  %v1351 = vpop.permute.xlu0 %1350
  %1352 = vrot.lane.b32.xlu0 %v1342, 116
  %v1353 = vpop.permute.xlu0 %1352
  %1354 = vrot.lane.b32.xlu0 %v1343, 116
  %v1355 = vpop.permute.xlu0 %1354
  %v1360 = vadd.f32 %v1266, %v1349
  %v1361 = vadd.f32 %v1267, %v1351
  %v1362 = vadd.f32 %v1268, %v1353
  %v1363 = vadd.f32 %v1269, %v1355
  %1364 = vset.pattern.permute.xlu0 43
  %1365 = vperm.xlu0 %1364, %v182
  %v1366 = vpop.permute.xlu0 %1365
  %1368 = vset.pattern.permute.xlu0 43
  %1369 = vperm.xlu0 %1368, %v183
  %v1370 = vpop.permute.xlu0 %1369
  %1372 = vset.pattern.permute.xlu0 43
  %1373 = vperm.xlu0 %1372, %v184
  %v1374 = vpop.permute.xlu0 %1373
  %1376 = vset.pattern.permute.xlu0 43
  %1377 = vperm.xlu0 %1376, %v185
  %v1378 = vpop.permute.xlu0 %1377
  %v1380 = vmul.f32 %v1320, %v1366
  %v1381 = vmul.f32 %v1321, %v1370
  %v1382 = vmul.f32 %v1322, %v1374
  %v1383 = vmul.f32 %v1323, %v1378
  %1388 = vrot.lane.b32.xlu0 %v1380, 116
  %v1389 = vpop.permute.xlu0 %1388
  %1390 = vrot.lane.b32.xlu0 %v1381, 116
  %v1391 = vpop.permute.xlu0 %1390
  %1392 = vrot.lane.b32.xlu0 %v1382, 116
  %v1393 = vpop.permute.xlu0 %1392
  %1394 = vrot.lane.b32.xlu0 %v1383, 116
  %v1395 = vpop.permute.xlu0 %1394
  %v1400 = vadd.f32 %v1306, %v1389
  %v1401 = vadd.f32 %v1307, %v1391
  %v1402 = vadd.f32 %v1308, %v1393
  %v1403 = vadd.f32 %v1309, %v1395
  %s1404 = scalar_lea.vmem %s2, 13
  %v1405 = vld [vmem:[%s1404] sm:$0x1]
  %v1407 = vlaneseq
  %v1408 = vshrl.u32 %v1407, 7
  %v1409 = vsub.s32 0, %v1408
  %v1410 = vrot.slane %v1405, %v1409
  %1411 = vrot.lane.b32.xlu0 %v1410, 62
  %v1412 = vpop.permute.xlu0 %1411
  %v1414 = vmul.f32 %v207, %v1412
  %v1415 = vmul.f32 %v208, %v1412
  %v1416 = vmul.f32 %v209, %v1412
  %v1417 = vmul.f32 %v210, %v1412
  %1418 = vset.pattern.permute.xlu0 13
  %1419 = vperm.xlu0 %1418, %v182
  %v1420 = vpop.permute.xlu0 %1419
  %1422 = vset.pattern.permute.xlu0 13
  %1423 = vperm.xlu0 %1422, %v183
  %v1424 = vpop.permute.xlu0 %1423
  %1426 = vset.pattern.permute.xlu0 13
  %1427 = vperm.xlu0 %1426, %v184
  %v1428 = vpop.permute.xlu0 %1427
  %1430 = vset.pattern.permute.xlu0 13
  %1431 = vperm.xlu0 %1430, %v185
  %v1432 = vpop.permute.xlu0 %1431
  %v1434 = vmul.f32 %v1414, %v1420
  %v1435 = vmul.f32 %v1415, %v1424
  %v1436 = vmul.f32 %v1416, %v1428
  %v1437 = vmul.f32 %v1417, %v1432
  %1442 = vrot.lane.b32.xlu0 %v1434, 115
  %v1443 = vpop.permute.xlu0 %1442
  %1444 = vrot.lane.b32.xlu0 %v1435, 115
  %v1445 = vpop.permute.xlu0 %1444
  %1446 = vrot.lane.b32.xlu0 %v1436, 115
  %v1447 = vpop.permute.xlu0 %1446
  %1448 = vrot.lane.b32.xlu0 %v1437, 115
  %v1449 = vpop.permute.xlu0 %1448
  %v1454 = vadd.f32 %v1360, %v1443
  %v1455 = vadd.f32 %v1361, %v1445
  %v1456 = vadd.f32 %v1362, %v1447
  %v1457 = vadd.f32 %v1363, %v1449
  %1458 = vset.pattern.permute.xlu0 44
  %1459 = vperm.xlu0 %1458, %v182
  %v1460 = vpop.permute.xlu0 %1459
  %1462 = vset.pattern.permute.xlu0 44
  %1463 = vperm.xlu0 %1462, %v183
  %v1464 = vpop.permute.xlu0 %1463
  %1466 = vset.pattern.permute.xlu0 44
  %1467 = vperm.xlu0 %1466, %v184
  %v1468 = vpop.permute.xlu0 %1467
  %1470 = vset.pattern.permute.xlu0 44
  %1471 = vperm.xlu0 %1470, %v185
  %v1472 = vpop.permute.xlu0 %1471
  %v1474 = vmul.f32 %v1414, %v1460
  %v1475 = vmul.f32 %v1415, %v1464
  %v1476 = vmul.f32 %v1416, %v1468
  %v1477 = vmul.f32 %v1417, %v1472
  %1482 = vrot.lane.b32.xlu0 %v1474, 115
  %v1483 = vpop.permute.xlu0 %1482
  %1484 = vrot.lane.b32.xlu0 %v1475, 115
  %v1485 = vpop.permute.xlu0 %1484
  %1486 = vrot.lane.b32.xlu0 %v1476, 115
  %v1487 = vpop.permute.xlu0 %1486
  %1488 = vrot.lane.b32.xlu0 %v1477, 115
  %v1489 = vpop.permute.xlu0 %1488
  %v1494 = vadd.f32 %v1400, %v1483
  %v1495 = vadd.f32 %v1401, %v1485
  %v1496 = vadd.f32 %v1402, %v1487
  %v1497 = vadd.f32 %v1403, %v1489
  %s1498 = scalar_lea.vmem %s2, 14
  %v1499 = vld [vmem:[%s1498] sm:$0x1]
  %v1501 = vlaneseq
  %v1502 = vshrl.u32 %v1501, 7
  %v1503 = vsub.s32 0, %v1502
  %v1504 = vrot.slane %v1499, %v1503
  %1505 = vrot.lane.b32.xlu0 %v1504, 63
  %v1506 = vpop.permute.xlu0 %1505
  %v1508 = vmul.f32 %v207, %v1506
  %v1509 = vmul.f32 %v208, %v1506
  %v1510 = vmul.f32 %v209, %v1506
  %v1511 = vmul.f32 %v210, %v1506
  %1512 = vset.pattern.permute.xlu0 14
  %1513 = vperm.xlu0 %1512, %v182
  %v1514 = vpop.permute.xlu0 %1513
  %1516 = vset.pattern.permute.xlu0 14
  %1517 = vperm.xlu0 %1516, %v183
  %v1518 = vpop.permute.xlu0 %1517
  %1520 = vset.pattern.permute.xlu0 14
  %1521 = vperm.xlu0 %1520, %v184
  %v1522 = vpop.permute.xlu0 %1521
  %1524 = vset.pattern.permute.xlu0 14
  %1525 = vperm.xlu0 %1524, %v185
  %v1526 = vpop.permute.xlu0 %1525
  %v1528 = vmul.f32 %v1508, %v1514
  %v1529 = vmul.f32 %v1509, %v1518
  %v1530 = vmul.f32 %v1510, %v1522
  %v1531 = vmul.f32 %v1511, %v1526
  %1536 = vrot.lane.b32.xlu0 %v1528, 114
  %v1537 = vpop.permute.xlu0 %1536
  %1538 = vrot.lane.b32.xlu0 %v1529, 114
  %v1539 = vpop.permute.xlu0 %1538
  %1540 = vrot.lane.b32.xlu0 %v1530, 114
  %v1541 = vpop.permute.xlu0 %1540
  %1542 = vrot.lane.b32.xlu0 %v1531, 114
  %v1543 = vpop.permute.xlu0 %1542
  %v1548 = vadd.f32 %v1454, %v1537
  %v1549 = vadd.f32 %v1455, %v1539
  %v1550 = vadd.f32 %v1456, %v1541
  %v1551 = vadd.f32 %v1457, %v1543
  %1552 = vset.pattern.permute.xlu0 45
  %1553 = vperm.xlu0 %1552, %v182
  %v1554 = vpop.permute.xlu0 %1553
  %1556 = vset.pattern.permute.xlu0 45
  %1557 = vperm.xlu0 %1556, %v183
  %v1558 = vpop.permute.xlu0 %1557
  %1560 = vset.pattern.permute.xlu0 45
  %1561 = vperm.xlu0 %1560, %v184
  %v1562 = vpop.permute.xlu0 %1561
  %1564 = vset.pattern.permute.xlu0 45
  %1565 = vperm.xlu0 %1564, %v185
  %v1566 = vpop.permute.xlu0 %1565
  %v1568 = vmul.f32 %v1508, %v1554
  %v1569 = vmul.f32 %v1509, %v1558
  %v1570 = vmul.f32 %v1510, %v1562
  %v1571 = vmul.f32 %v1511, %v1566
  %1576 = vrot.lane.b32.xlu0 %v1568, 114
  %v1577 = vpop.permute.xlu0 %1576
  %1578 = vrot.lane.b32.xlu0 %v1569, 114
  %v1579 = vpop.permute.xlu0 %1578
  %1580 = vrot.lane.b32.xlu0 %v1570, 114
  %v1581 = vpop.permute.xlu0 %1580
  %1582 = vrot.lane.b32.xlu0 %v1571, 114
  %v1583 = vpop.permute.xlu0 %1582
  %v1588 = vadd.f32 %v1494, %v1577
  %v1589 = vadd.f32 %v1495, %v1579
  %v1590 = vadd.f32 %v1496, %v1581
  %v1591 = vadd.f32 %v1497, %v1583
  %1592 = vset.pattern.permute.xlu0 15
  %1593 = vperm.xlu0 %1592, %v182
  %v1594 = vpop.permute.xlu0 %1593
  %1596 = vset.pattern.permute.xlu0 15
  %1597 = vperm.xlu0 %1596, %v183
  %v1598 = vpop.permute.xlu0 %1597
  %1600 = vset.pattern.permute.xlu0 15
  %1601 = vperm.xlu0 %1600, %v184
  %v1602 = vpop.permute.xlu0 %1601
  %1604 = vset.pattern.permute.xlu0 15
  %1605 = vperm.xlu0 %1604, %v185
  %v1606 = vpop.permute.xlu0 %1605
  %v1608 = vmul.f32 %v107, %v1594
  %v1609 = vmul.f32 %v112, %v1598
  %v1610 = vmul.f32 %v117, %v1602
  %v1611 = vmul.f32 %v122, %v1606
  %1616 = vrot.lane.b32.xlu0 %v1608, 49
  %v1617 = vpop.permute.xlu0 %1616
  %1618 = vrot.lane.b32.xlu0 %v1609, 49
  %v1619 = vpop.permute.xlu0 %1618
  %1620 = vrot.lane.b32.xlu0 %v1610, 49
  %v1621 = vpop.permute.xlu0 %1620
  %1622 = vrot.lane.b32.xlu0 %v1611, 49
  %v1623 = vpop.permute.xlu0 %1622
  %v1628 = vadd.f32 %v1548, %v1617
  %v1629 = vadd.f32 %v1549, %v1619
  %v1630 = vadd.f32 %v1550, %v1621
  %v1631 = vadd.f32 %v1551, %v1623
  %1632 = vset.pattern.permute.xlu0 46
  %1633 = vperm.xlu0 %1632, %v182
  %v1634 = vpop.permute.xlu0 %1633
  %1636 = vset.pattern.permute.xlu0 46
  %1637 = vperm.xlu0 %1636, %v183
  %v1638 = vpop.permute.xlu0 %1637
  %1640 = vset.pattern.permute.xlu0 46
  %1641 = vperm.xlu0 %1640, %v184
  %v1642 = vpop.permute.xlu0 %1641
  %1644 = vset.pattern.permute.xlu0 46
  %1645 = vperm.xlu0 %1644, %v185
  %v1646 = vpop.permute.xlu0 %1645
  %v1648 = vmul.f32 %v107, %v1634
  %v1649 = vmul.f32 %v112, %v1638
  %v1650 = vmul.f32 %v117, %v1642
  %v1651 = vmul.f32 %v122, %v1646
  %1656 = vrot.lane.b32.xlu0 %v1648, 49
  %v1657 = vpop.permute.xlu0 %1656
  %1658 = vrot.lane.b32.xlu0 %v1649, 49
  %v1659 = vpop.permute.xlu0 %1658
  %1660 = vrot.lane.b32.xlu0 %v1650, 49
  %v1661 = vpop.permute.xlu0 %1660
  %1662 = vrot.lane.b32.xlu0 %v1651, 49
  %v1663 = vpop.permute.xlu0 %1662
  %v1668 = vadd.f32 %v1588, %v1657
  %v1669 = vadd.f32 %v1589, %v1659
  %v1670 = vadd.f32 %v1590, %v1661
  %v1671 = vadd.f32 %v1591, %v1663
  %s1672 = scalar_lea.vmem %s2, 16
  %v1673 = vld [vmem:[%s1672] sm:$0x1]
  %v1675 = vlaneseq
  %v1676 = vshrl.u32 %v1675, 7
  %v1677 = vsub.s32 0, %v1676
  %v1678 = vrot.slane %v1673, %v1677
  %1679 = vrot.lane.b32.xlu0 %v1678, 1
  %v1680 = vpop.permute.xlu0 %1679
  %v1682 = vmul.f32 %v207, %v1680
  %v1683 = vmul.f32 %v208, %v1680
  %v1684 = vmul.f32 %v209, %v1680
  %v1685 = vmul.f32 %v210, %v1680
  %1686 = vset.pattern.permute.xlu0 16
  %1687 = vperm.xlu0 %1686, %v182
  %v1688 = vpop.permute.xlu0 %1687
  %1690 = vset.pattern.permute.xlu0 16
  %1691 = vperm.xlu0 %1690, %v183
  %v1692 = vpop.permute.xlu0 %1691
  %1694 = vset.pattern.permute.xlu0 16
  %1695 = vperm.xlu0 %1694, %v184
  %v1696 = vpop.permute.xlu0 %1695
  %1698 = vset.pattern.permute.xlu0 16
  %1699 = vperm.xlu0 %1698, %v185
  %v1700 = vpop.permute.xlu0 %1699
  %v1702 = vmul.f32 %v1682, %v1688
  %v1703 = vmul.f32 %v1683, %v1692
  %v1704 = vmul.f32 %v1684, %v1696
  %v1705 = vmul.f32 %v1685, %v1700
  %1710 = vrot.lane.b32.xlu0 %v1702, 48
  %v1711 = vpop.permute.xlu0 %1710
  %1712 = vrot.lane.b32.xlu0 %v1703, 48
  %v1713 = vpop.permute.xlu0 %1712
  %1714 = vrot.lane.b32.xlu0 %v1704, 48
  %v1715 = vpop.permute.xlu0 %1714
  %1716 = vrot.lane.b32.xlu0 %v1705, 48
  %v1717 = vpop.permute.xlu0 %1716
  %v1722 = vadd.f32 %v1628, %v1711
  %v1723 = vadd.f32 %v1629, %v1713
  %v1724 = vadd.f32 %v1630, %v1715
  %v1725 = vadd.f32 %v1631, %v1717
  %1726 = vset.pattern.permute.xlu0 47
  %1727 = vperm.xlu0 %1726, %v182
  %v1728 = vpop.permute.xlu0 %1727
  %1730 = vset.pattern.permute.xlu0 47
  %1731 = vperm.xlu0 %1730, %v183
  %v1732 = vpop.permute.xlu0 %1731
  %1734 = vset.pattern.permute.xlu0 47
  %1735 = vperm.xlu0 %1734, %v184
  %v1736 = vpop.permute.xlu0 %1735
  %1738 = vset.pattern.permute.xlu0 47
  %1739 = vperm.xlu0 %1738, %v185
  %v1740 = vpop.permute.xlu0 %1739
  %v1742 = vmul.f32 %v1682, %v1728
  %v1743 = vmul.f32 %v1683, %v1732
  %v1744 = vmul.f32 %v1684, %v1736
  %v1745 = vmul.f32 %v1685, %v1740
  %1750 = vrot.lane.b32.xlu0 %v1742, 48
  %v1751 = vpop.permute.xlu0 %1750
  %1752 = vrot.lane.b32.xlu0 %v1743, 48
  %v1753 = vpop.permute.xlu0 %1752
  %1754 = vrot.lane.b32.xlu0 %v1744, 48
  %v1755 = vpop.permute.xlu0 %1754
  %1756 = vrot.lane.b32.xlu0 %v1745, 48
  %v1757 = vpop.permute.xlu0 %1756
  %v1762 = vadd.f32 %v1668, %v1751
  %v1763 = vadd.f32 %v1669, %v1753
  %v1764 = vadd.f32 %v1670, %v1755
  %v1765 = vadd.f32 %v1671, %v1757
  %s1766 = scalar_lea.vmem %s2, 17
  %v1767 = vld [vmem:[%s1766] sm:$0x1]
  %v1769 = vlaneseq
  %v1770 = vshrl.u32 %v1769, 7
  %v1771 = vsub.s32 0, %v1770
  %v1772 = vrot.slane %v1767, %v1771
  %1773 = vrot.lane.b32.xlu0 %v1772, 2
  %v1774 = vpop.permute.xlu0 %1773
  %v1776 = vmul.f32 %v207, %v1774
  %v1777 = vmul.f32 %v208, %v1774
  %v1778 = vmul.f32 %v209, %v1774
  %v1779 = vmul.f32 %v210, %v1774
  %1780 = vset.pattern.permute.xlu0 17
  %1781 = vperm.xlu0 %1780, %v182
  %v1782 = vpop.permute.xlu0 %1781
  %1784 = vset.pattern.permute.xlu0 17
  %1785 = vperm.xlu0 %1784, %v183
  %v1786 = vpop.permute.xlu0 %1785
  %1788 = vset.pattern.permute.xlu0 17
  %1789 = vperm.xlu0 %1788, %v184
  %v1790 = vpop.permute.xlu0 %1789
  %1792 = vset.pattern.permute.xlu0 17
  %1793 = vperm.xlu0 %1792, %v185
  %v1794 = vpop.permute.xlu0 %1793
  %v1796 = vmul.f32 %v1776, %v1782
  %v1797 = vmul.f32 %v1777, %v1786
  %v1798 = vmul.f32 %v1778, %v1790
  %v1799 = vmul.f32 %v1779, %v1794
  %1804 = vrot.lane.b32.xlu0 %v1796, 47
  %v1805 = vpop.permute.xlu0 %1804
  %1806 = vrot.lane.b32.xlu0 %v1797, 47
  %v1807 = vpop.permute.xlu0 %1806
  %1808 = vrot.lane.b32.xlu0 %v1798, 47
  %v1809 = vpop.permute.xlu0 %1808
  %1810 = vrot.lane.b32.xlu0 %v1799, 47
  %v1811 = vpop.permute.xlu0 %1810
  %v1816 = vadd.f32 %v1722, %v1805
  %v1817 = vadd.f32 %v1723, %v1807
  %v1818 = vadd.f32 %v1724, %v1809
  %v1819 = vadd.f32 %v1725, %v1811
  %1820 = vset.pattern.permute.xlu0 48
  %1821 = vperm.xlu0 %1820, %v182
  %v1822 = vpop.permute.xlu0 %1821
  %1824 = vset.pattern.permute.xlu0 48
  %1825 = vperm.xlu0 %1824, %v183
  %v1826 = vpop.permute.xlu0 %1825
  %1828 = vset.pattern.permute.xlu0 48
  %1829 = vperm.xlu0 %1828, %v184
  %v1830 = vpop.permute.xlu0 %1829
  %1832 = vset.pattern.permute.xlu0 48
  %1833 = vperm.xlu0 %1832, %v185
  %v1834 = vpop.permute.xlu0 %1833
  %v1836 = vmul.f32 %v1776, %v1822
  %v1837 = vmul.f32 %v1777, %v1826
  %v1838 = vmul.f32 %v1778, %v1830
  %v1839 = vmul.f32 %v1779, %v1834
  %1844 = vrot.lane.b32.xlu0 %v1836, 47
  %v1845 = vpop.permute.xlu0 %1844
  %1846 = vrot.lane.b32.xlu0 %v1837, 47
  %v1847 = vpop.permute.xlu0 %1846
  %1848 = vrot.lane.b32.xlu0 %v1838, 47
  %v1849 = vpop.permute.xlu0 %1848
  %1850 = vrot.lane.b32.xlu0 %v1839, 47
  %v1851 = vpop.permute.xlu0 %1850
  %v1856 = vadd.f32 %v1762, %v1845
  %v1857 = vadd.f32 %v1763, %v1847
  %v1858 = vadd.f32 %v1764, %v1849
  %v1859 = vadd.f32 %v1765, %v1851
  %s1860 = scalar_lea.vmem %s2, 18
  %v1861 = vld [vmem:[%s1860] sm:$0x1]
  %v1863 = vlaneseq
  %v1864 = vshrl.u32 %v1863, 7
  %v1865 = vsub.s32 0, %v1864
  %v1866 = vrot.slane %v1861, %v1865
  %1867 = vrot.lane.b32.xlu0 %v1866, 3
  %v1868 = vpop.permute.xlu0 %1867
  %v1870 = vmul.f32 %v207, %v1868
  %v1871 = vmul.f32 %v208, %v1868
  %v1872 = vmul.f32 %v209, %v1868
  %v1873 = vmul.f32 %v210, %v1868
  %1874 = vset.pattern.permute.xlu0 18
  %1875 = vperm.xlu0 %1874, %v182
  %v1876 = vpop.permute.xlu0 %1875
  %1878 = vset.pattern.permute.xlu0 18
  %1879 = vperm.xlu0 %1878, %v183
  %v1880 = vpop.permute.xlu0 %1879
  %1882 = vset.pattern.permute.xlu0 18
  %1883 = vperm.xlu0 %1882, %v184
  %v1884 = vpop.permute.xlu0 %1883
  %1886 = vset.pattern.permute.xlu0 18
  %1887 = vperm.xlu0 %1886, %v185
  %v1888 = vpop.permute.xlu0 %1887
  %v1890 = vmul.f32 %v1870, %v1876
  %v1891 = vmul.f32 %v1871, %v1880
  %v1892 = vmul.f32 %v1872, %v1884
  %v1893 = vmul.f32 %v1873, %v1888
  %1898 = vrot.lane.b32.xlu0 %v1890, 46
  %v1899 = vpop.permute.xlu0 %1898
  %1900 = vrot.lane.b32.xlu0 %v1891, 46
  %v1901 = vpop.permute.xlu0 %1900
  %1902 = vrot.lane.b32.xlu0 %v1892, 46
  %v1903 = vpop.permute.xlu0 %1902
  %1904 = vrot.lane.b32.xlu0 %v1893, 46
  %v1905 = vpop.permute.xlu0 %1904
  %v1910 = vadd.f32 %v1816, %v1899
  %v1911 = vadd.f32 %v1817, %v1901
  %v1912 = vadd.f32 %v1818, %v1903
  %v1913 = vadd.f32 %v1819, %v1905
  %1914 = vset.pattern.permute.xlu0 49
  %1915 = vperm.xlu0 %1914, %v182
  %v1916 = vpop.permute.xlu0 %1915
  %1918 = vset.pattern.permute.xlu0 49
  %1919 = vperm.xlu0 %1918, %v183
  %v1920 = vpop.permute.xlu0 %1919
  %1922 = vset.pattern.permute.xlu0 49
  %1923 = vperm.xlu0 %1922, %v184
  %v1924 = vpop.permute.xlu0 %1923
  %1926 = vset.pattern.permute.xlu0 49
  %1927 = vperm.xlu0 %1926, %v185
  %v1928 = vpop.permute.xlu0 %1927
  %v1930 = vmul.f32 %v1870, %v1916
  %v1931 = vmul.f32 %v1871, %v1920
  %v1932 = vmul.f32 %v1872, %v1924
  %v1933 = vmul.f32 %v1873, %v1928
  %1938 = vrot.lane.b32.xlu0 %v1930, 46
  %v1939 = vpop.permute.xlu0 %1938
  %1940 = vrot.lane.b32.xlu0 %v1931, 46
  %v1941 = vpop.permute.xlu0 %1940
  %1942 = vrot.lane.b32.xlu0 %v1932, 46
  %v1943 = vpop.permute.xlu0 %1942
  %1944 = vrot.lane.b32.xlu0 %v1933, 46
  %v1945 = vpop.permute.xlu0 %1944
  %v1950 = vadd.f32 %v1856, %v1939
  %v1951 = vadd.f32 %v1857, %v1941
  %v1952 = vadd.f32 %v1858, %v1943
  %v1953 = vadd.f32 %v1859, %v1945
  %s1954 = scalar_lea.vmem %s2, 19
  %v1955 = vld [vmem:[%s1954] sm:$0x1]
  %v1957 = vlaneseq
  %v1958 = vshrl.u32 %v1957, 7
  %v1959 = vsub.s32 0, %v1958
  %v1960 = vrot.slane %v1955, %v1959
  %1961 = vrot.lane.b32.xlu0 %v1960, 4
  %v1962 = vpop.permute.xlu0 %1961
  %v1964 = vmul.f32 %v207, %v1962
  %v1965 = vmul.f32 %v208, %v1962
  %v1966 = vmul.f32 %v209, %v1962
  %v1967 = vmul.f32 %v210, %v1962
  %1968 = vset.pattern.permute.xlu0 19
  %1969 = vperm.xlu0 %1968, %v182
  %v1970 = vpop.permute.xlu0 %1969
  %1972 = vset.pattern.permute.xlu0 19
  %1973 = vperm.xlu0 %1972, %v183
  %v1974 = vpop.permute.xlu0 %1973
  %1976 = vset.pattern.permute.xlu0 19
  %1977 = vperm.xlu0 %1976, %v184
  %v1978 = vpop.permute.xlu0 %1977
  %1980 = vset.pattern.permute.xlu0 19
  %1981 = vperm.xlu0 %1980, %v185
  %v1982 = vpop.permute.xlu0 %1981
  %v1984 = vmul.f32 %v1964, %v1970
  %v1985 = vmul.f32 %v1965, %v1974
  %v1986 = vmul.f32 %v1966, %v1978
  %v1987 = vmul.f32 %v1967, %v1982
  %1992 = vrot.lane.b32.xlu0 %v1984, 45
  %v1993 = vpop.permute.xlu0 %1992
  %1994 = vrot.lane.b32.xlu0 %v1985, 45
  %v1995 = vpop.permute.xlu0 %1994
  %1996 = vrot.lane.b32.xlu0 %v1986, 45
  %v1997 = vpop.permute.xlu0 %1996
  %1998 = vrot.lane.b32.xlu0 %v1987, 45
  %v1999 = vpop.permute.xlu0 %1998
  %v2004 = vadd.f32 %v1910, %v1993
  %v2005 = vadd.f32 %v1911, %v1995
  %v2006 = vadd.f32 %v1912, %v1997
  %v2007 = vadd.f32 %v1913, %v1999
  %2008 = vset.pattern.permute.xlu0 50
  %2009 = vperm.xlu0 %2008, %v182
  %v2010 = vpop.permute.xlu0 %2009
  %2012 = vset.pattern.permute.xlu0 50
  %2013 = vperm.xlu0 %2012, %v183
  %v2014 = vpop.permute.xlu0 %2013
  %2016 = vset.pattern.permute.xlu0 50
  %2017 = vperm.xlu0 %2016, %v184
  %v2018 = vpop.permute.xlu0 %2017
  %2020 = vset.pattern.permute.xlu0 50
  %2021 = vperm.xlu0 %2020, %v185
  %v2022 = vpop.permute.xlu0 %2021
  %v2024 = vmul.f32 %v1964, %v2010
  %v2025 = vmul.f32 %v1965, %v2014
  %v2026 = vmul.f32 %v1966, %v2018
  %v2027 = vmul.f32 %v1967, %v2022
  %2032 = vrot.lane.b32.xlu0 %v2024, 45
  %v2033 = vpop.permute.xlu0 %2032
  %2034 = vrot.lane.b32.xlu0 %v2025, 45
  %v2035 = vpop.permute.xlu0 %2034
  %2036 = vrot.lane.b32.xlu0 %v2026, 45
  %v2037 = vpop.permute.xlu0 %2036
  %2038 = vrot.lane.b32.xlu0 %v2027, 45
  %v2039 = vpop.permute.xlu0 %2038
  %v2044 = vadd.f32 %v1950, %v2033
  %v2045 = vadd.f32 %v1951, %v2035
  %v2046 = vadd.f32 %v1952, %v2037
  %v2047 = vadd.f32 %v1953, %v2039
  %s2048 = scalar_lea.vmem %s2, 20
  %v2049 = vld [vmem:[%s2048] sm:$0x1]
  %v2051 = vlaneseq
  %v2052 = vshrl.u32 %v2051, 7
  %v2053 = vsub.s32 0, %v2052
  %v2054 = vrot.slane %v2049, %v2053
  %2055 = vrot.lane.b32.xlu0 %v2054, 5
  %v2056 = vpop.permute.xlu0 %2055
  %v2058 = vmul.f32 %v207, %v2056
  %v2059 = vmul.f32 %v208, %v2056
  %v2060 = vmul.f32 %v209, %v2056
  %v2061 = vmul.f32 %v210, %v2056
  %2062 = vset.pattern.permute.xlu0 20
  %2063 = vperm.xlu0 %2062, %v182
  %v2064 = vpop.permute.xlu0 %2063
  %2066 = vset.pattern.permute.xlu0 20
  %2067 = vperm.xlu0 %2066, %v183
  %v2068 = vpop.permute.xlu0 %2067
  %2070 = vset.pattern.permute.xlu0 20
  %2071 = vperm.xlu0 %2070, %v184
  %v2072 = vpop.permute.xlu0 %2071
  %2074 = vset.pattern.permute.xlu0 20
  %2075 = vperm.xlu0 %2074, %v185
  %v2076 = vpop.permute.xlu0 %2075
  %v2078 = vmul.f32 %v2058, %v2064
  %v2079 = vmul.f32 %v2059, %v2068
  %v2080 = vmul.f32 %v2060, %v2072
  %v2081 = vmul.f32 %v2061, %v2076
  %2086 = vrot.lane.b32.xlu0 %v2078, 44
  %v2087 = vpop.permute.xlu0 %2086
  %2088 = vrot.lane.b32.xlu0 %v2079, 44
  %v2089 = vpop.permute.xlu0 %2088
  %2090 = vrot.lane.b32.xlu0 %v2080, 44
  %v2091 = vpop.permute.xlu0 %2090
  %2092 = vrot.lane.b32.xlu0 %v2081, 44
  %v2093 = vpop.permute.xlu0 %2092
  %v2098 = vadd.f32 %v2004, %v2087
  %v2099 = vadd.f32 %v2005, %v2089
  %v2100 = vadd.f32 %v2006, %v2091
  %v2101 = vadd.f32 %v2007, %v2093
  %2102 = vset.pattern.permute.xlu0 51
  %2103 = vperm.xlu0 %2102, %v182
  %v2104 = vpop.permute.xlu0 %2103
  %2106 = vset.pattern.permute.xlu0 51
  %2107 = vperm.xlu0 %2106, %v183
  %v2108 = vpop.permute.xlu0 %2107
  %2110 = vset.pattern.permute.xlu0 51
  %2111 = vperm.xlu0 %2110, %v184
  %v2112 = vpop.permute.xlu0 %2111
  %2114 = vset.pattern.permute.xlu0 51
  %2115 = vperm.xlu0 %2114, %v185
  %v2116 = vpop.permute.xlu0 %2115
  %v2118 = vmul.f32 %v2058, %v2104
  %v2119 = vmul.f32 %v2059, %v2108
  %v2120 = vmul.f32 %v2060, %v2112
  %v2121 = vmul.f32 %v2061, %v2116
  %2126 = vrot.lane.b32.xlu0 %v2118, 44
  %v2127 = vpop.permute.xlu0 %2126
  %2128 = vrot.lane.b32.xlu0 %v2119, 44
  %v2129 = vpop.permute.xlu0 %2128
  %2130 = vrot.lane.b32.xlu0 %v2120, 44
  %v2131 = vpop.permute.xlu0 %2130
  %2132 = vrot.lane.b32.xlu0 %v2121, 44
  %v2133 = vpop.permute.xlu0 %2132
  %v2138 = vadd.f32 %v2044, %v2127
  %v2139 = vadd.f32 %v2045, %v2129
  %v2140 = vadd.f32 %v2046, %v2131
  %v2141 = vadd.f32 %v2047, %v2133
  %s2142 = scalar_lea.vmem %s2, 21
  %v2143 = vld [vmem:[%s2142] sm:$0x1]
  %v2145 = vlaneseq
  %v2146 = vshrl.u32 %v2145, 7
  %v2147 = vsub.s32 0, %v2146
  %v2148 = vrot.slane %v2143, %v2147
  %2149 = vrot.lane.b32.xlu0 %v2148, 6
  %v2150 = vpop.permute.xlu0 %2149
  %v2152 = vmul.f32 %v207, %v2150
  %v2153 = vmul.f32 %v208, %v2150
  %v2154 = vmul.f32 %v209, %v2150
  %v2155 = vmul.f32 %v210, %v2150
  %2156 = vset.pattern.permute.xlu0 21
  %2157 = vperm.xlu0 %2156, %v182
  %v2158 = vpop.permute.xlu0 %2157
  %2160 = vset.pattern.permute.xlu0 21
  %2161 = vperm.xlu0 %2160, %v183
  %v2162 = vpop.permute.xlu0 %2161
  %2164 = vset.pattern.permute.xlu0 21
  %2165 = vperm.xlu0 %2164, %v184
  %v2166 = vpop.permute.xlu0 %2165
  %2168 = vset.pattern.permute.xlu0 21
  %2169 = vperm.xlu0 %2168, %v185
  %v2170 = vpop.permute.xlu0 %2169
  %v2172 = vmul.f32 %v2152, %v2158
  %v2173 = vmul.f32 %v2153, %v2162
  %v2174 = vmul.f32 %v2154, %v2166
  %v2175 = vmul.f32 %v2155, %v2170
  %2180 = vrot.lane.b32.xlu0 %v2172, 43
  %v2181 = vpop.permute.xlu0 %2180
  %2182 = vrot.lane.b32.xlu0 %v2173, 43
  %v2183 = vpop.permute.xlu0 %2182
  %2184 = vrot.lane.b32.xlu0 %v2174, 43
  %v2185 = vpop.permute.xlu0 %2184
  %2186 = vrot.lane.b32.xlu0 %v2175, 43
  %v2187 = vpop.permute.xlu0 %2186
  %v2192 = vadd.f32 %v2098, %v2181
  %v2193 = vadd.f32 %v2099, %v2183
  %v2194 = vadd.f32 %v2100, %v2185
  %v2195 = vadd.f32 %v2101, %v2187
  %2196 = vset.pattern.permute.xlu0 52
  %2197 = vperm.xlu0 %2196, %v182
  %v2198 = vpop.permute.xlu0 %2197
  %2200 = vset.pattern.permute.xlu0 52
  %2201 = vperm.xlu0 %2200, %v183
  %v2202 = vpop.permute.xlu0 %2201
  %2204 = vset.pattern.permute.xlu0 52
  %2205 = vperm.xlu0 %2204, %v184
  %v2206 = vpop.permute.xlu0 %2205
  %2208 = vset.pattern.permute.xlu0 52
  %2209 = vperm.xlu0 %2208, %v185
  %v2210 = vpop.permute.xlu0 %2209
  %v2212 = vmul.f32 %v2152, %v2198
  %v2213 = vmul.f32 %v2153, %v2202
  %v2214 = vmul.f32 %v2154, %v2206
  %v2215 = vmul.f32 %v2155, %v2210
  %2220 = vrot.lane.b32.xlu0 %v2212, 43
  %v2221 = vpop.permute.xlu0 %2220
  %2222 = vrot.lane.b32.xlu0 %v2213, 43
  %v2223 = vpop.permute.xlu0 %2222
  %2224 = vrot.lane.b32.xlu0 %v2214, 43
  %v2225 = vpop.permute.xlu0 %2224
  %2226 = vrot.lane.b32.xlu0 %v2215, 43
  %v2227 = vpop.permute.xlu0 %2226
  %v2232 = vadd.f32 %v2138, %v2221
  %v2233 = vadd.f32 %v2139, %v2223
  %v2234 = vadd.f32 %v2140, %v2225
  %v2235 = vadd.f32 %v2141, %v2227
  %s2236 = scalar_lea.vmem %s2, 22
  %v2237 = vld [vmem:[%s2236] sm:$0x1]
  %v2239 = vlaneseq
  %v2240 = vshrl.u32 %v2239, 7
  %v2241 = vsub.s32 0, %v2240
  %v2242 = vrot.slane %v2237, %v2241
  %2243 = vrot.lane.b32.xlu0 %v2242, 7
  %v2244 = vpop.permute.xlu0 %2243
  %v2246 = vmul.f32 %v207, %v2244
  %v2247 = vmul.f32 %v208, %v2244
  %v2248 = vmul.f32 %v209, %v2244
  %v2249 = vmul.f32 %v210, %v2244
  %2250 = vset.pattern.permute.xlu0 22
  %2251 = vperm.xlu0 %2250, %v182
  %v2252 = vpop.permute.xlu0 %2251
  %2254 = vset.pattern.permute.xlu0 22
  %2255 = vperm.xlu0 %2254, %v183
  %v2256 = vpop.permute.xlu0 %2255
  %2258 = vset.pattern.permute.xlu0 22
  %2259 = vperm.xlu0 %2258, %v184
  %v2260 = vpop.permute.xlu0 %2259
  %2262 = vset.pattern.permute.xlu0 22
  %2263 = vperm.xlu0 %2262, %v185
  %v2264 = vpop.permute.xlu0 %2263
  %v2266 = vmul.f32 %v2246, %v2252
  %v2267 = vmul.f32 %v2247, %v2256
  %v2268 = vmul.f32 %v2248, %v2260
  %v2269 = vmul.f32 %v2249, %v2264
  %2274 = vrot.lane.b32.xlu0 %v2266, 42
  %v2275 = vpop.permute.xlu0 %2274
  %2276 = vrot.lane.b32.xlu0 %v2267, 42
  %v2277 = vpop.permute.xlu0 %2276
  %2278 = vrot.lane.b32.xlu0 %v2268, 42
  %v2279 = vpop.permute.xlu0 %2278
  %2280 = vrot.lane.b32.xlu0 %v2269, 42
  %v2281 = vpop.permute.xlu0 %2280
  %v2286 = vadd.f32 %v2192, %v2275
  %v2287 = vadd.f32 %v2193, %v2277
  %v2288 = vadd.f32 %v2194, %v2279
  %v2289 = vadd.f32 %v2195, %v2281
  %2290 = vset.pattern.permute.xlu0 53
  %2291 = vperm.xlu0 %2290, %v182
  %v2292 = vpop.permute.xlu0 %2291
  %2294 = vset.pattern.permute.xlu0 53
  %2295 = vperm.xlu0 %2294, %v183
  %v2296 = vpop.permute.xlu0 %2295
  %2298 = vset.pattern.permute.xlu0 53
  %2299 = vperm.xlu0 %2298, %v184
  %v2300 = vpop.permute.xlu0 %2299
  %2302 = vset.pattern.permute.xlu0 53
  %2303 = vperm.xlu0 %2302, %v185
  %v2304 = vpop.permute.xlu0 %2303
  %v2306 = vmul.f32 %v2246, %v2292
  %v2307 = vmul.f32 %v2247, %v2296
  %v2308 = vmul.f32 %v2248, %v2300
  %v2309 = vmul.f32 %v2249, %v2304
  %2314 = vrot.lane.b32.xlu0 %v2306, 42
  %v2315 = vpop.permute.xlu0 %2314
  %2316 = vrot.lane.b32.xlu0 %v2307, 42
  %v2317 = vpop.permute.xlu0 %2316
  %2318 = vrot.lane.b32.xlu0 %v2308, 42
  %v2319 = vpop.permute.xlu0 %2318
  %2320 = vrot.lane.b32.xlu0 %v2309, 42
  %v2321 = vpop.permute.xlu0 %2320
  %v2326 = vadd.f32 %v2232, %v2315
  %v2327 = vadd.f32 %v2233, %v2317
  %v2328 = vadd.f32 %v2234, %v2319
  %v2329 = vadd.f32 %v2235, %v2321
  %s2330 = scalar_lea.vmem %s2, 23
  %v2331 = vld [vmem:[%s2330] sm:$0x1]
  %v2333 = vlaneseq
  %v2334 = vshrl.u32 %v2333, 7
  %v2335 = vsub.s32 0, %v2334
  %v2336 = vrot.slane %v2331, %v2335
  %2337 = vrot.lane.b32.xlu0 %v2336, 8
  %v2338 = vpop.permute.xlu0 %2337
  %v2340 = vmul.f32 %v207, %v2338
  %v2341 = vmul.f32 %v208, %v2338
  %v2342 = vmul.f32 %v209, %v2338
  %v2343 = vmul.f32 %v210, %v2338
  %2344 = vset.pattern.permute.xlu0 23
  %2345 = vperm.xlu0 %2344, %v182
  %v2346 = vpop.permute.xlu0 %2345
  %2348 = vset.pattern.permute.xlu0 23
  %2349 = vperm.xlu0 %2348, %v183
  %v2350 = vpop.permute.xlu0 %2349
  %2352 = vset.pattern.permute.xlu0 23
  %2353 = vperm.xlu0 %2352, %v184
  %v2354 = vpop.permute.xlu0 %2353
  %2356 = vset.pattern.permute.xlu0 23
  %2357 = vperm.xlu0 %2356, %v185
  %v2358 = vpop.permute.xlu0 %2357
  %v2360 = vmul.f32 %v2340, %v2346
  %v2361 = vmul.f32 %v2341, %v2350
  %v2362 = vmul.f32 %v2342, %v2354
  %v2363 = vmul.f32 %v2343, %v2358
  %2368 = vrot.lane.b32.xlu0 %v2360, 41
  %v2369 = vpop.permute.xlu0 %2368
  %2370 = vrot.lane.b32.xlu0 %v2361, 41
  %v2371 = vpop.permute.xlu0 %2370
  %2372 = vrot.lane.b32.xlu0 %v2362, 41
  %v2373 = vpop.permute.xlu0 %2372
  %2374 = vrot.lane.b32.xlu0 %v2363, 41
  %v2375 = vpop.permute.xlu0 %2374
  %v2380 = vadd.f32 %v2286, %v2369
  %v2381 = vadd.f32 %v2287, %v2371
  %v2382 = vadd.f32 %v2288, %v2373
  %v2383 = vadd.f32 %v2289, %v2375
  %2384 = vset.pattern.permute.xlu0 54
  %2385 = vperm.xlu0 %2384, %v182
  %v2386 = vpop.permute.xlu0 %2385
  %2388 = vset.pattern.permute.xlu0 54
  %2389 = vperm.xlu0 %2388, %v183
  %v2390 = vpop.permute.xlu0 %2389
  %2392 = vset.pattern.permute.xlu0 54
  %2393 = vperm.xlu0 %2392, %v184
  %v2394 = vpop.permute.xlu0 %2393
  %2396 = vset.pattern.permute.xlu0 54
  %2397 = vperm.xlu0 %2396, %v185
  %v2398 = vpop.permute.xlu0 %2397
  %v2400 = vmul.f32 %v2340, %v2386
  %v2401 = vmul.f32 %v2341, %v2390
  %v2402 = vmul.f32 %v2342, %v2394
  %v2403 = vmul.f32 %v2343, %v2398
  %2408 = vrot.lane.b32.xlu0 %v2400, 41
  %v2409 = vpop.permute.xlu0 %2408
  %2410 = vrot.lane.b32.xlu0 %v2401, 41
  %v2411 = vpop.permute.xlu0 %2410
  %2412 = vrot.lane.b32.xlu0 %v2402, 41
  %v2413 = vpop.permute.xlu0 %2412
  %2414 = vrot.lane.b32.xlu0 %v2403, 41
  %v2415 = vpop.permute.xlu0 %2414
  %v2420 = vadd.f32 %v2326, %v2409
  %v2421 = vadd.f32 %v2327, %v2411
  %v2422 = vadd.f32 %v2328, %v2413
  %v2423 = vadd.f32 %v2329, %v2415
  %s2424 = scalar_lea.vmem %s2, 24
  %v2425 = vld [vmem:[%s2424] sm:$0x1]
  %v2427 = vlaneseq
  %v2428 = vshrl.u32 %v2427, 7
  %v2429 = vsub.s32 0, %v2428
  %v2430 = vrot.slane %v2425, %v2429
  %2431 = vrot.lane.b32.xlu0 %v2430, 9
  %v2432 = vpop.permute.xlu0 %2431
  %v2434 = vmul.f32 %v207, %v2432
  %v2435 = vmul.f32 %v208, %v2432
  %v2436 = vmul.f32 %v209, %v2432
  %v2437 = vmul.f32 %v210, %v2432
  %2438 = vset.pattern.permute.xlu0 24
  %2439 = vperm.xlu0 %2438, %v182
  %v2440 = vpop.permute.xlu0 %2439
  %2442 = vset.pattern.permute.xlu0 24
  %2443 = vperm.xlu0 %2442, %v183
  %v2444 = vpop.permute.xlu0 %2443
  %2446 = vset.pattern.permute.xlu0 24
  %2447 = vperm.xlu0 %2446, %v184
  %v2448 = vpop.permute.xlu0 %2447
  %2450 = vset.pattern.permute.xlu0 24
  %2451 = vperm.xlu0 %2450, %v185
  %v2452 = vpop.permute.xlu0 %2451
  %v2454 = vmul.f32 %v2434, %v2440
  %v2455 = vmul.f32 %v2435, %v2444
  %v2456 = vmul.f32 %v2436, %v2448
  %v2457 = vmul.f32 %v2437, %v2452
  %2462 = vrot.lane.b32.xlu0 %v2454, 40
  %v2463 = vpop.permute.xlu0 %2462
  %2464 = vrot.lane.b32.xlu0 %v2455, 40
  %v2465 = vpop.permute.xlu0 %2464
  %2466 = vrot.lane.b32.xlu0 %v2456, 40
  %v2467 = vpop.permute.xlu0 %2466
  %2468 = vrot.lane.b32.xlu0 %v2457, 40
  %v2469 = vpop.permute.xlu0 %2468
  %v2474 = vadd.f32 %v2380, %v2463
  %v2475 = vadd.f32 %v2381, %v2465
  %v2476 = vadd.f32 %v2382, %v2467
  %v2477 = vadd.f32 %v2383, %v2469
  %2478 = vset.pattern.permute.xlu0 55
  %2479 = vperm.xlu0 %2478, %v182
  %v2480 = vpop.permute.xlu0 %2479
  %2482 = vset.pattern.permute.xlu0 55
  %2483 = vperm.xlu0 %2482, %v183
  %v2484 = vpop.permute.xlu0 %2483
  %2486 = vset.pattern.permute.xlu0 55
  %2487 = vperm.xlu0 %2486, %v184
  %v2488 = vpop.permute.xlu0 %2487
  %2490 = vset.pattern.permute.xlu0 55
  %2491 = vperm.xlu0 %2490, %v185
  %v2492 = vpop.permute.xlu0 %2491
  %v2494 = vmul.f32 %v2434, %v2480
  %v2495 = vmul.f32 %v2435, %v2484
  %v2496 = vmul.f32 %v2436, %v2488
  %v2497 = vmul.f32 %v2437, %v2492
  %2502 = vrot.lane.b32.xlu0 %v2494, 40
  %v2503 = vpop.permute.xlu0 %2502
  %2504 = vrot.lane.b32.xlu0 %v2495, 40
  %v2505 = vpop.permute.xlu0 %2504
  %2506 = vrot.lane.b32.xlu0 %v2496, 40
  %v2507 = vpop.permute.xlu0 %2506
  %2508 = vrot.lane.b32.xlu0 %v2497, 40
  %v2509 = vpop.permute.xlu0 %2508
  %v2514 = vadd.f32 %v2420, %v2503
  %v2515 = vadd.f32 %v2421, %v2505
  %v2516 = vadd.f32 %v2422, %v2507
  %v2517 = vadd.f32 %v2423, %v2509
  %s2518 = scalar_lea.vmem %s2, 25
  %v2519 = vld [vmem:[%s2518] sm:$0x1]
  %v2521 = vlaneseq
  %v2522 = vshrl.u32 %v2521, 7
  %v2523 = vsub.s32 0, %v2522
  %v2524 = vrot.slane %v2519, %v2523
  %2525 = vrot.lane.b32.xlu0 %v2524, 10
  %v2526 = vpop.permute.xlu0 %2525
  %v2528 = vmul.f32 %v207, %v2526
  %v2529 = vmul.f32 %v208, %v2526
  %v2530 = vmul.f32 %v209, %v2526
  %v2531 = vmul.f32 %v210, %v2526
  %2532 = vset.pattern.permute.xlu0 25
  %2533 = vperm.xlu0 %2532, %v182
  %v2534 = vpop.permute.xlu0 %2533
  %2536 = vset.pattern.permute.xlu0 25
  %2537 = vperm.xlu0 %2536, %v183
  %v2538 = vpop.permute.xlu0 %2537
  %2540 = vset.pattern.permute.xlu0 25
  %2541 = vperm.xlu0 %2540, %v184
  %v2542 = vpop.permute.xlu0 %2541
  %2544 = vset.pattern.permute.xlu0 25
  %2545 = vperm.xlu0 %2544, %v185
  %v2546 = vpop.permute.xlu0 %2545
  %v2548 = vmul.f32 %v2528, %v2534
  %v2549 = vmul.f32 %v2529, %v2538
  %v2550 = vmul.f32 %v2530, %v2542
  %v2551 = vmul.f32 %v2531, %v2546
  %2556 = vrot.lane.b32.xlu0 %v2548, 39
  %v2557 = vpop.permute.xlu0 %2556
  %2558 = vrot.lane.b32.xlu0 %v2549, 39
  %v2559 = vpop.permute.xlu0 %2558
  %2560 = vrot.lane.b32.xlu0 %v2550, 39
  %v2561 = vpop.permute.xlu0 %2560
  %2562 = vrot.lane.b32.xlu0 %v2551, 39
  %v2563 = vpop.permute.xlu0 %2562
  %v2568 = vadd.f32 %v2474, %v2557
  %v2569 = vadd.f32 %v2475, %v2559
  %v2570 = vadd.f32 %v2476, %v2561
  %v2571 = vadd.f32 %v2477, %v2563
  %2572 = vset.pattern.permute.xlu0 56
  %2573 = vperm.xlu0 %2572, %v182
  %v2574 = vpop.permute.xlu0 %2573
  %2576 = vset.pattern.permute.xlu0 56
  %2577 = vperm.xlu0 %2576, %v183
  %v2578 = vpop.permute.xlu0 %2577
  %2580 = vset.pattern.permute.xlu0 56
  %2581 = vperm.xlu0 %2580, %v184
  %v2582 = vpop.permute.xlu0 %2581
  %2584 = vset.pattern.permute.xlu0 56
  %2585 = vperm.xlu0 %2584, %v185
  %v2586 = vpop.permute.xlu0 %2585
  %v2588 = vmul.f32 %v2528, %v2574
  %v2589 = vmul.f32 %v2529, %v2578
  %v2590 = vmul.f32 %v2530, %v2582
  %v2591 = vmul.f32 %v2531, %v2586
  %2596 = vrot.lane.b32.xlu0 %v2588, 39
  %v2597 = vpop.permute.xlu0 %2596
  %2598 = vrot.lane.b32.xlu0 %v2589, 39
  %v2599 = vpop.permute.xlu0 %2598
  %2600 = vrot.lane.b32.xlu0 %v2590, 39
  %v2601 = vpop.permute.xlu0 %2600
  %2602 = vrot.lane.b32.xlu0 %v2591, 39
  %v2603 = vpop.permute.xlu0 %2602
  %v2608 = vadd.f32 %v2514, %v2597
  %v2609 = vadd.f32 %v2515, %v2599
  %v2610 = vadd.f32 %v2516, %v2601
  %v2611 = vadd.f32 %v2517, %v2603
  %s2612 = scalar_lea.vmem %s2, 26
  %v2613 = vld [vmem:[%s2612] sm:$0x1]
  %v2615 = vlaneseq
  %v2616 = vshrl.u32 %v2615, 7
  %v2617 = vsub.s32 0, %v2616
  %v2618 = vrot.slane %v2613, %v2617
  %2619 = vrot.lane.b32.xlu0 %v2618, 11
  %v2620 = vpop.permute.xlu0 %2619
  %v2622 = vmul.f32 %v207, %v2620
  %v2623 = vmul.f32 %v208, %v2620
  %v2624 = vmul.f32 %v209, %v2620
  %v2625 = vmul.f32 %v210, %v2620
  %2626 = vset.pattern.permute.xlu0 26
  %2627 = vperm.xlu0 %2626, %v182
  %v2628 = vpop.permute.xlu0 %2627
  %2630 = vset.pattern.permute.xlu0 26
  %2631 = vperm.xlu0 %2630, %v183
  %v2632 = vpop.permute.xlu0 %2631
  %2634 = vset.pattern.permute.xlu0 26
  %2635 = vperm.xlu0 %2634, %v184
  %v2636 = vpop.permute.xlu0 %2635
  %2638 = vset.pattern.permute.xlu0 26
  %2639 = vperm.xlu0 %2638, %v185
  %v2640 = vpop.permute.xlu0 %2639
  %v2642 = vmul.f32 %v2622, %v2628
  %v2643 = vmul.f32 %v2623, %v2632
  %v2644 = vmul.f32 %v2624, %v2636
  %v2645 = vmul.f32 %v2625, %v2640
  %2650 = vrot.lane.b32.xlu0 %v2642, 38
  %v2651 = vpop.permute.xlu0 %2650
  %2652 = vrot.lane.b32.xlu0 %v2643, 38
  %v2653 = vpop.permute.xlu0 %2652
  %2654 = vrot.lane.b32.xlu0 %v2644, 38
  %v2655 = vpop.permute.xlu0 %2654
  %2656 = vrot.lane.b32.xlu0 %v2645, 38
  %v2657 = vpop.permute.xlu0 %2656
  %v2662 = vadd.f32 %v2568, %v2651
  %v2663 = vadd.f32 %v2569, %v2653
  %v2664 = vadd.f32 %v2570, %v2655
  %v2665 = vadd.f32 %v2571, %v2657
  %2666 = vset.pattern.permute.xlu0 57
  %2667 = vperm.xlu0 %2666, %v182
  %v2668 = vpop.permute.xlu0 %2667
  %2670 = vset.pattern.permute.xlu0 57
  %2671 = vperm.xlu0 %2670, %v183
  %v2672 = vpop.permute.xlu0 %2671
  %2674 = vset.pattern.permute.xlu0 57
  %2675 = vperm.xlu0 %2674, %v184
  %v2676 = vpop.permute.xlu0 %2675
  %2678 = vset.pattern.permute.xlu0 57
  %2679 = vperm.xlu0 %2678, %v185
  %v2680 = vpop.permute.xlu0 %2679
  %v2682 = vmul.f32 %v2622, %v2668
  %v2683 = vmul.f32 %v2623, %v2672
  %v2684 = vmul.f32 %v2624, %v2676
  %v2685 = vmul.f32 %v2625, %v2680
  %2690 = vrot.lane.b32.xlu0 %v2682, 38
  %v2691 = vpop.permute.xlu0 %2690
  %2692 = vrot.lane.b32.xlu0 %v2683, 38
  %v2693 = vpop.permute.xlu0 %2692
  %2694 = vrot.lane.b32.xlu0 %v2684, 38
  %v2695 = vpop.permute.xlu0 %2694
  %2696 = vrot.lane.b32.xlu0 %v2685, 38
  %v2697 = vpop.permute.xlu0 %2696
  %v2702 = vadd.f32 %v2608, %v2691
  %v2703 = vadd.f32 %v2609, %v2693
  %v2704 = vadd.f32 %v2610, %v2695
  %v2705 = vadd.f32 %v2611, %v2697
  %s2706 = scalar_lea.vmem %s2, 27
  %v2707 = vld [vmem:[%s2706] sm:$0x1]
  %v2709 = vlaneseq
  %v2710 = vshrl.u32 %v2709, 7
  %v2711 = vsub.s32 0, %v2710
  %v2712 = vrot.slane %v2707, %v2711
  %2713 = vrot.lane.b32.xlu0 %v2712, 12
  %v2714 = vpop.permute.xlu0 %2713
  %v2716 = vmul.f32 %v207, %v2714
  %v2717 = vmul.f32 %v208, %v2714
  %v2718 = vmul.f32 %v209, %v2714
  %v2719 = vmul.f32 %v210, %v2714
  %2720 = vset.pattern.permute.xlu0 27
  %2721 = vperm.xlu0 %2720, %v182
  %v2722 = vpop.permute.xlu0 %2721
  %2724 = vset.pattern.permute.xlu0 27
  %2725 = vperm.xlu0 %2724, %v183
  %v2726 = vpop.permute.xlu0 %2725
  %2728 = vset.pattern.permute.xlu0 27
  %2729 = vperm.xlu0 %2728, %v184
  %v2730 = vpop.permute.xlu0 %2729
  %2732 = vset.pattern.permute.xlu0 27
  %2733 = vperm.xlu0 %2732, %v185
  %v2734 = vpop.permute.xlu0 %2733
  %v2736 = vmul.f32 %v2716, %v2722
  %v2737 = vmul.f32 %v2717, %v2726
  %v2738 = vmul.f32 %v2718, %v2730
  %v2739 = vmul.f32 %v2719, %v2734
  %2744 = vrot.lane.b32.xlu0 %v2736, 37
  %v2745 = vpop.permute.xlu0 %2744
  %2746 = vrot.lane.b32.xlu0 %v2737, 37
  %v2747 = vpop.permute.xlu0 %2746
  %2748 = vrot.lane.b32.xlu0 %v2738, 37
  %v2749 = vpop.permute.xlu0 %2748
  %2750 = vrot.lane.b32.xlu0 %v2739, 37
  %v2751 = vpop.permute.xlu0 %2750
  %v2756 = vadd.f32 %v2662, %v2745
  %v2757 = vadd.f32 %v2663, %v2747
  %v2758 = vadd.f32 %v2664, %v2749
  %v2759 = vadd.f32 %v2665, %v2751
  %2760 = vset.pattern.permute.xlu0 58
  %2761 = vperm.xlu0 %2760, %v182
  %v2762 = vpop.permute.xlu0 %2761
  %2764 = vset.pattern.permute.xlu0 58
  %2765 = vperm.xlu0 %2764, %v183
  %v2766 = vpop.permute.xlu0 %2765
  %2768 = vset.pattern.permute.xlu0 58
  %2769 = vperm.xlu0 %2768, %v184
  %v2770 = vpop.permute.xlu0 %2769
  %2772 = vset.pattern.permute.xlu0 58
  %2773 = vperm.xlu0 %2772, %v185
  %v2774 = vpop.permute.xlu0 %2773
  %v2776 = vmul.f32 %v2716, %v2762
  %v2777 = vmul.f32 %v2717, %v2766
  %v2778 = vmul.f32 %v2718, %v2770
  %v2779 = vmul.f32 %v2719, %v2774
  %2784 = vrot.lane.b32.xlu0 %v2776, 37
  %v2785 = vpop.permute.xlu0 %2784
  %2786 = vrot.lane.b32.xlu0 %v2777, 37
  %v2787 = vpop.permute.xlu0 %2786
  %2788 = vrot.lane.b32.xlu0 %v2778, 37
  %v2789 = vpop.permute.xlu0 %2788
  %2790 = vrot.lane.b32.xlu0 %v2779, 37
  %v2791 = vpop.permute.xlu0 %2790
  %v2796 = vadd.f32 %v2702, %v2785
  %v2797 = vadd.f32 %v2703, %v2787
  %v2798 = vadd.f32 %v2704, %v2789
  %v2799 = vadd.f32 %v2705, %v2791
  %s2800 = scalar_lea.vmem %s2, 28
  %v2801 = vld [vmem:[%s2800] sm:$0x1]
  %v2803 = vlaneseq
  %v2804 = vshrl.u32 %v2803, 7
  %v2805 = vsub.s32 0, %v2804
  %v2806 = vrot.slane %v2801, %v2805
  %2807 = vrot.lane.b32.xlu0 %v2806, 13
  %v2808 = vpop.permute.xlu0 %2807
  %v2810 = vmul.f32 %v207, %v2808
  %v2811 = vmul.f32 %v208, %v2808
  %v2812 = vmul.f32 %v209, %v2808
  %v2813 = vmul.f32 %v210, %v2808
  %2814 = vset.pattern.permute.xlu0 28
  %2815 = vperm.xlu0 %2814, %v182
  %v2816 = vpop.permute.xlu0 %2815
  %2818 = vset.pattern.permute.xlu0 28
  %2819 = vperm.xlu0 %2818, %v183
  %v2820 = vpop.permute.xlu0 %2819
  %2822 = vset.pattern.permute.xlu0 28
  %2823 = vperm.xlu0 %2822, %v184
  %v2824 = vpop.permute.xlu0 %2823
  %2826 = vset.pattern.permute.xlu0 28
  %2827 = vperm.xlu0 %2826, %v185
  %v2828 = vpop.permute.xlu0 %2827
  %v2830 = vmul.f32 %v2810, %v2816
  %v2831 = vmul.f32 %v2811, %v2820
  %v2832 = vmul.f32 %v2812, %v2824
  %v2833 = vmul.f32 %v2813, %v2828
  %2838 = vrot.lane.b32.xlu0 %v2830, 36
  %v2839 = vpop.permute.xlu0 %2838
  %2840 = vrot.lane.b32.xlu0 %v2831, 36
  %v2841 = vpop.permute.xlu0 %2840
  %2842 = vrot.lane.b32.xlu0 %v2832, 36
  %v2843 = vpop.permute.xlu0 %2842
  %2844 = vrot.lane.b32.xlu0 %v2833, 36
  %v2845 = vpop.permute.xlu0 %2844
  %v2850 = vadd.f32 %v2756, %v2839
  %v2851 = vadd.f32 %v2757, %v2841
  %v2852 = vadd.f32 %v2758, %v2843
  %v2853 = vadd.f32 %v2759, %v2845
  %2854 = vset.pattern.permute.xlu0 59
  %2855 = vperm.xlu0 %2854, %v182
  %v2856 = vpop.permute.xlu0 %2855
  %2858 = vset.pattern.permute.xlu0 59
  %2859 = vperm.xlu0 %2858, %v183
  %v2860 = vpop.permute.xlu0 %2859
  %2862 = vset.pattern.permute.xlu0 59
  %2863 = vperm.xlu0 %2862, %v184
  %v2864 = vpop.permute.xlu0 %2863
  %2866 = vset.pattern.permute.xlu0 59
  %2867 = vperm.xlu0 %2866, %v185
  %v2868 = vpop.permute.xlu0 %2867
  %v2870 = vmul.f32 %v2810, %v2856
  %v2871 = vmul.f32 %v2811, %v2860
  %v2872 = vmul.f32 %v2812, %v2864
  %v2873 = vmul.f32 %v2813, %v2868
  %2878 = vrot.lane.b32.xlu0 %v2870, 36
  %v2879 = vpop.permute.xlu0 %2878
  %2880 = vrot.lane.b32.xlu0 %v2871, 36
  %v2881 = vpop.permute.xlu0 %2880
  %2882 = vrot.lane.b32.xlu0 %v2872, 36
  %v2883 = vpop.permute.xlu0 %2882
  %2884 = vrot.lane.b32.xlu0 %v2873, 36
  %v2885 = vpop.permute.xlu0 %2884
  %v2890 = vadd.f32 %v2796, %v2879
  %v2891 = vadd.f32 %v2797, %v2881
  %v2892 = vadd.f32 %v2798, %v2883
  %v2893 = vadd.f32 %v2799, %v2885
  %s2894 = scalar_lea.vmem %s2, 29
  %v2895 = vld [vmem:[%s2894] sm:$0x1]
  %v2897 = vlaneseq
  %v2898 = vshrl.u32 %v2897, 7
  %v2899 = vsub.s32 0, %v2898
  %v2900 = vrot.slane %v2895, %v2899
  %2901 = vrot.lane.b32.xlu0 %v2900, 14
  %v2902 = vpop.permute.xlu0 %2901
  %v2904 = vmul.f32 %v207, %v2902
  %v2905 = vmul.f32 %v208, %v2902
  %v2906 = vmul.f32 %v209, %v2902
  %v2907 = vmul.f32 %v210, %v2902
  %2908 = vset.pattern.permute.xlu0 29
  %2909 = vperm.xlu0 %2908, %v182
  %v2910 = vpop.permute.xlu0 %2909
  %2912 = vset.pattern.permute.xlu0 29
  %2913 = vperm.xlu0 %2912, %v183
  %v2914 = vpop.permute.xlu0 %2913
  %2916 = vset.pattern.permute.xlu0 29
  %2917 = vperm.xlu0 %2916, %v184
  %v2918 = vpop.permute.xlu0 %2917
  %2920 = vset.pattern.permute.xlu0 29
  %2921 = vperm.xlu0 %2920, %v185
  %v2922 = vpop.permute.xlu0 %2921
  %v2924 = vmul.f32 %v2904, %v2910
  %v2925 = vmul.f32 %v2905, %v2914
  %v2926 = vmul.f32 %v2906, %v2918
  %v2927 = vmul.f32 %v2907, %v2922
  %2932 = vrot.lane.b32.xlu0 %v2924, 35
  %v2933 = vpop.permute.xlu0 %2932
  %2934 = vrot.lane.b32.xlu0 %v2925, 35
  %v2935 = vpop.permute.xlu0 %2934
  %2936 = vrot.lane.b32.xlu0 %v2926, 35
  %v2937 = vpop.permute.xlu0 %2936
  %2938 = vrot.lane.b32.xlu0 %v2927, 35
  %v2939 = vpop.permute.xlu0 %2938
  %v2944 = vadd.f32 %v2850, %v2933
  %v2945 = vadd.f32 %v2851, %v2935
  %v2946 = vadd.f32 %v2852, %v2937
  %v2947 = vadd.f32 %v2853, %v2939
  %2948 = vset.pattern.permute.xlu0 60
  %2949 = vperm.xlu0 %2948, %v182
  %v2950 = vpop.permute.xlu0 %2949
  %2952 = vset.pattern.permute.xlu0 60
  %2953 = vperm.xlu0 %2952, %v183
  %v2954 = vpop.permute.xlu0 %2953
  %2956 = vset.pattern.permute.xlu0 60
  %2957 = vperm.xlu0 %2956, %v184
  %v2958 = vpop.permute.xlu0 %2957
  %2960 = vset.pattern.permute.xlu0 60
  %2961 = vperm.xlu0 %2960, %v185
  %v2962 = vpop.permute.xlu0 %2961
  %v2964 = vmul.f32 %v2904, %v2950
  %v2965 = vmul.f32 %v2905, %v2954
  %v2966 = vmul.f32 %v2906, %v2958
  %v2967 = vmul.f32 %v2907, %v2962
  %2972 = vrot.lane.b32.xlu0 %v2964, 35
  %v2973 = vpop.permute.xlu0 %2972
  %2974 = vrot.lane.b32.xlu0 %v2965, 35
  %v2975 = vpop.permute.xlu0 %2974
  %2976 = vrot.lane.b32.xlu0 %v2966, 35
  %v2977 = vpop.permute.xlu0 %2976
  %2978 = vrot.lane.b32.xlu0 %v2967, 35
  %v2979 = vpop.permute.xlu0 %2978
  %v2984 = vadd.f32 %v2890, %v2973
  %v2985 = vadd.f32 %v2891, %v2975
  %v2986 = vadd.f32 %v2892, %v2977
  %v2987 = vadd.f32 %v2893, %v2979
  %s2988 = scalar_lea.vmem %s2, 30
  %v2989 = vld [vmem:[%s2988] sm:$0x1]
  %v2991 = vlaneseq
  %v2992 = vshrl.u32 %v2991, 7
  %v2993 = vsub.s32 0, %v2992
  %v2994 = vrot.slane %v2989, %v2993
  %2995 = vrot.lane.b32.xlu0 %v2994, 15
  %v2996 = vpop.permute.xlu0 %2995
  %v2998 = vmul.f32 %v207, %v2996
  %v2999 = vmul.f32 %v208, %v2996
  %v3000 = vmul.f32 %v209, %v2996
  %v3001 = vmul.f32 %v210, %v2996
  %3002 = vset.pattern.permute.xlu0 30
  %3003 = vperm.xlu0 %3002, %v182
  %v3004 = vpop.permute.xlu0 %3003
  %3006 = vset.pattern.permute.xlu0 30
  %3007 = vperm.xlu0 %3006, %v183
  %v3008 = vpop.permute.xlu0 %3007
  %3010 = vset.pattern.permute.xlu0 30
  %3011 = vperm.xlu0 %3010, %v184
  %v3012 = vpop.permute.xlu0 %3011
  %3014 = vset.pattern.permute.xlu0 30
  %3015 = vperm.xlu0 %3014, %v185
  %v3016 = vpop.permute.xlu0 %3015
  %v3018 = vmul.f32 %v2998, %v3004
  %v3019 = vmul.f32 %v2999, %v3008
  %v3020 = vmul.f32 %v3000, %v3012
  %v3021 = vmul.f32 %v3001, %v3016
  %3026 = vrot.lane.b32.xlu0 %v3018, 34
  %v3027 = vpop.permute.xlu0 %3026
  %3028 = vrot.lane.b32.xlu0 %v3019, 34
  %v3029 = vpop.permute.xlu0 %3028
  %3030 = vrot.lane.b32.xlu0 %v3020, 34
  %v3031 = vpop.permute.xlu0 %3030
  %3032 = vrot.lane.b32.xlu0 %v3021, 34
  %v3033 = vpop.permute.xlu0 %3032
  %v3038 = vadd.f32 %v2944, %v3027
  %v3039 = vadd.f32 %v2945, %v3029
  %v3040 = vadd.f32 %v2946, %v3031
  %v3041 = vadd.f32 %v2947, %v3033
  %3042 = vset.pattern.permute.xlu0 61
  %3043 = vperm.xlu0 %3042, %v182
  %v3044 = vpop.permute.xlu0 %3043
  %3046 = vset.pattern.permute.xlu0 61
  %3047 = vperm.xlu0 %3046, %v183
  %v3048 = vpop.permute.xlu0 %3047
  %3050 = vset.pattern.permute.xlu0 61
  %3051 = vperm.xlu0 %3050, %v184
  %v3052 = vpop.permute.xlu0 %3051
  %3054 = vset.pattern.permute.xlu0 61
  %3055 = vperm.xlu0 %3054, %v185
  %v3056 = vpop.permute.xlu0 %3055
  %v3058 = vmul.f32 %v2998, %v3044
  %v3059 = vmul.f32 %v2999, %v3048
  %v3060 = vmul.f32 %v3000, %v3052
  %v3061 = vmul.f32 %v3001, %v3056
  %3066 = vrot.lane.b32.xlu0 %v3058, 34
  %v3067 = vpop.permute.xlu0 %3066
  %3068 = vrot.lane.b32.xlu0 %v3059, 34
  %v3069 = vpop.permute.xlu0 %3068
  %3070 = vrot.lane.b32.xlu0 %v3060, 34
  %v3071 = vpop.permute.xlu0 %3070
  %3072 = vrot.lane.b32.xlu0 %v3061, 34
  %v3073 = vpop.permute.xlu0 %3072
  %v3078 = vadd.f32 %v2984, %v3067
  %v3079 = vadd.f32 %v2985, %v3069
  %v3080 = vadd.f32 %v2986, %v3071
  %v3081 = vadd.f32 %v2987, %v3073
  %3086 = vrot.lane.b32.xlu0 %v3078, 79
  %v3087 = vpop.permute.xlu0 %3086
  %3088 = vrot.lane.b32.xlu0 %v3079, 79
  %v3089 = vpop.permute.xlu0 %3088
  %3090 = vrot.lane.b32.xlu0 %v3080, 79
  %v3091 = vpop.permute.xlu0 %3090
  %3092 = vrot.lane.b32.xlu0 %v3081, 79
  %v3093 = vpop.permute.xlu0 %3092
  %v3098 = vrot.slane %v3087, 1
  %v3099 = vrot.slane %v3089, 1
  %v3100 = vrot.slane %v3091, 1
  %v3101 = vrot.slane %v3093, 1
  %vm3102 = vcmp.lt.s32.totalorder %v126, 7
  %v3103 = vsel %vm3102, %v3100, %v3101
  %v3104 = vsel %vm3102, %v3099, %v3100
  %v3105 = vsel %vm3102, %v3098, %v3099
  %v3106 = vsel %vm3102, %v3101, %v3098
  %v3107 = vrot.slane %v3087, 7
  %v3108 = vrot.slane %v3089, 7
  %v3109 = vrot.slane %v3091, 7
  %v3110 = vrot.slane %v3093, 7
  %vm3111 = vcmp.lt.s32.totalorder %v126, 1
  %v3112 = vsel %vm3111, %v3109, %v3110
  %v3113 = vsel %vm3111, %v3108, %v3109
  %v3114 = vsel %vm3111, %v3107, %v3108
  %v3115 = vsel %vm3111, %v3110, %v3107
  %v3116 = vsel %vm178, %v3105, %v3115
  %v3117 = vsel %vm179, %v3104, %v3114
  %v3118 = vsel %vm180, %v3103, %v3113
  %v3119 = vsel %vm181, %v3106, %v3112
  %3124 = vrot.lane.b32.xlu0 %v3116, 49
  %v3125 = vpop.permute.xlu0 %3124
  %3126 = vrot.lane.b32.xlu0 %v3117, 49
  %v3127 = vpop.permute.xlu0 %3126
  %3128 = vrot.lane.b32.xlu0 %v3118, 49
  %v3129 = vpop.permute.xlu0 %3128
  %3130 = vrot.lane.b32.xlu0 %v3119, 49
  %v3131 = vpop.permute.xlu0 %3130
  %v3136 = vadd.f32 %v3038, %v3125
  %v3137 = vadd.f32 %v3039, %v3127
  %v3138 = vadd.f32 %v3040, %v3129
  %v3139 = vadd.f32 %v3041, %v3131
  %3140 = vset.pattern.permute.xlu0 62
  %3141 = vperm.xlu0 %3140, %v182
  %v3142 = vpop.permute.xlu0 %3141
  %3144 = vset.pattern.permute.xlu0 62
  %3145 = vperm.xlu0 %3144, %v183
  %v3146 = vpop.permute.xlu0 %3145
  %3148 = vset.pattern.permute.xlu0 62
  %3149 = vperm.xlu0 %3148, %v184
  %v3150 = vpop.permute.xlu0 %3149
  %3152 = vset.pattern.permute.xlu0 62
  %3153 = vperm.xlu0 %3152, %v185
  %v3154 = vpop.permute.xlu0 %3153
  %v3156 = vadd.f32 %v3136, %v3142
  %v3157 = vadd.f32 %v3137, %v3146
  %v3158 = vadd.f32 %v3138, %v3150
  %v3159 = vadd.f32 %v3139, %v3154
  %v3160 = vmin.f32 %v3156, 20.0
  %v3161 = vmin.f32 %v3157, 20.0
  %v3162 = vmin.f32 %v3158, 20.0
  %v3163 = vmin.f32 %v3159, 20.0
  %v3164 = vmul.f32 %v3160, 1.442695
  %v3165 = vpow.pop %v3164
  %v3166 = vmul.f32 %v3161, 1.442695
  %v3167 = vpow.pop %v3166
  %v3168 = vmul.f32 %v3162, 1.442695
  %v3169 = vpow.pop %v3168
  %v3170 = vmul.f32 %v3163, 1.442695
  %v3171 = vpow.pop %v3170
  %v3172 = vadd.f32 %v3165, 1.0
  %v3173 = vadd.f32 %v3167, 1.0
  %v3174 = vadd.f32 %v3169, 1.0
  %v3175 = vadd.f32 %v3171, 1.0
  %v3176 = vmul.f32 %v3172, %v3172
  %v3177 = vmul.f32 %v3173, %v3173
  %v3178 = vmul.f32 %v3174, %v3174
  %v3179 = vmul.f32 %v3175, %v3175
  %v3180 = vadd.f32 %v3176, 1.0
  %v3181 = vadd.f32 %v3177, 1.0
  %v3182 = vadd.f32 %v3178, 1.0
  %v3183 = vadd.f32 %v3179, 1.0
  %v3184 = vrcp.pop %v3180
  %v3185 = vmul.f32 2.0, %v3184
  %v3186 = vrcp.pop %v3181
  %v3187 = vmul.f32 2.0, %v3186
  %v3188 = vrcp.pop %v3182
  %v3189 = vmul.f32 2.0, %v3188
  %v3190 = vrcp.pop %v3183
  %v3191 = vmul.f32 2.0, %v3190
  %v3192 = vsub.f32 1.0, %v3185
  %v3193 = vsub.f32 1.0, %v3187
  %v3194 = vsub.f32 1.0, %v3189
  %v3195 = vsub.f32 1.0, %v3191
  %v3196 = vmul.f32 %v3156, %v3192
  %v3197 = vmul.f32 %v3157, %v3193
  %v3198 = vmul.f32 %v3158, %v3194
  %v3199 = vmul.f32 %v3159, %v3195
  %s3200 = scalar_lea.vmem %s3, 32
  %v3201 = vld [vmem:[%s3200] sm:$0xff]
  %v3202 = vld [vmem:[%s3200 + $0x8] sm:$0xff]
  %v3203 = vld [vmem:[%s3200 + $0x10] sm:$0xff]
  %v3204 = vld [vmem:[%s3200 + $0x18] sm:$0xff]
  %3209 = vrot.lane.b32.xlu0 %v3196, 79
  %v3210 = vpop.permute.xlu0 %3209
  %3211 = vrot.lane.b32.xlu0 %v3197, 79
  %v3212 = vpop.permute.xlu0 %3211
  %3213 = vrot.lane.b32.xlu0 %v3198, 79
  %v3214 = vpop.permute.xlu0 %3213
  %3215 = vrot.lane.b32.xlu0 %v3199, 79
  %v3216 = vpop.permute.xlu0 %3215
  %3221 = vrot.lane.b32.xlu0 %v3210, 64
  %v3222 = vpop.permute.xlu0 %3221
  %v3223 = vsel %vm186, %v3222, %v3210
  %3224 = vrot.lane.b32.xlu0 %v3212, 64
  %v3225 = vpop.permute.xlu0 %3224
  %v3226 = vsel %vm186, %v3225, %v3212
  %3227 = vrot.lane.b32.xlu0 %v3214, 64
  %v3228 = vpop.permute.xlu0 %3227
  %v3229 = vsel %vm186, %v3228, %v3214
  %3230 = vrot.lane.b32.xlu0 %v3216, 64
  %v3231 = vpop.permute.xlu0 %3230
  %v3232 = vsel %vm186, %v3231, %v3216
  %3233 = vrot.lane.b32.xlu0 %v3223, 64
  %v3234 = vpop.permute.xlu0 %3233
  %3235 = vrot.lane.b32.xlu0 %v3226, 64
  %v3236 = vpop.permute.xlu0 %3235
  %3237 = vrot.lane.b32.xlu0 %v3229, 64
  %v3238 = vpop.permute.xlu0 %3237
  %3239 = vrot.lane.b32.xlu0 %v3232, 64
  %v3240 = vpop.permute.xlu0 %3239
  %v3241 = vsel %vm186, %v3234, %v3210
  %v3242 = vsel %vm186, %v3236, %v3212
  %v3243 = vsel %vm186, %v3238, %v3214
  %v3244 = vsel %vm186, %v3240, %v3216
  %v3245 = vmul.f32 %v3241, %v218
  %v3246 = vmul.f32 %v3242, %v218
  %v3247 = vmul.f32 %v3243, %v218
  %v3248 = vmul.f32 %v3244, %v218
  %3250 = vset.pattern.permute.xlu0 0
  %3251 = vperm.xlu0 %3250, %v3201
  %v3252 = vpop.permute.xlu0 %3251
  %3255 = vset.pattern.permute.xlu0 0
  %3256 = vperm.xlu0 %3255, %v3202
  %v3257 = vpop.permute.xlu0 %3256
  %3260 = vset.pattern.permute.xlu0 0
  %3261 = vperm.xlu0 %3260, %v3203
  %v3262 = vpop.permute.xlu0 %3261
  %3265 = vset.pattern.permute.xlu0 0
  %3266 = vperm.xlu0 %3265, %v3204
  %v3267 = vpop.permute.xlu0 %3266
  %v3269 = vmul.f32 %v3245, %v3252
  %v3270 = vmul.f32 %v3246, %v3257
  %v3271 = vmul.f32 %v3247, %v3262
  %v3272 = vmul.f32 %v3248, %v3267
  %v3273 = vadd.f32 %v3269, 0.0
  %v3274 = vadd.f32 %v3270, 0.0
  %v3275 = vadd.f32 %v3271, 0.0
  %v3276 = vadd.f32 %v3272, 0.0
  %3277 = vset.pattern.permute.xlu0 31
  %3278 = vperm.xlu0 %3277, %v3201
  %v3279 = vpop.permute.xlu0 %3278
  %3281 = vset.pattern.permute.xlu0 31
  %3282 = vperm.xlu0 %3281, %v3202
  %v3283 = vpop.permute.xlu0 %3282
  %3285 = vset.pattern.permute.xlu0 31
  %3286 = vperm.xlu0 %3285, %v3203
  %v3287 = vpop.permute.xlu0 %3286
  %3289 = vset.pattern.permute.xlu0 31
  %3290 = vperm.xlu0 %3289, %v3204
  %v3291 = vpop.permute.xlu0 %3290
  %v3293 = vmul.f32 %v3245, %v3279
  %v3294 = vmul.f32 %v3246, %v3283
  %v3295 = vmul.f32 %v3247, %v3287
  %v3296 = vmul.f32 %v3248, %v3291
  %v3297 = vadd.f32 %v3293, 0.0
  %v3298 = vadd.f32 %v3294, 0.0
  %v3299 = vadd.f32 %v3295, 0.0
  %v3300 = vadd.f32 %v3296, 0.0
  %v3301 = vmul.f32 %v3241, %v284
  %v3302 = vmul.f32 %v3242, %v284
  %v3303 = vmul.f32 %v3243, %v284
  %v3304 = vmul.f32 %v3244, %v284
  %3305 = vset.pattern.permute.xlu0 1
  %3306 = vperm.xlu0 %3305, %v3201
  %v3307 = vpop.permute.xlu0 %3306
  %3309 = vset.pattern.permute.xlu0 1
  %3310 = vperm.xlu0 %3309, %v3202
  %v3311 = vpop.permute.xlu0 %3310
  %3313 = vset.pattern.permute.xlu0 1
  %3314 = vperm.xlu0 %3313, %v3203
  %v3315 = vpop.permute.xlu0 %3314
  %3317 = vset.pattern.permute.xlu0 1
  %3318 = vperm.xlu0 %3317, %v3204
  %v3319 = vpop.permute.xlu0 %3318
  %v3321 = vmul.f32 %v3301, %v3307
  %v3322 = vmul.f32 %v3302, %v3311
  %v3323 = vmul.f32 %v3303, %v3315
  %v3324 = vmul.f32 %v3304, %v3319
  %3329 = vrot.lane.b32.xlu0 %v3321, 127
  %v3330 = vpop.permute.xlu0 %3329
  %3331 = vrot.lane.b32.xlu0 %v3322, 127
  %v3332 = vpop.permute.xlu0 %3331
  %3333 = vrot.lane.b32.xlu0 %v3323, 127
  %v3334 = vpop.permute.xlu0 %3333
  %3335 = vrot.lane.b32.xlu0 %v3324, 127
  %v3336 = vpop.permute.xlu0 %3335
  %v3341 = vadd.f32 %v3273, %v3330
  %v3342 = vadd.f32 %v3274, %v3332
  %v3343 = vadd.f32 %v3275, %v3334
  %v3344 = vadd.f32 %v3276, %v3336
  %3345 = vset.pattern.permute.xlu0 32
  %3346 = vperm.xlu0 %3345, %v3201
  %v3347 = vpop.permute.xlu0 %3346
  %3349 = vset.pattern.permute.xlu0 32
  %3350 = vperm.xlu0 %3349, %v3202
  %v3351 = vpop.permute.xlu0 %3350
  %3353 = vset.pattern.permute.xlu0 32
  %3354 = vperm.xlu0 %3353, %v3203
  %v3355 = vpop.permute.xlu0 %3354
  %3357 = vset.pattern.permute.xlu0 32
  %3358 = vperm.xlu0 %3357, %v3204
  %v3359 = vpop.permute.xlu0 %3358
  %v3361 = vmul.f32 %v3301, %v3347
  %v3362 = vmul.f32 %v3302, %v3351
  %v3363 = vmul.f32 %v3303, %v3355
  %v3364 = vmul.f32 %v3304, %v3359
  %3369 = vrot.lane.b32.xlu0 %v3361, 127
  %v3370 = vpop.permute.xlu0 %3369
  %3371 = vrot.lane.b32.xlu0 %v3362, 127
  %v3372 = vpop.permute.xlu0 %3371
  %3373 = vrot.lane.b32.xlu0 %v3363, 127
  %v3374 = vpop.permute.xlu0 %3373
  %3375 = vrot.lane.b32.xlu0 %v3364, 127
  %v3376 = vpop.permute.xlu0 %3375
  %v3381 = vadd.f32 %v3297, %v3370
  %v3382 = vadd.f32 %v3298, %v3372
  %v3383 = vadd.f32 %v3299, %v3374
  %v3384 = vadd.f32 %v3300, %v3376
  %v3385 = vmul.f32 %v3241, %v378
  %v3386 = vmul.f32 %v3242, %v378
  %v3387 = vmul.f32 %v3243, %v378
  %v3388 = vmul.f32 %v3244, %v378
  %3389 = vset.pattern.permute.xlu0 2
  %3390 = vperm.xlu0 %3389, %v3201
  %v3391 = vpop.permute.xlu0 %3390
  %3393 = vset.pattern.permute.xlu0 2
  %3394 = vperm.xlu0 %3393, %v3202
  %v3395 = vpop.permute.xlu0 %3394
  %3397 = vset.pattern.permute.xlu0 2
  %3398 = vperm.xlu0 %3397, %v3203
  %v3399 = vpop.permute.xlu0 %3398
  %3401 = vset.pattern.permute.xlu0 2
  %3402 = vperm.xlu0 %3401, %v3204
  %v3403 = vpop.permute.xlu0 %3402
  %v3405 = vmul.f32 %v3385, %v3391
  %v3406 = vmul.f32 %v3386, %v3395
  %v3407 = vmul.f32 %v3387, %v3399
  %v3408 = vmul.f32 %v3388, %v3403
  %3413 = vrot.lane.b32.xlu0 %v3405, 126
  %v3414 = vpop.permute.xlu0 %3413
  %3415 = vrot.lane.b32.xlu0 %v3406, 126
  %v3416 = vpop.permute.xlu0 %3415
  %3417 = vrot.lane.b32.xlu0 %v3407, 126
  %v3418 = vpop.permute.xlu0 %3417
  %3419 = vrot.lane.b32.xlu0 %v3408, 126
  %v3420 = vpop.permute.xlu0 %3419
  %v3425 = vadd.f32 %v3341, %v3414
  %v3426 = vadd.f32 %v3342, %v3416
  %v3427 = vadd.f32 %v3343, %v3418
  %v3428 = vadd.f32 %v3344, %v3420
  %3429 = vset.pattern.permute.xlu0 33
  %3430 = vperm.xlu0 %3429, %v3201
  %v3431 = vpop.permute.xlu0 %3430
  %3433 = vset.pattern.permute.xlu0 33
  %3434 = vperm.xlu0 %3433, %v3202
  %v3435 = vpop.permute.xlu0 %3434
  %3437 = vset.pattern.permute.xlu0 33
  %3438 = vperm.xlu0 %3437, %v3203
  %v3439 = vpop.permute.xlu0 %3438
  %3441 = vset.pattern.permute.xlu0 33
  %3442 = vperm.xlu0 %3441, %v3204
  %v3443 = vpop.permute.xlu0 %3442
  %v3445 = vmul.f32 %v3385, %v3431
  %v3446 = vmul.f32 %v3386, %v3435
  %v3447 = vmul.f32 %v3387, %v3439
  %v3448 = vmul.f32 %v3388, %v3443
  %3453 = vrot.lane.b32.xlu0 %v3445, 126
  %v3454 = vpop.permute.xlu0 %3453
  %3455 = vrot.lane.b32.xlu0 %v3446, 126
  %v3456 = vpop.permute.xlu0 %3455
  %3457 = vrot.lane.b32.xlu0 %v3447, 126
  %v3458 = vpop.permute.xlu0 %3457
  %3459 = vrot.lane.b32.xlu0 %v3448, 126
  %v3460 = vpop.permute.xlu0 %3459
  %v3465 = vadd.f32 %v3381, %v3454
  %v3466 = vadd.f32 %v3382, %v3456
  %v3467 = vadd.f32 %v3383, %v3458
  %v3468 = vadd.f32 %v3384, %v3460
  %v3469 = vmul.f32 %v3241, %v472
  %v3470 = vmul.f32 %v3242, %v472
  %v3471 = vmul.f32 %v3243, %v472
  %v3472 = vmul.f32 %v3244, %v472
  %3473 = vset.pattern.permute.xlu0 3
  %3474 = vperm.xlu0 %3473, %v3201
  %v3475 = vpop.permute.xlu0 %3474
  %3477 = vset.pattern.permute.xlu0 3
  %3478 = vperm.xlu0 %3477, %v3202
  %v3479 = vpop.permute.xlu0 %3478
  %3481 = vset.pattern.permute.xlu0 3
  %3482 = vperm.xlu0 %3481, %v3203
  %v3483 = vpop.permute.xlu0 %3482
  %3485 = vset.pattern.permute.xlu0 3
  %3486 = vperm.xlu0 %3485, %v3204
  %v3487 = vpop.permute.xlu0 %3486
  %v3489 = vmul.f32 %v3469, %v3475
  %v3490 = vmul.f32 %v3470, %v3479
  %v3491 = vmul.f32 %v3471, %v3483
  %v3492 = vmul.f32 %v3472, %v3487
  %3497 = vrot.lane.b32.xlu0 %v3489, 125
  %v3498 = vpop.permute.xlu0 %3497
  %3499 = vrot.lane.b32.xlu0 %v3490, 125
  %v3500 = vpop.permute.xlu0 %3499
  %3501 = vrot.lane.b32.xlu0 %v3491, 125
  %v3502 = vpop.permute.xlu0 %3501
  %3503 = vrot.lane.b32.xlu0 %v3492, 125
  %v3504 = vpop.permute.xlu0 %3503
  %v3509 = vadd.f32 %v3425, %v3498
  %v3510 = vadd.f32 %v3426, %v3500
  %v3511 = vadd.f32 %v3427, %v3502
  %v3512 = vadd.f32 %v3428, %v3504
  %3513 = vset.pattern.permute.xlu0 34
  %3514 = vperm.xlu0 %3513, %v3201
  %v3515 = vpop.permute.xlu0 %3514
  %3517 = vset.pattern.permute.xlu0 34
  %3518 = vperm.xlu0 %3517, %v3202
  %v3519 = vpop.permute.xlu0 %3518
  %3521 = vset.pattern.permute.xlu0 34
  %3522 = vperm.xlu0 %3521, %v3203
  %v3523 = vpop.permute.xlu0 %3522
  %3525 = vset.pattern.permute.xlu0 34
  %3526 = vperm.xlu0 %3525, %v3204
  %v3527 = vpop.permute.xlu0 %3526
  %v3529 = vmul.f32 %v3469, %v3515
  %v3530 = vmul.f32 %v3470, %v3519
  %v3531 = vmul.f32 %v3471, %v3523
  %v3532 = vmul.f32 %v3472, %v3527
  %3537 = vrot.lane.b32.xlu0 %v3529, 125
  %v3538 = vpop.permute.xlu0 %3537
  %3539 = vrot.lane.b32.xlu0 %v3530, 125
  %v3540 = vpop.permute.xlu0 %3539
  %3541 = vrot.lane.b32.xlu0 %v3531, 125
  %v3542 = vpop.permute.xlu0 %3541
  %3543 = vrot.lane.b32.xlu0 %v3532, 125
  %v3544 = vpop.permute.xlu0 %3543
  %v3549 = vadd.f32 %v3465, %v3538
  %v3550 = vadd.f32 %v3466, %v3540
  %v3551 = vadd.f32 %v3467, %v3542
  %v3552 = vadd.f32 %v3468, %v3544
  %v3553 = vmul.f32 %v3241, %v566
  %v3554 = vmul.f32 %v3242, %v566
  %v3555 = vmul.f32 %v3243, %v566
  %v3556 = vmul.f32 %v3244, %v566
  %3557 = vset.pattern.permute.xlu0 4
  %3558 = vperm.xlu0 %3557, %v3201
  %v3559 = vpop.permute.xlu0 %3558
  %3561 = vset.pattern.permute.xlu0 4
  %3562 = vperm.xlu0 %3561, %v3202
  %v3563 = vpop.permute.xlu0 %3562
  %3565 = vset.pattern.permute.xlu0 4
  %3566 = vperm.xlu0 %3565, %v3203
  %v3567 = vpop.permute.xlu0 %3566
  %3569 = vset.pattern.permute.xlu0 4
  %3570 = vperm.xlu0 %3569, %v3204
  %v3571 = vpop.permute.xlu0 %3570
  %v3573 = vmul.f32 %v3553, %v3559
  %v3574 = vmul.f32 %v3554, %v3563
  %v3575 = vmul.f32 %v3555, %v3567
  %v3576 = vmul.f32 %v3556, %v3571
  %3581 = vrot.lane.b32.xlu0 %v3573, 124
  %v3582 = vpop.permute.xlu0 %3581
  %3583 = vrot.lane.b32.xlu0 %v3574, 124
  %v3584 = vpop.permute.xlu0 %3583
  %3585 = vrot.lane.b32.xlu0 %v3575, 124
  %v3586 = vpop.permute.xlu0 %3585
  %3587 = vrot.lane.b32.xlu0 %v3576, 124
  %v3588 = vpop.permute.xlu0 %3587
  %v3593 = vadd.f32 %v3509, %v3582
  %v3594 = vadd.f32 %v3510, %v3584
  %v3595 = vadd.f32 %v3511, %v3586
  %v3596 = vadd.f32 %v3512, %v3588
  %3597 = vset.pattern.permute.xlu0 35
  %3598 = vperm.xlu0 %3597, %v3201
  %v3599 = vpop.permute.xlu0 %3598
  %3601 = vset.pattern.permute.xlu0 35
  %3602 = vperm.xlu0 %3601, %v3202
  %v3603 = vpop.permute.xlu0 %3602
  %3605 = vset.pattern.permute.xlu0 35
  %3606 = vperm.xlu0 %3605, %v3203
  %v3607 = vpop.permute.xlu0 %3606
  %3609 = vset.pattern.permute.xlu0 35
  %3610 = vperm.xlu0 %3609, %v3204
  %v3611 = vpop.permute.xlu0 %3610
  %v3613 = vmul.f32 %v3553, %v3599
  %v3614 = vmul.f32 %v3554, %v3603
  %v3615 = vmul.f32 %v3555, %v3607
  %v3616 = vmul.f32 %v3556, %v3611
  %3621 = vrot.lane.b32.xlu0 %v3613, 124
  %v3622 = vpop.permute.xlu0 %3621
  %3623 = vrot.lane.b32.xlu0 %v3614, 124
  %v3624 = vpop.permute.xlu0 %3623
  %3625 = vrot.lane.b32.xlu0 %v3615, 124
  %v3626 = vpop.permute.xlu0 %3625
  %3627 = vrot.lane.b32.xlu0 %v3616, 124
  %v3628 = vpop.permute.xlu0 %3627
  %v3633 = vadd.f32 %v3549, %v3622
  %v3634 = vadd.f32 %v3550, %v3624
  %v3635 = vadd.f32 %v3551, %v3626
  %v3636 = vadd.f32 %v3552, %v3628
  %v3637 = vmul.f32 %v3241, %v660
  %v3638 = vmul.f32 %v3242, %v660
  %v3639 = vmul.f32 %v3243, %v660
  %v3640 = vmul.f32 %v3244, %v660
  %3641 = vset.pattern.permute.xlu0 5
  %3642 = vperm.xlu0 %3641, %v3201
  %v3643 = vpop.permute.xlu0 %3642
  %3645 = vset.pattern.permute.xlu0 5
  %3646 = vperm.xlu0 %3645, %v3202
  %v3647 = vpop.permute.xlu0 %3646
  %3649 = vset.pattern.permute.xlu0 5
  %3650 = vperm.xlu0 %3649, %v3203
  %v3651 = vpop.permute.xlu0 %3650
  %3653 = vset.pattern.permute.xlu0 5
  %3654 = vperm.xlu0 %3653, %v3204
  %v3655 = vpop.permute.xlu0 %3654
  %v3657 = vmul.f32 %v3637, %v3643
  %v3658 = vmul.f32 %v3638, %v3647
  %v3659 = vmul.f32 %v3639, %v3651
  %v3660 = vmul.f32 %v3640, %v3655
  %3665 = vrot.lane.b32.xlu0 %v3657, 123
  %v3666 = vpop.permute.xlu0 %3665
  %3667 = vrot.lane.b32.xlu0 %v3658, 123
  %v3668 = vpop.permute.xlu0 %3667
  %3669 = vrot.lane.b32.xlu0 %v3659, 123
  %v3670 = vpop.permute.xlu0 %3669
  %3671 = vrot.lane.b32.xlu0 %v3660, 123
  %v3672 = vpop.permute.xlu0 %3671
  %v3677 = vadd.f32 %v3593, %v3666
  %v3678 = vadd.f32 %v3594, %v3668
  %v3679 = vadd.f32 %v3595, %v3670
  %v3680 = vadd.f32 %v3596, %v3672
  %3681 = vset.pattern.permute.xlu0 36
  %3682 = vperm.xlu0 %3681, %v3201
  %v3683 = vpop.permute.xlu0 %3682
  %3685 = vset.pattern.permute.xlu0 36
  %3686 = vperm.xlu0 %3685, %v3202
  %v3687 = vpop.permute.xlu0 %3686
  %3689 = vset.pattern.permute.xlu0 36
  %3690 = vperm.xlu0 %3689, %v3203
  %v3691 = vpop.permute.xlu0 %3690
  %3693 = vset.pattern.permute.xlu0 36
  %3694 = vperm.xlu0 %3693, %v3204
  %v3695 = vpop.permute.xlu0 %3694
  %v3697 = vmul.f32 %v3637, %v3683
  %v3698 = vmul.f32 %v3638, %v3687
  %v3699 = vmul.f32 %v3639, %v3691
  %v3700 = vmul.f32 %v3640, %v3695
  %3705 = vrot.lane.b32.xlu0 %v3697, 123
  %v3706 = vpop.permute.xlu0 %3705
  %3707 = vrot.lane.b32.xlu0 %v3698, 123
  %v3708 = vpop.permute.xlu0 %3707
  %3709 = vrot.lane.b32.xlu0 %v3699, 123
  %v3710 = vpop.permute.xlu0 %3709
  %3711 = vrot.lane.b32.xlu0 %v3700, 123
  %v3712 = vpop.permute.xlu0 %3711
  %v3717 = vadd.f32 %v3633, %v3706
  %v3718 = vadd.f32 %v3634, %v3708
  %v3719 = vadd.f32 %v3635, %v3710
  %v3720 = vadd.f32 %v3636, %v3712
  %v3721 = vmul.f32 %v3241, %v754
  %v3722 = vmul.f32 %v3242, %v754
  %v3723 = vmul.f32 %v3243, %v754
  %v3724 = vmul.f32 %v3244, %v754
  %3725 = vset.pattern.permute.xlu0 6
  %3726 = vperm.xlu0 %3725, %v3201
  %v3727 = vpop.permute.xlu0 %3726
  %3729 = vset.pattern.permute.xlu0 6
  %3730 = vperm.xlu0 %3729, %v3202
  %v3731 = vpop.permute.xlu0 %3730
  %3733 = vset.pattern.permute.xlu0 6
  %3734 = vperm.xlu0 %3733, %v3203
  %v3735 = vpop.permute.xlu0 %3734
  %3737 = vset.pattern.permute.xlu0 6
  %3738 = vperm.xlu0 %3737, %v3204
  %v3739 = vpop.permute.xlu0 %3738
  %v3741 = vmul.f32 %v3721, %v3727
  %v3742 = vmul.f32 %v3722, %v3731
  %v3743 = vmul.f32 %v3723, %v3735
  %v3744 = vmul.f32 %v3724, %v3739
  %3749 = vrot.lane.b32.xlu0 %v3741, 122
  %v3750 = vpop.permute.xlu0 %3749
  %3751 = vrot.lane.b32.xlu0 %v3742, 122
  %v3752 = vpop.permute.xlu0 %3751
  %3753 = vrot.lane.b32.xlu0 %v3743, 122
  %v3754 = vpop.permute.xlu0 %3753
  %3755 = vrot.lane.b32.xlu0 %v3744, 122
  %v3756 = vpop.permute.xlu0 %3755
  %v3761 = vadd.f32 %v3677, %v3750
  %v3762 = vadd.f32 %v3678, %v3752
  %v3763 = vadd.f32 %v3679, %v3754
  %v3764 = vadd.f32 %v3680, %v3756
  %3765 = vset.pattern.permute.xlu0 37
  %3766 = vperm.xlu0 %3765, %v3201
  %v3767 = vpop.permute.xlu0 %3766
  %3769 = vset.pattern.permute.xlu0 37
  %3770 = vperm.xlu0 %3769, %v3202
  %v3771 = vpop.permute.xlu0 %3770
  %3773 = vset.pattern.permute.xlu0 37
  %3774 = vperm.xlu0 %3773, %v3203
  %v3775 = vpop.permute.xlu0 %3774
  %3777 = vset.pattern.permute.xlu0 37
  %3778 = vperm.xlu0 %3777, %v3204
  %v3779 = vpop.permute.xlu0 %3778
  %v3781 = vmul.f32 %v3721, %v3767
  %v3782 = vmul.f32 %v3722, %v3771
  %v3783 = vmul.f32 %v3723, %v3775
  %v3784 = vmul.f32 %v3724, %v3779
  %3789 = vrot.lane.b32.xlu0 %v3781, 122
  %v3790 = vpop.permute.xlu0 %3789
  %3791 = vrot.lane.b32.xlu0 %v3782, 122
  %v3792 = vpop.permute.xlu0 %3791
  %3793 = vrot.lane.b32.xlu0 %v3783, 122
  %v3794 = vpop.permute.xlu0 %3793
  %3795 = vrot.lane.b32.xlu0 %v3784, 122
  %v3796 = vpop.permute.xlu0 %3795
  %v3801 = vadd.f32 %v3717, %v3790
  %v3802 = vadd.f32 %v3718, %v3792
  %v3803 = vadd.f32 %v3719, %v3794
  %v3804 = vadd.f32 %v3720, %v3796
  %v3805 = vmul.f32 %v3241, %v848
  %v3806 = vmul.f32 %v3242, %v848
  %v3807 = vmul.f32 %v3243, %v848
  %v3808 = vmul.f32 %v3244, %v848
  %3809 = vset.pattern.permute.xlu0 7
  %3810 = vperm.xlu0 %3809, %v3201
  %v3811 = vpop.permute.xlu0 %3810
  %3813 = vset.pattern.permute.xlu0 7
  %3814 = vperm.xlu0 %3813, %v3202
  %v3815 = vpop.permute.xlu0 %3814
  %3817 = vset.pattern.permute.xlu0 7
  %3818 = vperm.xlu0 %3817, %v3203
  %v3819 = vpop.permute.xlu0 %3818
  %3821 = vset.pattern.permute.xlu0 7
  %3822 = vperm.xlu0 %3821, %v3204
  %v3823 = vpop.permute.xlu0 %3822
  %v3825 = vmul.f32 %v3805, %v3811
  %v3826 = vmul.f32 %v3806, %v3815
  %v3827 = vmul.f32 %v3807, %v3819
  %v3828 = vmul.f32 %v3808, %v3823
  %3833 = vrot.lane.b32.xlu0 %v3825, 121
  %v3834 = vpop.permute.xlu0 %3833
  %3835 = vrot.lane.b32.xlu0 %v3826, 121
  %v3836 = vpop.permute.xlu0 %3835
  %3837 = vrot.lane.b32.xlu0 %v3827, 121
  %v3838 = vpop.permute.xlu0 %3837
  %3839 = vrot.lane.b32.xlu0 %v3828, 121
  %v3840 = vpop.permute.xlu0 %3839
  %v3845 = vadd.f32 %v3761, %v3834
  %v3846 = vadd.f32 %v3762, %v3836
  %v3847 = vadd.f32 %v3763, %v3838
  %v3848 = vadd.f32 %v3764, %v3840
  %3849 = vset.pattern.permute.xlu0 38
  %3850 = vperm.xlu0 %3849, %v3201
  %v3851 = vpop.permute.xlu0 %3850
  %3853 = vset.pattern.permute.xlu0 38
  %3854 = vperm.xlu0 %3853, %v3202
  %v3855 = vpop.permute.xlu0 %3854
  %3857 = vset.pattern.permute.xlu0 38
  %3858 = vperm.xlu0 %3857, %v3203
  %v3859 = vpop.permute.xlu0 %3858
  %3861 = vset.pattern.permute.xlu0 38
  %3862 = vperm.xlu0 %3861, %v3204
  %v3863 = vpop.permute.xlu0 %3862
  %v3865 = vmul.f32 %v3805, %v3851
  %v3866 = vmul.f32 %v3806, %v3855
  %v3867 = vmul.f32 %v3807, %v3859
  %v3868 = vmul.f32 %v3808, %v3863
  %3873 = vrot.lane.b32.xlu0 %v3865, 121
  %v3874 = vpop.permute.xlu0 %3873
  %3875 = vrot.lane.b32.xlu0 %v3866, 121
  %v3876 = vpop.permute.xlu0 %3875
  %3877 = vrot.lane.b32.xlu0 %v3867, 121
  %v3878 = vpop.permute.xlu0 %3877
  %3879 = vrot.lane.b32.xlu0 %v3868, 121
  %v3880 = vpop.permute.xlu0 %3879
  %v3885 = vadd.f32 %v3801, %v3874
  %v3886 = vadd.f32 %v3802, %v3876
  %v3887 = vadd.f32 %v3803, %v3878
  %v3888 = vadd.f32 %v3804, %v3880
  %v3889 = vmul.f32 %v3241, %v942
  %v3890 = vmul.f32 %v3242, %v942
  %v3891 = vmul.f32 %v3243, %v942
  %v3892 = vmul.f32 %v3244, %v942
  %3893 = vset.pattern.permute.xlu0 8
  %3894 = vperm.xlu0 %3893, %v3201
  %v3895 = vpop.permute.xlu0 %3894
  %3897 = vset.pattern.permute.xlu0 8
  %3898 = vperm.xlu0 %3897, %v3202
  %v3899 = vpop.permute.xlu0 %3898
  %3901 = vset.pattern.permute.xlu0 8
  %3902 = vperm.xlu0 %3901, %v3203
  %v3903 = vpop.permute.xlu0 %3902
  %3905 = vset.pattern.permute.xlu0 8
  %3906 = vperm.xlu0 %3905, %v3204
  %v3907 = vpop.permute.xlu0 %3906
  %v3909 = vmul.f32 %v3889, %v3895
  %v3910 = vmul.f32 %v3890, %v3899
  %v3911 = vmul.f32 %v3891, %v3903
  %v3912 = vmul.f32 %v3892, %v3907
  %3917 = vrot.lane.b32.xlu0 %v3909, 120
  %v3918 = vpop.permute.xlu0 %3917
  %3919 = vrot.lane.b32.xlu0 %v3910, 120
  %v3920 = vpop.permute.xlu0 %3919
  %3921 = vrot.lane.b32.xlu0 %v3911, 120
  %v3922 = vpop.permute.xlu0 %3921
  %3923 = vrot.lane.b32.xlu0 %v3912, 120
  %v3924 = vpop.permute.xlu0 %3923
  %v3929 = vadd.f32 %v3845, %v3918
  %v3930 = vadd.f32 %v3846, %v3920
  %v3931 = vadd.f32 %v3847, %v3922
  %v3932 = vadd.f32 %v3848, %v3924
  %3933 = vset.pattern.permute.xlu0 39
  %3934 = vperm.xlu0 %3933, %v3201
  %v3935 = vpop.permute.xlu0 %3934
  %3937 = vset.pattern.permute.xlu0 39
  %3938 = vperm.xlu0 %3937, %v3202
  %v3939 = vpop.permute.xlu0 %3938
  %3941 = vset.pattern.permute.xlu0 39
  %3942 = vperm.xlu0 %3941, %v3203
  %v3943 = vpop.permute.xlu0 %3942
  %3945 = vset.pattern.permute.xlu0 39
  %3946 = vperm.xlu0 %3945, %v3204
  %v3947 = vpop.permute.xlu0 %3946
  %v3949 = vmul.f32 %v3889, %v3935
  %v3950 = vmul.f32 %v3890, %v3939
  %v3951 = vmul.f32 %v3891, %v3943
  %v3952 = vmul.f32 %v3892, %v3947
  %3957 = vrot.lane.b32.xlu0 %v3949, 120
  %v3958 = vpop.permute.xlu0 %3957
  %3959 = vrot.lane.b32.xlu0 %v3950, 120
  %v3960 = vpop.permute.xlu0 %3959
  %3961 = vrot.lane.b32.xlu0 %v3951, 120
  %v3962 = vpop.permute.xlu0 %3961
  %3963 = vrot.lane.b32.xlu0 %v3952, 120
  %v3964 = vpop.permute.xlu0 %3963
  %v3969 = vadd.f32 %v3885, %v3958
  %v3970 = vadd.f32 %v3886, %v3960
  %v3971 = vadd.f32 %v3887, %v3962
  %v3972 = vadd.f32 %v3888, %v3964
  %v3973 = vmul.f32 %v3241, %v1036
  %v3974 = vmul.f32 %v3242, %v1036
  %v3975 = vmul.f32 %v3243, %v1036
  %v3976 = vmul.f32 %v3244, %v1036
  %3977 = vset.pattern.permute.xlu0 9
  %3978 = vperm.xlu0 %3977, %v3201
  %v3979 = vpop.permute.xlu0 %3978
  %3981 = vset.pattern.permute.xlu0 9
  %3982 = vperm.xlu0 %3981, %v3202
  %v3983 = vpop.permute.xlu0 %3982
  %3985 = vset.pattern.permute.xlu0 9
  %3986 = vperm.xlu0 %3985, %v3203
  %v3987 = vpop.permute.xlu0 %3986
  %3989 = vset.pattern.permute.xlu0 9
  %3990 = vperm.xlu0 %3989, %v3204
  %v3991 = vpop.permute.xlu0 %3990
  %v3993 = vmul.f32 %v3973, %v3979
  %v3994 = vmul.f32 %v3974, %v3983
  %v3995 = vmul.f32 %v3975, %v3987
  %v3996 = vmul.f32 %v3976, %v3991
  %4001 = vrot.lane.b32.xlu0 %v3993, 119
  %v4002 = vpop.permute.xlu0 %4001
  %4003 = vrot.lane.b32.xlu0 %v3994, 119
  %v4004 = vpop.permute.xlu0 %4003
  %4005 = vrot.lane.b32.xlu0 %v3995, 119
  %v4006 = vpop.permute.xlu0 %4005
  %4007 = vrot.lane.b32.xlu0 %v3996, 119
  %v4008 = vpop.permute.xlu0 %4007
  %v4013 = vadd.f32 %v3929, %v4002
  %v4014 = vadd.f32 %v3930, %v4004
  %v4015 = vadd.f32 %v3931, %v4006
  %v4016 = vadd.f32 %v3932, %v4008
  %4017 = vset.pattern.permute.xlu0 40
  %4018 = vperm.xlu0 %4017, %v3201
  %v4019 = vpop.permute.xlu0 %4018
  %4021 = vset.pattern.permute.xlu0 40
  %4022 = vperm.xlu0 %4021, %v3202
  %v4023 = vpop.permute.xlu0 %4022
  %4025 = vset.pattern.permute.xlu0 40
  %4026 = vperm.xlu0 %4025, %v3203
  %v4027 = vpop.permute.xlu0 %4026
  %4029 = vset.pattern.permute.xlu0 40
  %4030 = vperm.xlu0 %4029, %v3204
  %v4031 = vpop.permute.xlu0 %4030
  %v4033 = vmul.f32 %v3973, %v4019
  %v4034 = vmul.f32 %v3974, %v4023
  %v4035 = vmul.f32 %v3975, %v4027
  %v4036 = vmul.f32 %v3976, %v4031
  %4041 = vrot.lane.b32.xlu0 %v4033, 119
  %v4042 = vpop.permute.xlu0 %4041
  %4043 = vrot.lane.b32.xlu0 %v4034, 119
  %v4044 = vpop.permute.xlu0 %4043
  %4045 = vrot.lane.b32.xlu0 %v4035, 119
  %v4046 = vpop.permute.xlu0 %4045
  %4047 = vrot.lane.b32.xlu0 %v4036, 119
  %v4048 = vpop.permute.xlu0 %4047
  %v4053 = vadd.f32 %v3969, %v4042
  %v4054 = vadd.f32 %v3970, %v4044
  %v4055 = vadd.f32 %v3971, %v4046
  %v4056 = vadd.f32 %v3972, %v4048
  %v4057 = vmul.f32 %v3241, %v1130
  %v4058 = vmul.f32 %v3242, %v1130
  %v4059 = vmul.f32 %v3243, %v1130
  %v4060 = vmul.f32 %v3244, %v1130
  %4061 = vset.pattern.permute.xlu0 10
  %4062 = vperm.xlu0 %4061, %v3201
  %v4063 = vpop.permute.xlu0 %4062
  %4065 = vset.pattern.permute.xlu0 10
  %4066 = vperm.xlu0 %4065, %v3202
  %v4067 = vpop.permute.xlu0 %4066
  %4069 = vset.pattern.permute.xlu0 10
  %4070 = vperm.xlu0 %4069, %v3203
  %v4071 = vpop.permute.xlu0 %4070
  %4073 = vset.pattern.permute.xlu0 10
  %4074 = vperm.xlu0 %4073, %v3204
  %v4075 = vpop.permute.xlu0 %4074
  %v4077 = vmul.f32 %v4057, %v4063
  %v4078 = vmul.f32 %v4058, %v4067
  %v4079 = vmul.f32 %v4059, %v4071
  %v4080 = vmul.f32 %v4060, %v4075
  %4085 = vrot.lane.b32.xlu0 %v4077, 118
  %v4086 = vpop.permute.xlu0 %4085
  %4087 = vrot.lane.b32.xlu0 %v4078, 118
  %v4088 = vpop.permute.xlu0 %4087
  %4089 = vrot.lane.b32.xlu0 %v4079, 118
  %v4090 = vpop.permute.xlu0 %4089
  %4091 = vrot.lane.b32.xlu0 %v4080, 118
  %v4092 = vpop.permute.xlu0 %4091
  %v4097 = vadd.f32 %v4013, %v4086
  %v4098 = vadd.f32 %v4014, %v4088
  %v4099 = vadd.f32 %v4015, %v4090
  %v4100 = vadd.f32 %v4016, %v4092
  %4101 = vset.pattern.permute.xlu0 41
  %4102 = vperm.xlu0 %4101, %v3201
  %v4103 = vpop.permute.xlu0 %4102
  %4105 = vset.pattern.permute.xlu0 41
  %4106 = vperm.xlu0 %4105, %v3202
  %v4107 = vpop.permute.xlu0 %4106
  %4109 = vset.pattern.permute.xlu0 41
  %4110 = vperm.xlu0 %4109, %v3203
  %v4111 = vpop.permute.xlu0 %4110
  %4113 = vset.pattern.permute.xlu0 41
  %4114 = vperm.xlu0 %4113, %v3204
  %v4115 = vpop.permute.xlu0 %4114
  %v4117 = vmul.f32 %v4057, %v4103
  %v4118 = vmul.f32 %v4058, %v4107
  %v4119 = vmul.f32 %v4059, %v4111
  %v4120 = vmul.f32 %v4060, %v4115
  %4125 = vrot.lane.b32.xlu0 %v4117, 118
  %v4126 = vpop.permute.xlu0 %4125
  %4127 = vrot.lane.b32.xlu0 %v4118, 118
  %v4128 = vpop.permute.xlu0 %4127
  %4129 = vrot.lane.b32.xlu0 %v4119, 118
  %v4130 = vpop.permute.xlu0 %4129
  %4131 = vrot.lane.b32.xlu0 %v4120, 118
  %v4132 = vpop.permute.xlu0 %4131
  %v4137 = vadd.f32 %v4053, %v4126
  %v4138 = vadd.f32 %v4054, %v4128
  %v4139 = vadd.f32 %v4055, %v4130
  %v4140 = vadd.f32 %v4056, %v4132
  %v4141 = vmul.f32 %v3241, %v1224
  %v4142 = vmul.f32 %v3242, %v1224
  %v4143 = vmul.f32 %v3243, %v1224
  %v4144 = vmul.f32 %v3244, %v1224
  %4145 = vset.pattern.permute.xlu0 11
  %4146 = vperm.xlu0 %4145, %v3201
  %v4147 = vpop.permute.xlu0 %4146
  %4149 = vset.pattern.permute.xlu0 11
  %4150 = vperm.xlu0 %4149, %v3202
  %v4151 = vpop.permute.xlu0 %4150
  %4153 = vset.pattern.permute.xlu0 11
  %4154 = vperm.xlu0 %4153, %v3203
  %v4155 = vpop.permute.xlu0 %4154
  %4157 = vset.pattern.permute.xlu0 11
  %4158 = vperm.xlu0 %4157, %v3204
  %v4159 = vpop.permute.xlu0 %4158
  %v4161 = vmul.f32 %v4141, %v4147
  %v4162 = vmul.f32 %v4142, %v4151
  %v4163 = vmul.f32 %v4143, %v4155
  %v4164 = vmul.f32 %v4144, %v4159
  %4169 = vrot.lane.b32.xlu0 %v4161, 117
  %v4170 = vpop.permute.xlu0 %4169
  %4171 = vrot.lane.b32.xlu0 %v4162, 117
  %v4172 = vpop.permute.xlu0 %4171
  %4173 = vrot.lane.b32.xlu0 %v4163, 117
  %v4174 = vpop.permute.xlu0 %4173
  %4175 = vrot.lane.b32.xlu0 %v4164, 117
  %v4176 = vpop.permute.xlu0 %4175
  %v4181 = vadd.f32 %v4097, %v4170
  %v4182 = vadd.f32 %v4098, %v4172
  %v4183 = vadd.f32 %v4099, %v4174
  %v4184 = vadd.f32 %v4100, %v4176
  %4185 = vset.pattern.permute.xlu0 42
  %4186 = vperm.xlu0 %4185, %v3201
  %v4187 = vpop.permute.xlu0 %4186
  %4189 = vset.pattern.permute.xlu0 42
  %4190 = vperm.xlu0 %4189, %v3202
  %v4191 = vpop.permute.xlu0 %4190
  %4193 = vset.pattern.permute.xlu0 42
  %4194 = vperm.xlu0 %4193, %v3203
  %v4195 = vpop.permute.xlu0 %4194
  %4197 = vset.pattern.permute.xlu0 42
  %4198 = vperm.xlu0 %4197, %v3204
  %v4199 = vpop.permute.xlu0 %4198
  %v4201 = vmul.f32 %v4141, %v4187
  %v4202 = vmul.f32 %v4142, %v4191
  %v4203 = vmul.f32 %v4143, %v4195
  %v4204 = vmul.f32 %v4144, %v4199
  %4209 = vrot.lane.b32.xlu0 %v4201, 117
  %v4210 = vpop.permute.xlu0 %4209
  %4211 = vrot.lane.b32.xlu0 %v4202, 117
  %v4212 = vpop.permute.xlu0 %4211
  %4213 = vrot.lane.b32.xlu0 %v4203, 117
  %v4214 = vpop.permute.xlu0 %4213
  %4215 = vrot.lane.b32.xlu0 %v4204, 117
  %v4216 = vpop.permute.xlu0 %4215
  %v4221 = vadd.f32 %v4137, %v4210
  %v4222 = vadd.f32 %v4138, %v4212
  %v4223 = vadd.f32 %v4139, %v4214
  %v4224 = vadd.f32 %v4140, %v4216
  %v4225 = vmul.f32 %v3241, %v1318
  %v4226 = vmul.f32 %v3242, %v1318
  %v4227 = vmul.f32 %v3243, %v1318
  %v4228 = vmul.f32 %v3244, %v1318
  %4229 = vset.pattern.permute.xlu0 12
  %4230 = vperm.xlu0 %4229, %v3201
  %v4231 = vpop.permute.xlu0 %4230
  %4233 = vset.pattern.permute.xlu0 12
  %4234 = vperm.xlu0 %4233, %v3202
  %v4235 = vpop.permute.xlu0 %4234
  %4237 = vset.pattern.permute.xlu0 12
  %4238 = vperm.xlu0 %4237, %v3203
  %v4239 = vpop.permute.xlu0 %4238
  %4241 = vset.pattern.permute.xlu0 12
  %4242 = vperm.xlu0 %4241, %v3204
  %v4243 = vpop.permute.xlu0 %4242
  %v4245 = vmul.f32 %v4225, %v4231
  %v4246 = vmul.f32 %v4226, %v4235
  %v4247 = vmul.f32 %v4227, %v4239
  %v4248 = vmul.f32 %v4228, %v4243
  %4253 = vrot.lane.b32.xlu0 %v4245, 116
  %v4254 = vpop.permute.xlu0 %4253
  %4255 = vrot.lane.b32.xlu0 %v4246, 116
  %v4256 = vpop.permute.xlu0 %4255
  %4257 = vrot.lane.b32.xlu0 %v4247, 116
  %v4258 = vpop.permute.xlu0 %4257
  %4259 = vrot.lane.b32.xlu0 %v4248, 116
  %v4260 = vpop.permute.xlu0 %4259
  %v4265 = vadd.f32 %v4181, %v4254
  %v4266 = vadd.f32 %v4182, %v4256
  %v4267 = vadd.f32 %v4183, %v4258
  %v4268 = vadd.f32 %v4184, %v4260
  %4269 = vset.pattern.permute.xlu0 43
  %4270 = vperm.xlu0 %4269, %v3201
  %v4271 = vpop.permute.xlu0 %4270
  %4273 = vset.pattern.permute.xlu0 43
  %4274 = vperm.xlu0 %4273, %v3202
  %v4275 = vpop.permute.xlu0 %4274
  %4277 = vset.pattern.permute.xlu0 43
  %4278 = vperm.xlu0 %4277, %v3203
  %v4279 = vpop.permute.xlu0 %4278
  %4281 = vset.pattern.permute.xlu0 43
  %4282 = vperm.xlu0 %4281, %v3204
  %v4283 = vpop.permute.xlu0 %4282
  %v4285 = vmul.f32 %v4225, %v4271
  %v4286 = vmul.f32 %v4226, %v4275
  %v4287 = vmul.f32 %v4227, %v4279
  %v4288 = vmul.f32 %v4228, %v4283
  %4293 = vrot.lane.b32.xlu0 %v4285, 116
  %v4294 = vpop.permute.xlu0 %4293
  %4295 = vrot.lane.b32.xlu0 %v4286, 116
  %v4296 = vpop.permute.xlu0 %4295
  %4297 = vrot.lane.b32.xlu0 %v4287, 116
  %v4298 = vpop.permute.xlu0 %4297
  %4299 = vrot.lane.b32.xlu0 %v4288, 116
  %v4300 = vpop.permute.xlu0 %4299
  %v4305 = vadd.f32 %v4221, %v4294
  %v4306 = vadd.f32 %v4222, %v4296
  %v4307 = vadd.f32 %v4223, %v4298
  %v4308 = vadd.f32 %v4224, %v4300
  %v4309 = vmul.f32 %v3241, %v1412
  %v4310 = vmul.f32 %v3242, %v1412
  %v4311 = vmul.f32 %v3243, %v1412
  %v4312 = vmul.f32 %v3244, %v1412
  %4313 = vset.pattern.permute.xlu0 13
  %4314 = vperm.xlu0 %4313, %v3201
  %v4315 = vpop.permute.xlu0 %4314
  %4317 = vset.pattern.permute.xlu0 13
  %4318 = vperm.xlu0 %4317, %v3202
  %v4319 = vpop.permute.xlu0 %4318
  %4321 = vset.pattern.permute.xlu0 13
  %4322 = vperm.xlu0 %4321, %v3203
  %v4323 = vpop.permute.xlu0 %4322
  %4325 = vset.pattern.permute.xlu0 13
  %4326 = vperm.xlu0 %4325, %v3204
  %v4327 = vpop.permute.xlu0 %4326
  %v4329 = vmul.f32 %v4309, %v4315
  %v4330 = vmul.f32 %v4310, %v4319
  %v4331 = vmul.f32 %v4311, %v4323
  %v4332 = vmul.f32 %v4312, %v4327
  %4337 = vrot.lane.b32.xlu0 %v4329, 115
  %v4338 = vpop.permute.xlu0 %4337
  %4339 = vrot.lane.b32.xlu0 %v4330, 115
  %v4340 = vpop.permute.xlu0 %4339
  %4341 = vrot.lane.b32.xlu0 %v4331, 115
  %v4342 = vpop.permute.xlu0 %4341
  %4343 = vrot.lane.b32.xlu0 %v4332, 115
  %v4344 = vpop.permute.xlu0 %4343
  %v4349 = vadd.f32 %v4265, %v4338
  %v4350 = vadd.f32 %v4266, %v4340
  %v4351 = vadd.f32 %v4267, %v4342
  %v4352 = vadd.f32 %v4268, %v4344
  %4353 = vset.pattern.permute.xlu0 44
  %4354 = vperm.xlu0 %4353, %v3201
  %v4355 = vpop.permute.xlu0 %4354
  %4357 = vset.pattern.permute.xlu0 44
  %4358 = vperm.xlu0 %4357, %v3202
  %v4359 = vpop.permute.xlu0 %4358
  %4361 = vset.pattern.permute.xlu0 44
  %4362 = vperm.xlu0 %4361, %v3203
  %v4363 = vpop.permute.xlu0 %4362
  %4365 = vset.pattern.permute.xlu0 44
  %4366 = vperm.xlu0 %4365, %v3204
  %v4367 = vpop.permute.xlu0 %4366
  %v4369 = vmul.f32 %v4309, %v4355
  %v4370 = vmul.f32 %v4310, %v4359
  %v4371 = vmul.f32 %v4311, %v4363
  %v4372 = vmul.f32 %v4312, %v4367
  %4377 = vrot.lane.b32.xlu0 %v4369, 115
  %v4378 = vpop.permute.xlu0 %4377
  %4379 = vrot.lane.b32.xlu0 %v4370, 115
  %v4380 = vpop.permute.xlu0 %4379
  %4381 = vrot.lane.b32.xlu0 %v4371, 115
  %v4382 = vpop.permute.xlu0 %4381
  %4383 = vrot.lane.b32.xlu0 %v4372, 115
  %v4384 = vpop.permute.xlu0 %4383
  %v4389 = vadd.f32 %v4305, %v4378
  %v4390 = vadd.f32 %v4306, %v4380
  %v4391 = vadd.f32 %v4307, %v4382
  %v4392 = vadd.f32 %v4308, %v4384
  %v4393 = vmul.f32 %v3241, %v1506
  %v4394 = vmul.f32 %v3242, %v1506
  %v4395 = vmul.f32 %v3243, %v1506
  %v4396 = vmul.f32 %v3244, %v1506
  %4397 = vset.pattern.permute.xlu0 14
  %4398 = vperm.xlu0 %4397, %v3201
  %v4399 = vpop.permute.xlu0 %4398
  %4401 = vset.pattern.permute.xlu0 14
  %4402 = vperm.xlu0 %4401, %v3202
  %v4403 = vpop.permute.xlu0 %4402
  %4405 = vset.pattern.permute.xlu0 14
  %4406 = vperm.xlu0 %4405, %v3203
  %v4407 = vpop.permute.xlu0 %4406
  %4409 = vset.pattern.permute.xlu0 14
  %4410 = vperm.xlu0 %4409, %v3204
  %v4411 = vpop.permute.xlu0 %4410
  %v4413 = vmul.f32 %v4393, %v4399
  %v4414 = vmul.f32 %v4394, %v4403
  %v4415 = vmul.f32 %v4395, %v4407
  %v4416 = vmul.f32 %v4396, %v4411
  %4421 = vrot.lane.b32.xlu0 %v4413, 114
  %v4422 = vpop.permute.xlu0 %4421
  %4423 = vrot.lane.b32.xlu0 %v4414, 114
  %v4424 = vpop.permute.xlu0 %4423
  %4425 = vrot.lane.b32.xlu0 %v4415, 114
  %v4426 = vpop.permute.xlu0 %4425
  %4427 = vrot.lane.b32.xlu0 %v4416, 114
  %v4428 = vpop.permute.xlu0 %4427
  %v4433 = vadd.f32 %v4349, %v4422
  %v4434 = vadd.f32 %v4350, %v4424
  %v4435 = vadd.f32 %v4351, %v4426
  %v4436 = vadd.f32 %v4352, %v4428
  %4437 = vset.pattern.permute.xlu0 45
  %4438 = vperm.xlu0 %4437, %v3201
  %v4439 = vpop.permute.xlu0 %4438
  %4441 = vset.pattern.permute.xlu0 45
  %4442 = vperm.xlu0 %4441, %v3202
  %v4443 = vpop.permute.xlu0 %4442
  %4445 = vset.pattern.permute.xlu0 45
  %4446 = vperm.xlu0 %4445, %v3203
  %v4447 = vpop.permute.xlu0 %4446
  %4449 = vset.pattern.permute.xlu0 45
  %4450 = vperm.xlu0 %4449, %v3204
  %v4451 = vpop.permute.xlu0 %4450
  %v4453 = vmul.f32 %v4393, %v4439
  %v4454 = vmul.f32 %v4394, %v4443
  %v4455 = vmul.f32 %v4395, %v4447
  %v4456 = vmul.f32 %v4396, %v4451
  %4461 = vrot.lane.b32.xlu0 %v4453, 114
  %v4462 = vpop.permute.xlu0 %4461
  %4463 = vrot.lane.b32.xlu0 %v4454, 114
  %v4464 = vpop.permute.xlu0 %4463
  %4465 = vrot.lane.b32.xlu0 %v4455, 114
  %v4466 = vpop.permute.xlu0 %4465
  %4467 = vrot.lane.b32.xlu0 %v4456, 114
  %v4468 = vpop.permute.xlu0 %4467
  %v4473 = vadd.f32 %v4389, %v4462
  %v4474 = vadd.f32 %v4390, %v4464
  %v4475 = vadd.f32 %v4391, %v4466
  %v4476 = vadd.f32 %v4392, %v4468
  %4477 = vset.pattern.permute.xlu0 15
  %4478 = vperm.xlu0 %4477, %v3201
  %v4479 = vpop.permute.xlu0 %4478
  %4481 = vset.pattern.permute.xlu0 15
  %4482 = vperm.xlu0 %4481, %v3202
  %v4483 = vpop.permute.xlu0 %4482
  %4485 = vset.pattern.permute.xlu0 15
  %4486 = vperm.xlu0 %4485, %v3203
  %v4487 = vpop.permute.xlu0 %4486
  %4489 = vset.pattern.permute.xlu0 15
  %4490 = vperm.xlu0 %4489, %v3204
  %v4491 = vpop.permute.xlu0 %4490
  %v4493 = vmul.f32 %v3196, %v4479
  %v4494 = vmul.f32 %v3197, %v4483
  %v4495 = vmul.f32 %v3198, %v4487
  %v4496 = vmul.f32 %v3199, %v4491
  %v4497 = vadd.f32 %v4433, %v4493
  %v4498 = vadd.f32 %v4434, %v4494
  %v4499 = vadd.f32 %v4435, %v4495
  %v4500 = vadd.f32 %v4436, %v4496
  %4501 = vset.pattern.permute.xlu0 46
  %4502 = vperm.xlu0 %4501, %v3201
  %v4503 = vpop.permute.xlu0 %4502
  %4505 = vset.pattern.permute.xlu0 46
  %4506 = vperm.xlu0 %4505, %v3202
  %v4507 = vpop.permute.xlu0 %4506
  %4509 = vset.pattern.permute.xlu0 46
  %4510 = vperm.xlu0 %4509, %v3203
  %v4511 = vpop.permute.xlu0 %4510
  %4513 = vset.pattern.permute.xlu0 46
  %4514 = vperm.xlu0 %4513, %v3204
  %v4515 = vpop.permute.xlu0 %4514
  %v4517 = vmul.f32 %v3196, %v4503
  %v4518 = vmul.f32 %v3197, %v4507
  %v4519 = vmul.f32 %v3198, %v4511
  %v4520 = vmul.f32 %v3199, %v4515
  %v4521 = vadd.f32 %v4473, %v4517
  %v4522 = vadd.f32 %v4474, %v4518
  %v4523 = vadd.f32 %v4475, %v4519
  %v4524 = vadd.f32 %v4476, %v4520
  %v4525 = vmul.f32 %v3241, %v1680
  %v4526 = vmul.f32 %v3242, %v1680
  %v4527 = vmul.f32 %v3243, %v1680
  %v4528 = vmul.f32 %v3244, %v1680
  %4529 = vset.pattern.permute.xlu0 16
  %4530 = vperm.xlu0 %4529, %v3201
  %v4531 = vpop.permute.xlu0 %4530
  %4533 = vset.pattern.permute.xlu0 16
  %4534 = vperm.xlu0 %4533, %v3202
  %v4535 = vpop.permute.xlu0 %4534
  %4537 = vset.pattern.permute.xlu0 16
  %4538 = vperm.xlu0 %4537, %v3203
  %v4539 = vpop.permute.xlu0 %4538
  %4541 = vset.pattern.permute.xlu0 16
  %4542 = vperm.xlu0 %4541, %v3204
  %v4543 = vpop.permute.xlu0 %4542
  %v4545 = vmul.f32 %v4525, %v4531
  %v4546 = vmul.f32 %v4526, %v4535
  %v4547 = vmul.f32 %v4527, %v4539
  %v4548 = vmul.f32 %v4528, %v4543
  %4553 = vrot.lane.b32.xlu0 %v4545, 48
  %v4554 = vpop.permute.xlu0 %4553
  %4555 = vrot.lane.b32.xlu0 %v4546, 48
  %v4556 = vpop.permute.xlu0 %4555
  %4557 = vrot.lane.b32.xlu0 %v4547, 48
  %v4558 = vpop.permute.xlu0 %4557
  %4559 = vrot.lane.b32.xlu0 %v4548, 48
  %v4560 = vpop.permute.xlu0 %4559
  %v4565 = vadd.f32 %v4497, %v4554
  %v4566 = vadd.f32 %v4498, %v4556
  %v4567 = vadd.f32 %v4499, %v4558
  %v4568 = vadd.f32 %v4500, %v4560
  %4569 = vset.pattern.permute.xlu0 47
  %4570 = vperm.xlu0 %4569, %v3201
  %v4571 = vpop.permute.xlu0 %4570
  %4573 = vset.pattern.permute.xlu0 47
  %4574 = vperm.xlu0 %4573, %v3202
  %v4575 = vpop.permute.xlu0 %4574
  %4577 = vset.pattern.permute.xlu0 47
  %4578 = vperm.xlu0 %4577, %v3203
  %v4579 = vpop.permute.xlu0 %4578
  %4581 = vset.pattern.permute.xlu0 47
  %4582 = vperm.xlu0 %4581, %v3204
  %v4583 = vpop.permute.xlu0 %4582
  %v4585 = vmul.f32 %v4525, %v4571
  %v4586 = vmul.f32 %v4526, %v4575
  %v4587 = vmul.f32 %v4527, %v4579
  %v4588 = vmul.f32 %v4528, %v4583
  %4593 = vrot.lane.b32.xlu0 %v4585, 48
  %v4594 = vpop.permute.xlu0 %4593
  %4595 = vrot.lane.b32.xlu0 %v4586, 48
  %v4596 = vpop.permute.xlu0 %4595
  %4597 = vrot.lane.b32.xlu0 %v4587, 48
  %v4598 = vpop.permute.xlu0 %4597
  %4599 = vrot.lane.b32.xlu0 %v4588, 48
  %v4600 = vpop.permute.xlu0 %4599
  %v4605 = vadd.f32 %v4521, %v4594
  %v4606 = vadd.f32 %v4522, %v4596
  %v4607 = vadd.f32 %v4523, %v4598
  %v4608 = vadd.f32 %v4524, %v4600
  %v4609 = vmul.f32 %v3241, %v1774
  %v4610 = vmul.f32 %v3242, %v1774
  %v4611 = vmul.f32 %v3243, %v1774
  %v4612 = vmul.f32 %v3244, %v1774
  %4613 = vset.pattern.permute.xlu0 17
  %4614 = vperm.xlu0 %4613, %v3201
  %v4615 = vpop.permute.xlu0 %4614
  %4617 = vset.pattern.permute.xlu0 17
  %4618 = vperm.xlu0 %4617, %v3202
  %v4619 = vpop.permute.xlu0 %4618
  %4621 = vset.pattern.permute.xlu0 17
  %4622 = vperm.xlu0 %4621, %v3203
  %v4623 = vpop.permute.xlu0 %4622
  %4625 = vset.pattern.permute.xlu0 17
  %4626 = vperm.xlu0 %4625, %v3204
  %v4627 = vpop.permute.xlu0 %4626
  %v4629 = vmul.f32 %v4609, %v4615
  %v4630 = vmul.f32 %v4610, %v4619
  %v4631 = vmul.f32 %v4611, %v4623
  %v4632 = vmul.f32 %v4612, %v4627
  %4637 = vrot.lane.b32.xlu0 %v4629, 47
  %v4638 = vpop.permute.xlu0 %4637
  %4639 = vrot.lane.b32.xlu0 %v4630, 47
  %v4640 = vpop.permute.xlu0 %4639
  %4641 = vrot.lane.b32.xlu0 %v4631, 47
  %v4642 = vpop.permute.xlu0 %4641
  %4643 = vrot.lane.b32.xlu0 %v4632, 47
  %v4644 = vpop.permute.xlu0 %4643
  %v4649 = vadd.f32 %v4565, %v4638
  %v4650 = vadd.f32 %v4566, %v4640
  %v4651 = vadd.f32 %v4567, %v4642
  %v4652 = vadd.f32 %v4568, %v4644
  %4653 = vset.pattern.permute.xlu0 48
  %4654 = vperm.xlu0 %4653, %v3201
  %v4655 = vpop.permute.xlu0 %4654
  %4657 = vset.pattern.permute.xlu0 48
  %4658 = vperm.xlu0 %4657, %v3202
  %v4659 = vpop.permute.xlu0 %4658
  %4661 = vset.pattern.permute.xlu0 48
  %4662 = vperm.xlu0 %4661, %v3203
  %v4663 = vpop.permute.xlu0 %4662
  %4665 = vset.pattern.permute.xlu0 48
  %4666 = vperm.xlu0 %4665, %v3204
  %v4667 = vpop.permute.xlu0 %4666
  %v4669 = vmul.f32 %v4609, %v4655
  %v4670 = vmul.f32 %v4610, %v4659
  %v4671 = vmul.f32 %v4611, %v4663
  %v4672 = vmul.f32 %v4612, %v4667
  %4677 = vrot.lane.b32.xlu0 %v4669, 47
  %v4678 = vpop.permute.xlu0 %4677
  %4679 = vrot.lane.b32.xlu0 %v4670, 47
  %v4680 = vpop.permute.xlu0 %4679
  %4681 = vrot.lane.b32.xlu0 %v4671, 47
  %v4682 = vpop.permute.xlu0 %4681
  %4683 = vrot.lane.b32.xlu0 %v4672, 47
  %v4684 = vpop.permute.xlu0 %4683
  %v4689 = vadd.f32 %v4605, %v4678
  %v4690 = vadd.f32 %v4606, %v4680
  %v4691 = vadd.f32 %v4607, %v4682
  %v4692 = vadd.f32 %v4608, %v4684
  %v4693 = vmul.f32 %v3241, %v1868
  %v4694 = vmul.f32 %v3242, %v1868
  %v4695 = vmul.f32 %v3243, %v1868
  %v4696 = vmul.f32 %v3244, %v1868
  %4697 = vset.pattern.permute.xlu0 18
  %4698 = vperm.xlu0 %4697, %v3201
  %v4699 = vpop.permute.xlu0 %4698
  %4701 = vset.pattern.permute.xlu0 18
  %4702 = vperm.xlu0 %4701, %v3202
  %v4703 = vpop.permute.xlu0 %4702
  %4705 = vset.pattern.permute.xlu0 18
  %4706 = vperm.xlu0 %4705, %v3203
  %v4707 = vpop.permute.xlu0 %4706
  %4709 = vset.pattern.permute.xlu0 18
  %4710 = vperm.xlu0 %4709, %v3204
  %v4711 = vpop.permute.xlu0 %4710
  %v4713 = vmul.f32 %v4693, %v4699
  %v4714 = vmul.f32 %v4694, %v4703
  %v4715 = vmul.f32 %v4695, %v4707
  %v4716 = vmul.f32 %v4696, %v4711
  %4721 = vrot.lane.b32.xlu0 %v4713, 46
  %v4722 = vpop.permute.xlu0 %4721
  %4723 = vrot.lane.b32.xlu0 %v4714, 46
  %v4724 = vpop.permute.xlu0 %4723
  %4725 = vrot.lane.b32.xlu0 %v4715, 46
  %v4726 = vpop.permute.xlu0 %4725
  %4727 = vrot.lane.b32.xlu0 %v4716, 46
  %v4728 = vpop.permute.xlu0 %4727
  %v4733 = vadd.f32 %v4649, %v4722
  %v4734 = vadd.f32 %v4650, %v4724
  %v4735 = vadd.f32 %v4651, %v4726
  %v4736 = vadd.f32 %v4652, %v4728
  %4737 = vset.pattern.permute.xlu0 49
  %4738 = vperm.xlu0 %4737, %v3201
  %v4739 = vpop.permute.xlu0 %4738
  %4741 = vset.pattern.permute.xlu0 49
  %4742 = vperm.xlu0 %4741, %v3202
  %v4743 = vpop.permute.xlu0 %4742
  %4745 = vset.pattern.permute.xlu0 49
  %4746 = vperm.xlu0 %4745, %v3203
  %v4747 = vpop.permute.xlu0 %4746
  %4749 = vset.pattern.permute.xlu0 49
  %4750 = vperm.xlu0 %4749, %v3204
  %v4751 = vpop.permute.xlu0 %4750
  %v4753 = vmul.f32 %v4693, %v4739
  %v4754 = vmul.f32 %v4694, %v4743
  %v4755 = vmul.f32 %v4695, %v4747
  %v4756 = vmul.f32 %v4696, %v4751
  %4761 = vrot.lane.b32.xlu0 %v4753, 46
  %v4762 = vpop.permute.xlu0 %4761
  %4763 = vrot.lane.b32.xlu0 %v4754, 46
  %v4764 = vpop.permute.xlu0 %4763
  %4765 = vrot.lane.b32.xlu0 %v4755, 46
  %v4766 = vpop.permute.xlu0 %4765
  %4767 = vrot.lane.b32.xlu0 %v4756, 46
  %v4768 = vpop.permute.xlu0 %4767
  %v4773 = vadd.f32 %v4689, %v4762
  %v4774 = vadd.f32 %v4690, %v4764
  %v4775 = vadd.f32 %v4691, %v4766
  %v4776 = vadd.f32 %v4692, %v4768
  %v4777 = vmul.f32 %v3241, %v1962
  %v4778 = vmul.f32 %v3242, %v1962
  %v4779 = vmul.f32 %v3243, %v1962
  %v4780 = vmul.f32 %v3244, %v1962
  %4781 = vset.pattern.permute.xlu0 19
  %4782 = vperm.xlu0 %4781, %v3201
  %v4783 = vpop.permute.xlu0 %4782
  %4785 = vset.pattern.permute.xlu0 19
  %4786 = vperm.xlu0 %4785, %v3202
  %v4787 = vpop.permute.xlu0 %4786
  %4789 = vset.pattern.permute.xlu0 19
  %4790 = vperm.xlu0 %4789, %v3203
  %v4791 = vpop.permute.xlu0 %4790
  %4793 = vset.pattern.permute.xlu0 19
  %4794 = vperm.xlu0 %4793, %v3204
  %v4795 = vpop.permute.xlu0 %4794
  %v4797 = vmul.f32 %v4777, %v4783
  %v4798 = vmul.f32 %v4778, %v4787
  %v4799 = vmul.f32 %v4779, %v4791
  %v4800 = vmul.f32 %v4780, %v4795
  %4805 = vrot.lane.b32.xlu0 %v4797, 45
  %v4806 = vpop.permute.xlu0 %4805
  %4807 = vrot.lane.b32.xlu0 %v4798, 45
  %v4808 = vpop.permute.xlu0 %4807
  %4809 = vrot.lane.b32.xlu0 %v4799, 45
  %v4810 = vpop.permute.xlu0 %4809
  %4811 = vrot.lane.b32.xlu0 %v4800, 45
  %v4812 = vpop.permute.xlu0 %4811
  %v4817 = vadd.f32 %v4733, %v4806
  %v4818 = vadd.f32 %v4734, %v4808
  %v4819 = vadd.f32 %v4735, %v4810
  %v4820 = vadd.f32 %v4736, %v4812
  %4821 = vset.pattern.permute.xlu0 50
  %4822 = vperm.xlu0 %4821, %v3201
  %v4823 = vpop.permute.xlu0 %4822
  %4825 = vset.pattern.permute.xlu0 50
  %4826 = vperm.xlu0 %4825, %v3202
  %v4827 = vpop.permute.xlu0 %4826
  %4829 = vset.pattern.permute.xlu0 50
  %4830 = vperm.xlu0 %4829, %v3203
  %v4831 = vpop.permute.xlu0 %4830
  %4833 = vset.pattern.permute.xlu0 50
  %4834 = vperm.xlu0 %4833, %v3204
  %v4835 = vpop.permute.xlu0 %4834
  %v4837 = vmul.f32 %v4777, %v4823
  %v4838 = vmul.f32 %v4778, %v4827
  %v4839 = vmul.f32 %v4779, %v4831
  %v4840 = vmul.f32 %v4780, %v4835
  %4845 = vrot.lane.b32.xlu0 %v4837, 45
  %v4846 = vpop.permute.xlu0 %4845
  %4847 = vrot.lane.b32.xlu0 %v4838, 45
  %v4848 = vpop.permute.xlu0 %4847
  %4849 = vrot.lane.b32.xlu0 %v4839, 45
  %v4850 = vpop.permute.xlu0 %4849
  %4851 = vrot.lane.b32.xlu0 %v4840, 45
  %v4852 = vpop.permute.xlu0 %4851
  %v4857 = vadd.f32 %v4773, %v4846
  %v4858 = vadd.f32 %v4774, %v4848
  %v4859 = vadd.f32 %v4775, %v4850
  %v4860 = vadd.f32 %v4776, %v4852
  %v4861 = vmul.f32 %v3241, %v2056
  %v4862 = vmul.f32 %v3242, %v2056
  %v4863 = vmul.f32 %v3243, %v2056
  %v4864 = vmul.f32 %v3244, %v2056
  %4865 = vset.pattern.permute.xlu0 20
  %4866 = vperm.xlu0 %4865, %v3201
  %v4867 = vpop.permute.xlu0 %4866
  %4869 = vset.pattern.permute.xlu0 20
  %4870 = vperm.xlu0 %4869, %v3202
  %v4871 = vpop.permute.xlu0 %4870
  %4873 = vset.pattern.permute.xlu0 20
  %4874 = vperm.xlu0 %4873, %v3203
  %v4875 = vpop.permute.xlu0 %4874
  %4877 = vset.pattern.permute.xlu0 20
  %4878 = vperm.xlu0 %4877, %v3204
  %v4879 = vpop.permute.xlu0 %4878
  %v4881 = vmul.f32 %v4861, %v4867
  %v4882 = vmul.f32 %v4862, %v4871
  %v4883 = vmul.f32 %v4863, %v4875
  %v4884 = vmul.f32 %v4864, %v4879
  %4889 = vrot.lane.b32.xlu0 %v4881, 44
  %v4890 = vpop.permute.xlu0 %4889
  %4891 = vrot.lane.b32.xlu0 %v4882, 44
  %v4892 = vpop.permute.xlu0 %4891
  %4893 = vrot.lane.b32.xlu0 %v4883, 44
  %v4894 = vpop.permute.xlu0 %4893
  %4895 = vrot.lane.b32.xlu0 %v4884, 44
  %v4896 = vpop.permute.xlu0 %4895
  %v4901 = vadd.f32 %v4817, %v4890
  %v4902 = vadd.f32 %v4818, %v4892
  %v4903 = vadd.f32 %v4819, %v4894
  %v4904 = vadd.f32 %v4820, %v4896
  %4905 = vset.pattern.permute.xlu0 51
  %4906 = vperm.xlu0 %4905, %v3201
  %v4907 = vpop.permute.xlu0 %4906
  %4909 = vset.pattern.permute.xlu0 51
  %4910 = vperm.xlu0 %4909, %v3202
  %v4911 = vpop.permute.xlu0 %4910
  %4913 = vset.pattern.permute.xlu0 51
  %4914 = vperm.xlu0 %4913, %v3203
  %v4915 = vpop.permute.xlu0 %4914
  %4917 = vset.pattern.permute.xlu0 51
  %4918 = vperm.xlu0 %4917, %v3204
  %v4919 = vpop.permute.xlu0 %4918
  %v4921 = vmul.f32 %v4861, %v4907
  %v4922 = vmul.f32 %v4862, %v4911
  %v4923 = vmul.f32 %v4863, %v4915
  %v4924 = vmul.f32 %v4864, %v4919
  %4929 = vrot.lane.b32.xlu0 %v4921, 44
  %v4930 = vpop.permute.xlu0 %4929
  %4931 = vrot.lane.b32.xlu0 %v4922, 44
  %v4932 = vpop.permute.xlu0 %4931
  %4933 = vrot.lane.b32.xlu0 %v4923, 44
  %v4934 = vpop.permute.xlu0 %4933
  %4935 = vrot.lane.b32.xlu0 %v4924, 44
  %v4936 = vpop.permute.xlu0 %4935
  %v4941 = vadd.f32 %v4857, %v4930
  %v4942 = vadd.f32 %v4858, %v4932
  %v4943 = vadd.f32 %v4859, %v4934
  %v4944 = vadd.f32 %v4860, %v4936
  %v4945 = vmul.f32 %v3241, %v2150
  %v4946 = vmul.f32 %v3242, %v2150
  %v4947 = vmul.f32 %v3243, %v2150
  %v4948 = vmul.f32 %v3244, %v2150
  %4949 = vset.pattern.permute.xlu0 21
  %4950 = vperm.xlu0 %4949, %v3201
  %v4951 = vpop.permute.xlu0 %4950
  %4953 = vset.pattern.permute.xlu0 21
  %4954 = vperm.xlu0 %4953, %v3202
  %v4955 = vpop.permute.xlu0 %4954
  %4957 = vset.pattern.permute.xlu0 21
  %4958 = vperm.xlu0 %4957, %v3203
  %v4959 = vpop.permute.xlu0 %4958
  %4961 = vset.pattern.permute.xlu0 21
  %4962 = vperm.xlu0 %4961, %v3204
  %v4963 = vpop.permute.xlu0 %4962
  %v4965 = vmul.f32 %v4945, %v4951
  %v4966 = vmul.f32 %v4946, %v4955
  %v4967 = vmul.f32 %v4947, %v4959
  %v4968 = vmul.f32 %v4948, %v4963
  %4973 = vrot.lane.b32.xlu0 %v4965, 43
  %v4974 = vpop.permute.xlu0 %4973
  %4975 = vrot.lane.b32.xlu0 %v4966, 43
  %v4976 = vpop.permute.xlu0 %4975
  %4977 = vrot.lane.b32.xlu0 %v4967, 43
  %v4978 = vpop.permute.xlu0 %4977
  %4979 = vrot.lane.b32.xlu0 %v4968, 43
  %v4980 = vpop.permute.xlu0 %4979
  %v4985 = vadd.f32 %v4901, %v4974
  %v4986 = vadd.f32 %v4902, %v4976
  %v4987 = vadd.f32 %v4903, %v4978
  %v4988 = vadd.f32 %v4904, %v4980
  %4989 = vset.pattern.permute.xlu0 52
  %4990 = vperm.xlu0 %4989, %v3201
  %v4991 = vpop.permute.xlu0 %4990
  %4993 = vset.pattern.permute.xlu0 52
  %4994 = vperm.xlu0 %4993, %v3202
  %v4995 = vpop.permute.xlu0 %4994
  %4997 = vset.pattern.permute.xlu0 52
  %4998 = vperm.xlu0 %4997, %v3203
  %v4999 = vpop.permute.xlu0 %4998
  %5001 = vset.pattern.permute.xlu0 52
  %5002 = vperm.xlu0 %5001, %v3204
  %v5003 = vpop.permute.xlu0 %5002
  %v5005 = vmul.f32 %v4945, %v4991
  %v5006 = vmul.f32 %v4946, %v4995
  %v5007 = vmul.f32 %v4947, %v4999
  %v5008 = vmul.f32 %v4948, %v5003
  %5013 = vrot.lane.b32.xlu0 %v5005, 43
  %v5014 = vpop.permute.xlu0 %5013
  %5015 = vrot.lane.b32.xlu0 %v5006, 43
  %v5016 = vpop.permute.xlu0 %5015
  %5017 = vrot.lane.b32.xlu0 %v5007, 43
  %v5018 = vpop.permute.xlu0 %5017
  %5019 = vrot.lane.b32.xlu0 %v5008, 43
  %v5020 = vpop.permute.xlu0 %5019
  %v5025 = vadd.f32 %v4941, %v5014
  %v5026 = vadd.f32 %v4942, %v5016
  %v5027 = vadd.f32 %v4943, %v5018
  %v5028 = vadd.f32 %v4944, %v5020
  %v5029 = vmul.f32 %v3241, %v2244
  %v5030 = vmul.f32 %v3242, %v2244
  %v5031 = vmul.f32 %v3243, %v2244
  %v5032 = vmul.f32 %v3244, %v2244
  %5033 = vset.pattern.permute.xlu0 22
  %5034 = vperm.xlu0 %5033, %v3201
  %v5035 = vpop.permute.xlu0 %5034
  %5037 = vset.pattern.permute.xlu0 22
  %5038 = vperm.xlu0 %5037, %v3202
  %v5039 = vpop.permute.xlu0 %5038
  %5041 = vset.pattern.permute.xlu0 22
  %5042 = vperm.xlu0 %5041, %v3203
  %v5043 = vpop.permute.xlu0 %5042
  %5045 = vset.pattern.permute.xlu0 22
  %5046 = vperm.xlu0 %5045, %v3204
  %v5047 = vpop.permute.xlu0 %5046
  %v5049 = vmul.f32 %v5029, %v5035
  %v5050 = vmul.f32 %v5030, %v5039
  %v5051 = vmul.f32 %v5031, %v5043
  %v5052 = vmul.f32 %v5032, %v5047
  %5057 = vrot.lane.b32.xlu0 %v5049, 42
  %v5058 = vpop.permute.xlu0 %5057
  %5059 = vrot.lane.b32.xlu0 %v5050, 42
  %v5060 = vpop.permute.xlu0 %5059
  %5061 = vrot.lane.b32.xlu0 %v5051, 42
  %v5062 = vpop.permute.xlu0 %5061
  %5063 = vrot.lane.b32.xlu0 %v5052, 42
  %v5064 = vpop.permute.xlu0 %5063
  %v5069 = vadd.f32 %v4985, %v5058
  %v5070 = vadd.f32 %v4986, %v5060
  %v5071 = vadd.f32 %v4987, %v5062
  %v5072 = vadd.f32 %v4988, %v5064
  %5073 = vset.pattern.permute.xlu0 53
  %5074 = vperm.xlu0 %5073, %v3201
  %v5075 = vpop.permute.xlu0 %5074
  %5077 = vset.pattern.permute.xlu0 53
  %5078 = vperm.xlu0 %5077, %v3202
  %v5079 = vpop.permute.xlu0 %5078
  %5081 = vset.pattern.permute.xlu0 53
  %5082 = vperm.xlu0 %5081, %v3203
  %v5083 = vpop.permute.xlu0 %5082
  %5085 = vset.pattern.permute.xlu0 53
  %5086 = vperm.xlu0 %5085, %v3204
  %v5087 = vpop.permute.xlu0 %5086
  %v5089 = vmul.f32 %v5029, %v5075
  %v5090 = vmul.f32 %v5030, %v5079
  %v5091 = vmul.f32 %v5031, %v5083
  %v5092 = vmul.f32 %v5032, %v5087
  %5097 = vrot.lane.b32.xlu0 %v5089, 42
  %v5098 = vpop.permute.xlu0 %5097
  %5099 = vrot.lane.b32.xlu0 %v5090, 42
  %v5100 = vpop.permute.xlu0 %5099
  %5101 = vrot.lane.b32.xlu0 %v5091, 42
  %v5102 = vpop.permute.xlu0 %5101
  %5103 = vrot.lane.b32.xlu0 %v5092, 42
  %v5104 = vpop.permute.xlu0 %5103
  %v5109 = vadd.f32 %v5025, %v5098
  %v5110 = vadd.f32 %v5026, %v5100
  %v5111 = vadd.f32 %v5027, %v5102
  %v5112 = vadd.f32 %v5028, %v5104
  %v5113 = vmul.f32 %v3241, %v2338
  %v5114 = vmul.f32 %v3242, %v2338
  %v5115 = vmul.f32 %v3243, %v2338
  %v5116 = vmul.f32 %v3244, %v2338
  %5117 = vset.pattern.permute.xlu0 23
  %5118 = vperm.xlu0 %5117, %v3201
  %v5119 = vpop.permute.xlu0 %5118
  %5121 = vset.pattern.permute.xlu0 23
  %5122 = vperm.xlu0 %5121, %v3202
  %v5123 = vpop.permute.xlu0 %5122
  %5125 = vset.pattern.permute.xlu0 23
  %5126 = vperm.xlu0 %5125, %v3203
  %v5127 = vpop.permute.xlu0 %5126
  %5129 = vset.pattern.permute.xlu0 23
  %5130 = vperm.xlu0 %5129, %v3204
  %v5131 = vpop.permute.xlu0 %5130
  %v5133 = vmul.f32 %v5113, %v5119
  %v5134 = vmul.f32 %v5114, %v5123
  %v5135 = vmul.f32 %v5115, %v5127
  %v5136 = vmul.f32 %v5116, %v5131
  %5141 = vrot.lane.b32.xlu0 %v5133, 41
  %v5142 = vpop.permute.xlu0 %5141
  %5143 = vrot.lane.b32.xlu0 %v5134, 41
  %v5144 = vpop.permute.xlu0 %5143
  %5145 = vrot.lane.b32.xlu0 %v5135, 41
  %v5146 = vpop.permute.xlu0 %5145
  %5147 = vrot.lane.b32.xlu0 %v5136, 41
  %v5148 = vpop.permute.xlu0 %5147
  %v5153 = vadd.f32 %v5069, %v5142
  %v5154 = vadd.f32 %v5070, %v5144
  %v5155 = vadd.f32 %v5071, %v5146
  %v5156 = vadd.f32 %v5072, %v5148
  %5157 = vset.pattern.permute.xlu0 54
  %5158 = vperm.xlu0 %5157, %v3201
  %v5159 = vpop.permute.xlu0 %5158
  %5161 = vset.pattern.permute.xlu0 54
  %5162 = vperm.xlu0 %5161, %v3202
  %v5163 = vpop.permute.xlu0 %5162
  %5165 = vset.pattern.permute.xlu0 54
  %5166 = vperm.xlu0 %5165, %v3203
  %v5167 = vpop.permute.xlu0 %5166
  %5169 = vset.pattern.permute.xlu0 54
  %5170 = vperm.xlu0 %5169, %v3204
  %v5171 = vpop.permute.xlu0 %5170
  %v5173 = vmul.f32 %v5113, %v5159
  %v5174 = vmul.f32 %v5114, %v5163
  %v5175 = vmul.f32 %v5115, %v5167
  %v5176 = vmul.f32 %v5116, %v5171
  %5181 = vrot.lane.b32.xlu0 %v5173, 41
  %v5182 = vpop.permute.xlu0 %5181
  %5183 = vrot.lane.b32.xlu0 %v5174, 41
  %v5184 = vpop.permute.xlu0 %5183
  %5185 = vrot.lane.b32.xlu0 %v5175, 41
  %v5186 = vpop.permute.xlu0 %5185
  %5187 = vrot.lane.b32.xlu0 %v5176, 41
  %v5188 = vpop.permute.xlu0 %5187
  %v5193 = vadd.f32 %v5109, %v5182
  %v5194 = vadd.f32 %v5110, %v5184
  %v5195 = vadd.f32 %v5111, %v5186
  %v5196 = vadd.f32 %v5112, %v5188
  %v5197 = vmul.f32 %v3241, %v2432
  %v5198 = vmul.f32 %v3242, %v2432
  %v5199 = vmul.f32 %v3243, %v2432
  %v5200 = vmul.f32 %v3244, %v2432
  %5201 = vset.pattern.permute.xlu0 24
  %5202 = vperm.xlu0 %5201, %v3201
  %v5203 = vpop.permute.xlu0 %5202
  %5205 = vset.pattern.permute.xlu0 24
  %5206 = vperm.xlu0 %5205, %v3202
  %v5207 = vpop.permute.xlu0 %5206
  %5209 = vset.pattern.permute.xlu0 24
  %5210 = vperm.xlu0 %5209, %v3203
  %v5211 = vpop.permute.xlu0 %5210
  %5213 = vset.pattern.permute.xlu0 24
  %5214 = vperm.xlu0 %5213, %v3204
  %v5215 = vpop.permute.xlu0 %5214
  %v5217 = vmul.f32 %v5197, %v5203
  %v5218 = vmul.f32 %v5198, %v5207
  %v5219 = vmul.f32 %v5199, %v5211
  %v5220 = vmul.f32 %v5200, %v5215
  %5225 = vrot.lane.b32.xlu0 %v5217, 40
  %v5226 = vpop.permute.xlu0 %5225
  %5227 = vrot.lane.b32.xlu0 %v5218, 40
  %v5228 = vpop.permute.xlu0 %5227
  %5229 = vrot.lane.b32.xlu0 %v5219, 40
  %v5230 = vpop.permute.xlu0 %5229
  %5231 = vrot.lane.b32.xlu0 %v5220, 40
  %v5232 = vpop.permute.xlu0 %5231
  %v5237 = vadd.f32 %v5153, %v5226
  %v5238 = vadd.f32 %v5154, %v5228
  %v5239 = vadd.f32 %v5155, %v5230
  %v5240 = vadd.f32 %v5156, %v5232
  %5241 = vset.pattern.permute.xlu0 55
  %5242 = vperm.xlu0 %5241, %v3201
  %v5243 = vpop.permute.xlu0 %5242
  %5245 = vset.pattern.permute.xlu0 55
  %5246 = vperm.xlu0 %5245, %v3202
  %v5247 = vpop.permute.xlu0 %5246
  %5249 = vset.pattern.permute.xlu0 55
  %5250 = vperm.xlu0 %5249, %v3203
  %v5251 = vpop.permute.xlu0 %5250
  %5253 = vset.pattern.permute.xlu0 55
  %5254 = vperm.xlu0 %5253, %v3204
  %v5255 = vpop.permute.xlu0 %5254
  %v5257 = vmul.f32 %v5197, %v5243
  %v5258 = vmul.f32 %v5198, %v5247
  %v5259 = vmul.f32 %v5199, %v5251
  %v5260 = vmul.f32 %v5200, %v5255
  %5265 = vrot.lane.b32.xlu0 %v5257, 40
  %v5266 = vpop.permute.xlu0 %5265
  %5267 = vrot.lane.b32.xlu0 %v5258, 40
  %v5268 = vpop.permute.xlu0 %5267
  %5269 = vrot.lane.b32.xlu0 %v5259, 40
  %v5270 = vpop.permute.xlu0 %5269
  %5271 = vrot.lane.b32.xlu0 %v5260, 40
  %v5272 = vpop.permute.xlu0 %5271
  %v5277 = vadd.f32 %v5193, %v5266
  %v5278 = vadd.f32 %v5194, %v5268
  %v5279 = vadd.f32 %v5195, %v5270
  %v5280 = vadd.f32 %v5196, %v5272
  %v5281 = vmul.f32 %v3241, %v2526
  %v5282 = vmul.f32 %v3242, %v2526
  %v5283 = vmul.f32 %v3243, %v2526
  %v5284 = vmul.f32 %v3244, %v2526
  %5285 = vset.pattern.permute.xlu0 25
  %5286 = vperm.xlu0 %5285, %v3201
  %v5287 = vpop.permute.xlu0 %5286
  %5289 = vset.pattern.permute.xlu0 25
  %5290 = vperm.xlu0 %5289, %v3202
  %v5291 = vpop.permute.xlu0 %5290
  %5293 = vset.pattern.permute.xlu0 25
  %5294 = vperm.xlu0 %5293, %v3203
  %v5295 = vpop.permute.xlu0 %5294
  %5297 = vset.pattern.permute.xlu0 25
  %5298 = vperm.xlu0 %5297, %v3204
  %v5299 = vpop.permute.xlu0 %5298
  %v5301 = vmul.f32 %v5281, %v5287
  %v5302 = vmul.f32 %v5282, %v5291
  %v5303 = vmul.f32 %v5283, %v5295
  %v5304 = vmul.f32 %v5284, %v5299
  %5309 = vrot.lane.b32.xlu0 %v5301, 39
  %v5310 = vpop.permute.xlu0 %5309
  %5311 = vrot.lane.b32.xlu0 %v5302, 39
  %v5312 = vpop.permute.xlu0 %5311
  %5313 = vrot.lane.b32.xlu0 %v5303, 39
  %v5314 = vpop.permute.xlu0 %5313
  %5315 = vrot.lane.b32.xlu0 %v5304, 39
  %v5316 = vpop.permute.xlu0 %5315
  %v5321 = vadd.f32 %v5237, %v5310
  %v5322 = vadd.f32 %v5238, %v5312
  %v5323 = vadd.f32 %v5239, %v5314
  %v5324 = vadd.f32 %v5240, %v5316
  %5325 = vset.pattern.permute.xlu0 56
  %5326 = vperm.xlu0 %5325, %v3201
  %v5327 = vpop.permute.xlu0 %5326
  %5329 = vset.pattern.permute.xlu0 56
  %5330 = vperm.xlu0 %5329, %v3202
  %v5331 = vpop.permute.xlu0 %5330
  %5333 = vset.pattern.permute.xlu0 56
  %5334 = vperm.xlu0 %5333, %v3203
  %v5335 = vpop.permute.xlu0 %5334
  %5337 = vset.pattern.permute.xlu0 56
  %5338 = vperm.xlu0 %5337, %v3204
  %v5339 = vpop.permute.xlu0 %5338
  %v5341 = vmul.f32 %v5281, %v5327
  %v5342 = vmul.f32 %v5282, %v5331
  %v5343 = vmul.f32 %v5283, %v5335
  %v5344 = vmul.f32 %v5284, %v5339
  %5349 = vrot.lane.b32.xlu0 %v5341, 39
  %v5350 = vpop.permute.xlu0 %5349
  %5351 = vrot.lane.b32.xlu0 %v5342, 39
  %v5352 = vpop.permute.xlu0 %5351
  %5353 = vrot.lane.b32.xlu0 %v5343, 39
  %v5354 = vpop.permute.xlu0 %5353
  %5355 = vrot.lane.b32.xlu0 %v5344, 39
  %v5356 = vpop.permute.xlu0 %5355
  %v5361 = vadd.f32 %v5277, %v5350
  %v5362 = vadd.f32 %v5278, %v5352
  %v5363 = vadd.f32 %v5279, %v5354
  %v5364 = vadd.f32 %v5280, %v5356
  %v5365 = vmul.f32 %v3241, %v2620
  %v5366 = vmul.f32 %v3242, %v2620
  %v5367 = vmul.f32 %v3243, %v2620
  %v5368 = vmul.f32 %v3244, %v2620
  %5369 = vset.pattern.permute.xlu0 26
  %5370 = vperm.xlu0 %5369, %v3201
  %v5371 = vpop.permute.xlu0 %5370
  %5373 = vset.pattern.permute.xlu0 26
  %5374 = vperm.xlu0 %5373, %v3202
  %v5375 = vpop.permute.xlu0 %5374
  %5377 = vset.pattern.permute.xlu0 26
  %5378 = vperm.xlu0 %5377, %v3203
  %v5379 = vpop.permute.xlu0 %5378
  %5381 = vset.pattern.permute.xlu0 26
  %5382 = vperm.xlu0 %5381, %v3204
  %v5383 = vpop.permute.xlu0 %5382
  %v5385 = vmul.f32 %v5365, %v5371
  %v5386 = vmul.f32 %v5366, %v5375
  %v5387 = vmul.f32 %v5367, %v5379
  %v5388 = vmul.f32 %v5368, %v5383
  %5393 = vrot.lane.b32.xlu0 %v5385, 38
  %v5394 = vpop.permute.xlu0 %5393
  %5395 = vrot.lane.b32.xlu0 %v5386, 38
  %v5396 = vpop.permute.xlu0 %5395
  %5397 = vrot.lane.b32.xlu0 %v5387, 38
  %v5398 = vpop.permute.xlu0 %5397
  %5399 = vrot.lane.b32.xlu0 %v5388, 38
  %v5400 = vpop.permute.xlu0 %5399
  %v5405 = vadd.f32 %v5321, %v5394
  %v5406 = vadd.f32 %v5322, %v5396
  %v5407 = vadd.f32 %v5323, %v5398
  %v5408 = vadd.f32 %v5324, %v5400
  %5409 = vset.pattern.permute.xlu0 57
  %5410 = vperm.xlu0 %5409, %v3201
  %v5411 = vpop.permute.xlu0 %5410
  %5413 = vset.pattern.permute.xlu0 57
  %5414 = vperm.xlu0 %5413, %v3202
  %v5415 = vpop.permute.xlu0 %5414
  %5417 = vset.pattern.permute.xlu0 57
  %5418 = vperm.xlu0 %5417, %v3203
  %v5419 = vpop.permute.xlu0 %5418
  %5421 = vset.pattern.permute.xlu0 57
  %5422 = vperm.xlu0 %5421, %v3204
  %v5423 = vpop.permute.xlu0 %5422
  %v5425 = vmul.f32 %v5365, %v5411
  %v5426 = vmul.f32 %v5366, %v5415
  %v5427 = vmul.f32 %v5367, %v5419
  %v5428 = vmul.f32 %v5368, %v5423
  %5433 = vrot.lane.b32.xlu0 %v5425, 38
  %v5434 = vpop.permute.xlu0 %5433
  %5435 = vrot.lane.b32.xlu0 %v5426, 38
  %v5436 = vpop.permute.xlu0 %5435
  %5437 = vrot.lane.b32.xlu0 %v5427, 38
  %v5438 = vpop.permute.xlu0 %5437
  %5439 = vrot.lane.b32.xlu0 %v5428, 38
  %v5440 = vpop.permute.xlu0 %5439
  %v5445 = vadd.f32 %v5361, %v5434
  %v5446 = vadd.f32 %v5362, %v5436
  %v5447 = vadd.f32 %v5363, %v5438
  %v5448 = vadd.f32 %v5364, %v5440
  %v5449 = vmul.f32 %v3241, %v2714
  %v5450 = vmul.f32 %v3242, %v2714
  %v5451 = vmul.f32 %v3243, %v2714
  %v5452 = vmul.f32 %v3244, %v2714
  %5453 = vset.pattern.permute.xlu0 27
  %5454 = vperm.xlu0 %5453, %v3201
  %v5455 = vpop.permute.xlu0 %5454
  %5457 = vset.pattern.permute.xlu0 27
  %5458 = vperm.xlu0 %5457, %v3202
  %v5459 = vpop.permute.xlu0 %5458
  %5461 = vset.pattern.permute.xlu0 27
  %5462 = vperm.xlu0 %5461, %v3203
  %v5463 = vpop.permute.xlu0 %5462
  %5465 = vset.pattern.permute.xlu0 27
  %5466 = vperm.xlu0 %5465, %v3204
  %v5467 = vpop.permute.xlu0 %5466
  %v5469 = vmul.f32 %v5449, %v5455
  %v5470 = vmul.f32 %v5450, %v5459
  %v5471 = vmul.f32 %v5451, %v5463
  %v5472 = vmul.f32 %v5452, %v5467
  %5477 = vrot.lane.b32.xlu0 %v5469, 37
  %v5478 = vpop.permute.xlu0 %5477
  %5479 = vrot.lane.b32.xlu0 %v5470, 37
  %v5480 = vpop.permute.xlu0 %5479
  %5481 = vrot.lane.b32.xlu0 %v5471, 37
  %v5482 = vpop.permute.xlu0 %5481
  %5483 = vrot.lane.b32.xlu0 %v5472, 37
  %v5484 = vpop.permute.xlu0 %5483
  %v5489 = vadd.f32 %v5405, %v5478
  %v5490 = vadd.f32 %v5406, %v5480
  %v5491 = vadd.f32 %v5407, %v5482
  %v5492 = vadd.f32 %v5408, %v5484
  %5493 = vset.pattern.permute.xlu0 58
  %5494 = vperm.xlu0 %5493, %v3201
  %v5495 = vpop.permute.xlu0 %5494
  %5497 = vset.pattern.permute.xlu0 58
  %5498 = vperm.xlu0 %5497, %v3202
  %v5499 = vpop.permute.xlu0 %5498
  %5501 = vset.pattern.permute.xlu0 58
  %5502 = vperm.xlu0 %5501, %v3203
  %v5503 = vpop.permute.xlu0 %5502
  %5505 = vset.pattern.permute.xlu0 58
  %5506 = vperm.xlu0 %5505, %v3204
  %v5507 = vpop.permute.xlu0 %5506
  %v5509 = vmul.f32 %v5449, %v5495
  %v5510 = vmul.f32 %v5450, %v5499
  %v5511 = vmul.f32 %v5451, %v5503
  %v5512 = vmul.f32 %v5452, %v5507
  %5517 = vrot.lane.b32.xlu0 %v5509, 37
  %v5518 = vpop.permute.xlu0 %5517
  %5519 = vrot.lane.b32.xlu0 %v5510, 37
  %v5520 = vpop.permute.xlu0 %5519
  %5521 = vrot.lane.b32.xlu0 %v5511, 37
  %v5522 = vpop.permute.xlu0 %5521
  %5523 = vrot.lane.b32.xlu0 %v5512, 37
  %v5524 = vpop.permute.xlu0 %5523
  %v5529 = vadd.f32 %v5445, %v5518
  %v5530 = vadd.f32 %v5446, %v5520
  %v5531 = vadd.f32 %v5447, %v5522
  %v5532 = vadd.f32 %v5448, %v5524
  %v5533 = vmul.f32 %v3241, %v2808
  %v5534 = vmul.f32 %v3242, %v2808
  %v5535 = vmul.f32 %v3243, %v2808
  %v5536 = vmul.f32 %v3244, %v2808
  %5537 = vset.pattern.permute.xlu0 28
  %5538 = vperm.xlu0 %5537, %v3201
  %v5539 = vpop.permute.xlu0 %5538
  %5541 = vset.pattern.permute.xlu0 28
  %5542 = vperm.xlu0 %5541, %v3202
  %v5543 = vpop.permute.xlu0 %5542
  %5545 = vset.pattern.permute.xlu0 28
  %5546 = vperm.xlu0 %5545, %v3203
  %v5547 = vpop.permute.xlu0 %5546
  %5549 = vset.pattern.permute.xlu0 28
  %5550 = vperm.xlu0 %5549, %v3204
  %v5551 = vpop.permute.xlu0 %5550
  %v5553 = vmul.f32 %v5533, %v5539
  %v5554 = vmul.f32 %v5534, %v5543
  %v5555 = vmul.f32 %v5535, %v5547
  %v5556 = vmul.f32 %v5536, %v5551
  %5561 = vrot.lane.b32.xlu0 %v5553, 36
  %v5562 = vpop.permute.xlu0 %5561
  %5563 = vrot.lane.b32.xlu0 %v5554, 36
  %v5564 = vpop.permute.xlu0 %5563
  %5565 = vrot.lane.b32.xlu0 %v5555, 36
  %v5566 = vpop.permute.xlu0 %5565
  %5567 = vrot.lane.b32.xlu0 %v5556, 36
  %v5568 = vpop.permute.xlu0 %5567
  %v5573 = vadd.f32 %v5489, %v5562
  %v5574 = vadd.f32 %v5490, %v5564
  %v5575 = vadd.f32 %v5491, %v5566
  %v5576 = vadd.f32 %v5492, %v5568
  %5577 = vset.pattern.permute.xlu0 59
  %5578 = vperm.xlu0 %5577, %v3201
  %v5579 = vpop.permute.xlu0 %5578
  %5581 = vset.pattern.permute.xlu0 59
  %5582 = vperm.xlu0 %5581, %v3202
  %v5583 = vpop.permute.xlu0 %5582
  %5585 = vset.pattern.permute.xlu0 59
  %5586 = vperm.xlu0 %5585, %v3203
  %v5587 = vpop.permute.xlu0 %5586
  %5589 = vset.pattern.permute.xlu0 59
  %5590 = vperm.xlu0 %5589, %v3204
  %v5591 = vpop.permute.xlu0 %5590
  %v5593 = vmul.f32 %v5533, %v5579
  %v5594 = vmul.f32 %v5534, %v5583
  %v5595 = vmul.f32 %v5535, %v5587
  %v5596 = vmul.f32 %v5536, %v5591
  %5601 = vrot.lane.b32.xlu0 %v5593, 36
  %v5602 = vpop.permute.xlu0 %5601
  %5603 = vrot.lane.b32.xlu0 %v5594, 36
  %v5604 = vpop.permute.xlu0 %5603
  %5605 = vrot.lane.b32.xlu0 %v5595, 36
  %v5606 = vpop.permute.xlu0 %5605
  %5607 = vrot.lane.b32.xlu0 %v5596, 36
  %v5608 = vpop.permute.xlu0 %5607
  %v5613 = vadd.f32 %v5529, %v5602
  %v5614 = vadd.f32 %v5530, %v5604
  %v5615 = vadd.f32 %v5531, %v5606
  %v5616 = vadd.f32 %v5532, %v5608
  %v5617 = vmul.f32 %v3241, %v2902
  %v5618 = vmul.f32 %v3242, %v2902
  %v5619 = vmul.f32 %v3243, %v2902
  %v5620 = vmul.f32 %v3244, %v2902
  %5621 = vset.pattern.permute.xlu0 29
  %5622 = vperm.xlu0 %5621, %v3201
  %v5623 = vpop.permute.xlu0 %5622
  %5625 = vset.pattern.permute.xlu0 29
  %5626 = vperm.xlu0 %5625, %v3202
  %v5627 = vpop.permute.xlu0 %5626
  %5629 = vset.pattern.permute.xlu0 29
  %5630 = vperm.xlu0 %5629, %v3203
  %v5631 = vpop.permute.xlu0 %5630
  %5633 = vset.pattern.permute.xlu0 29
  %5634 = vperm.xlu0 %5633, %v3204
  %v5635 = vpop.permute.xlu0 %5634
  %v5637 = vmul.f32 %v5617, %v5623
  %v5638 = vmul.f32 %v5618, %v5627
  %v5639 = vmul.f32 %v5619, %v5631
  %v5640 = vmul.f32 %v5620, %v5635
  %5645 = vrot.lane.b32.xlu0 %v5637, 35
  %v5646 = vpop.permute.xlu0 %5645
  %5647 = vrot.lane.b32.xlu0 %v5638, 35
  %v5648 = vpop.permute.xlu0 %5647
  %5649 = vrot.lane.b32.xlu0 %v5639, 35
  %v5650 = vpop.permute.xlu0 %5649
  %5651 = vrot.lane.b32.xlu0 %v5640, 35
  %v5652 = vpop.permute.xlu0 %5651
  %v5657 = vadd.f32 %v5573, %v5646
  %v5658 = vadd.f32 %v5574, %v5648
  %v5659 = vadd.f32 %v5575, %v5650
  %v5660 = vadd.f32 %v5576, %v5652
  %5661 = vset.pattern.permute.xlu0 60
  %5662 = vperm.xlu0 %5661, %v3201
  %v5663 = vpop.permute.xlu0 %5662
  %5665 = vset.pattern.permute.xlu0 60
  %5666 = vperm.xlu0 %5665, %v3202
  %v5667 = vpop.permute.xlu0 %5666
  %5669 = vset.pattern.permute.xlu0 60
  %5670 = vperm.xlu0 %5669, %v3203
  %v5671 = vpop.permute.xlu0 %5670
  %5673 = vset.pattern.permute.xlu0 60
  %5674 = vperm.xlu0 %5673, %v3204
  %v5675 = vpop.permute.xlu0 %5674
  %v5677 = vmul.f32 %v5617, %v5663
  %v5678 = vmul.f32 %v5618, %v5667
  %v5679 = vmul.f32 %v5619, %v5671
  %v5680 = vmul.f32 %v5620, %v5675
  %5685 = vrot.lane.b32.xlu0 %v5677, 35
  %v5686 = vpop.permute.xlu0 %5685
  %5687 = vrot.lane.b32.xlu0 %v5678, 35
  %v5688 = vpop.permute.xlu0 %5687
  %5689 = vrot.lane.b32.xlu0 %v5679, 35
  %v5690 = vpop.permute.xlu0 %5689
  %5691 = vrot.lane.b32.xlu0 %v5680, 35
  %v5692 = vpop.permute.xlu0 %5691
  %v5697 = vadd.f32 %v5613, %v5686
  %v5698 = vadd.f32 %v5614, %v5688
  %v5699 = vadd.f32 %v5615, %v5690
  %v5700 = vadd.f32 %v5616, %v5692
  %v5701 = vmul.f32 %v3241, %v2996
  %v5702 = vmul.f32 %v3242, %v2996
  %v5703 = vmul.f32 %v3243, %v2996
  %v5704 = vmul.f32 %v3244, %v2996
  %5705 = vset.pattern.permute.xlu0 30
  %5706 = vperm.xlu0 %5705, %v3201
  %v5707 = vpop.permute.xlu0 %5706
  %5709 = vset.pattern.permute.xlu0 30
  %5710 = vperm.xlu0 %5709, %v3202
  %v5711 = vpop.permute.xlu0 %5710
  %5713 = vset.pattern.permute.xlu0 30
  %5714 = vperm.xlu0 %5713, %v3203
  %v5715 = vpop.permute.xlu0 %5714
  %5717 = vset.pattern.permute.xlu0 30
  %5718 = vperm.xlu0 %5717, %v3204
  %v5719 = vpop.permute.xlu0 %5718
  %v5721 = vmul.f32 %v5701, %v5707
  %v5722 = vmul.f32 %v5702, %v5711
  %v5723 = vmul.f32 %v5703, %v5715
  %v5724 = vmul.f32 %v5704, %v5719
  %5729 = vrot.lane.b32.xlu0 %v5721, 34
  %v5730 = vpop.permute.xlu0 %5729
  %5731 = vrot.lane.b32.xlu0 %v5722, 34
  %v5732 = vpop.permute.xlu0 %5731
  %5733 = vrot.lane.b32.xlu0 %v5723, 34
  %v5734 = vpop.permute.xlu0 %5733
  %5735 = vrot.lane.b32.xlu0 %v5724, 34
  %v5736 = vpop.permute.xlu0 %5735
  %v5741 = vadd.f32 %v5657, %v5730
  %v5742 = vadd.f32 %v5658, %v5732
  %v5743 = vadd.f32 %v5659, %v5734
  %v5744 = vadd.f32 %v5660, %v5736
  %5745 = vset.pattern.permute.xlu0 61
  %5746 = vperm.xlu0 %5745, %v3201
  %v5747 = vpop.permute.xlu0 %5746
  %5749 = vset.pattern.permute.xlu0 61
  %5750 = vperm.xlu0 %5749, %v3202
  %v5751 = vpop.permute.xlu0 %5750
  %5753 = vset.pattern.permute.xlu0 61
  %5754 = vperm.xlu0 %5753, %v3203
  %v5755 = vpop.permute.xlu0 %5754
  %5757 = vset.pattern.permute.xlu0 61
  %5758 = vperm.xlu0 %5757, %v3204
  %v5759 = vpop.permute.xlu0 %5758
  %v5761 = vmul.f32 %v5701, %v5747
  %v5762 = vmul.f32 %v5702, %v5751
  %v5763 = vmul.f32 %v5703, %v5755
  %v5764 = vmul.f32 %v5704, %v5759
  %5769 = vrot.lane.b32.xlu0 %v5761, 34
  %v5770 = vpop.permute.xlu0 %5769
  %5771 = vrot.lane.b32.xlu0 %v5762, 34
  %v5772 = vpop.permute.xlu0 %5771
  %5773 = vrot.lane.b32.xlu0 %v5763, 34
  %v5774 = vpop.permute.xlu0 %5773
  %5775 = vrot.lane.b32.xlu0 %v5764, 34
  %v5776 = vpop.permute.xlu0 %5775
  %v5781 = vadd.f32 %v5697, %v5770
  %v5782 = vadd.f32 %v5698, %v5772
  %v5783 = vadd.f32 %v5699, %v5774
  %v5784 = vadd.f32 %v5700, %v5776
  %5789 = vrot.lane.b32.xlu0 %v5781, 79
  %v5790 = vpop.permute.xlu0 %5789
  %5791 = vrot.lane.b32.xlu0 %v5782, 79
  %v5792 = vpop.permute.xlu0 %5791
  %5793 = vrot.lane.b32.xlu0 %v5783, 79
  %v5794 = vpop.permute.xlu0 %5793
  %5795 = vrot.lane.b32.xlu0 %v5784, 79
  %v5796 = vpop.permute.xlu0 %5795
  %v5801 = vrot.slane %v5790, 1
  %v5802 = vrot.slane %v5792, 1
  %v5803 = vrot.slane %v5794, 1
  %v5804 = vrot.slane %v5796, 1
  %v5805 = vsel %vm3102, %v5803, %v5804
  %v5806 = vsel %vm3102, %v5802, %v5803
  %v5807 = vsel %vm3102, %v5801, %v5802
  %v5808 = vsel %vm3102, %v5804, %v5801
  %v5809 = vrot.slane %v5790, 7
  %v5810 = vrot.slane %v5792, 7
  %v5811 = vrot.slane %v5794, 7
  %v5812 = vrot.slane %v5796, 7
  %v5813 = vsel %vm3111, %v5811, %v5812
  %v5814 = vsel %vm3111, %v5810, %v5811
  %v5815 = vsel %vm3111, %v5809, %v5810
  %v5816 = vsel %vm3111, %v5812, %v5809
  %v5817 = vsel %vm178, %v5807, %v5816
  %v5818 = vsel %vm179, %v5806, %v5815
  %v5819 = vsel %vm180, %v5805, %v5814
  %v5820 = vsel %vm181, %v5808, %v5813
  %5825 = vrot.lane.b32.xlu0 %v5817, 49
  %v5826 = vpop.permute.xlu0 %5825
  %5827 = vrot.lane.b32.xlu0 %v5818, 49
  %v5828 = vpop.permute.xlu0 %5827
  %5829 = vrot.lane.b32.xlu0 %v5819, 49
  %v5830 = vpop.permute.xlu0 %5829
  %5831 = vrot.lane.b32.xlu0 %v5820, 49
  %v5832 = vpop.permute.xlu0 %5831
  %v5837 = vadd.f32 %v5741, %v5826
  %v5838 = vadd.f32 %v5742, %v5828
  %v5839 = vadd.f32 %v5743, %v5830
  %v5840 = vadd.f32 %v5744, %v5832
  %5841 = vset.pattern.permute.xlu0 62
  %5842 = vperm.xlu0 %5841, %v3201
  %v5843 = vpop.permute.xlu0 %5842
  %5845 = vset.pattern.permute.xlu0 62
  %5846 = vperm.xlu0 %5845, %v3202
  %v5847 = vpop.permute.xlu0 %5846
  %5849 = vset.pattern.permute.xlu0 62
  %5850 = vperm.xlu0 %5849, %v3203
  %v5851 = vpop.permute.xlu0 %5850
  %5853 = vset.pattern.permute.xlu0 62
  %5854 = vperm.xlu0 %5853, %v3204
  %v5855 = vpop.permute.xlu0 %5854
  %v5857 = vadd.f32 %v5837, %v5843
  %v5858 = vadd.f32 %v5838, %v5847
  %v5859 = vadd.f32 %v5839, %v5851
  %v5860 = vadd.f32 %v5840, %v5855
  %v5861 = vmin.f32 %v5857, 20.0
  %v5862 = vmin.f32 %v5858, 20.0
  %v5863 = vmin.f32 %v5859, 20.0
  %v5864 = vmin.f32 %v5860, 20.0
  %v5865 = vmul.f32 %v5861, 1.442695
  %v5866 = vpow.pop %v5865
  %v5867 = vmul.f32 %v5862, 1.442695
  %v5868 = vpow.pop %v5867
  %v5869 = vmul.f32 %v5863, 1.442695
  %v5870 = vpow.pop %v5869
  %v5871 = vmul.f32 %v5864, 1.442695
  %v5872 = vpow.pop %v5871
  %v5873 = vadd.f32 %v5866, 1.0
  %v5874 = vadd.f32 %v5868, 1.0
  %v5875 = vadd.f32 %v5870, 1.0
  %v5876 = vadd.f32 %v5872, 1.0
  %v5877 = vmul.f32 %v5873, %v5873
  %v5878 = vmul.f32 %v5874, %v5874
  %v5879 = vmul.f32 %v5875, %v5875
  %v5880 = vmul.f32 %v5876, %v5876
  %v5881 = vadd.f32 %v5877, 1.0
  %v5882 = vadd.f32 %v5878, 1.0
  %v5883 = vadd.f32 %v5879, 1.0
  %v5884 = vadd.f32 %v5880, 1.0
  %v5885 = vrcp.pop %v5881
  %v5886 = vmul.f32 2.0, %v5885
  %v5887 = vrcp.pop %v5882
  %v5888 = vmul.f32 2.0, %v5887
  %v5889 = vrcp.pop %v5883
  %v5890 = vmul.f32 2.0, %v5889
  %v5891 = vrcp.pop %v5884
  %v5892 = vmul.f32 2.0, %v5891
  %v5893 = vsub.f32 1.0, %v5886
  %v5894 = vsub.f32 1.0, %v5888
  %v5895 = vsub.f32 1.0, %v5890
  %v5896 = vsub.f32 1.0, %v5892
  %v5897 = vmul.f32 %v5857, %v5893
  %v5898 = vmul.f32 %v5858, %v5894
  %v5899 = vmul.f32 %v5859, %v5895
  %v5900 = vmul.f32 %v5860, %v5896
  %5905 = vrot.lane.b32.xlu0 %v107, 49
  %v5906 = vpop.permute.xlu0 %5905
  %5907 = vrot.lane.b32.xlu0 %v112, 49
  %v5908 = vpop.permute.xlu0 %5907
  %5909 = vrot.lane.b32.xlu0 %v117, 49
  %v5910 = vpop.permute.xlu0 %5909
  %5911 = vrot.lane.b32.xlu0 %v122, 49
  %v5912 = vpop.permute.xlu0 %5911
  %v5917 = vadd.f32 %v5897, %v5906
  %v5918 = vadd.f32 %v5898, %v5908
  %v5919 = vadd.f32 %v5899, %v5910
  %v5920 = vadd.f32 %v5900, %v5912
  %5925 = vrot.lane.b32.xlu0 %v5917, 79
  %v5926 = vpop.permute.xlu0 %5925
  %5927 = vrot.lane.b32.xlu0 %v5918, 79
  %v5928 = vpop.permute.xlu0 %5927
  %5929 = vrot.lane.b32.xlu0 %v5919, 79
  %v5930 = vpop.permute.xlu0 %5929
  %5931 = vrot.lane.b32.xlu0 %v5920, 79
  %v5932 = vpop.permute.xlu0 %5931
  %vm5937 = vcmask 523264
  %5938 = vst.msk [vmem:[%s4] sm:$0xff] %vm5937, %v5926
  %5939 = vst.msk [vmem:[%s4 + $0x8] sm:$0xff] %vm5937, %v5928
  %5940 = vst.msk [vmem:[%s4 + $0x10] sm:$0xff] %vm5937, %v5930
  %5941 = vst.msk [vmem:[%s4 + $0x18] sm:$0xff] %vm5937, %v5932
  // Predicated region
  $region18: #{input_embedding.1} parent=0 // pred_check
    _
  $region19: #{input_embedding.1} parent=0 // pred_check_branch
    %5943 = sbr.rel (0) target = $region21
  $region20: #{input_embedding.1} parent=0 // pred_region
    _
  $region21: #{input_embedding.1} parent=0 // pred_fallthru
    _
  // Predicated region
  $region22: #{input_embedding.1} parent=0 // pred_check
    _
  $region23: #{input_embedding.1} parent=0 // pred_check_branch
    %5945 = sbr.rel (0) target = $region25
  $region24: #{input_embedding.1} parent=0 // pred_region
    _
  $region25: #{input_embedding.1} parent=0 // pred_fallthru
    _

</llo_original>
